<compile_context>
chip_gen: v7x
topology: tpu7x:2x2x1
jax: 0.10.0
libtpu: 0.0.40
codegen_flags: <defaults>
</compile_context>

<pallas_src>
import jax
import jax.numpy as jnp
import numpy as np
from jax.experimental import pallas as pl
from jax.experimental.pallas import tpu as pltpu


# ----------------------------- Pallas kernel -------------------------------


def _make_bottleneck_kernel(H, W):
    HW = H * W

    def kernel(x_ref, w1_ref, b1_ref, w2_ref, b2_ref, w3_ref, b3_ref,
               o_ref, pack_ref):
        """Fused conv1x1 -> conv3x3 -> conv1x1 with folded BN, ReLU, residual.

        Per grid step (one image):
          x_ref  : (1, H*W, Cin_p)        bf16
          w1_ref : (Cin_p, P_p)           bf16  (BN1 scale folded in)
          w2_ref : (3, 3*P_p, P_p)        bf16  [kh, kw*P_p+ci, co], BN2 folded
          w3_ref : (P_p, Cexp_p)          bf16  (BN3 scale folded in)
          b*_ref : (1, C_p)               f32   folded BN biases
          o_ref  : (1, H*W, Cexp_p)       bf16
          pack_ref: ((H+2)*W, 3*P_p)      bf16  width-im2col scratch (kh halo rows)
        """
        cin_p = x_ref.shape[2]
        p_p = w1_ref.shape[1]
        cexp_p = w3_ref.shape[1]

        x2d = x_ref[0]                                          # (HW, Cin_p) bf16

        # ---- conv1 (1x1) + bias + relu (f32 accumulation) ------------------
        acc1 = jnp.dot(x2d, w1_ref[...], preferred_element_type=jnp.float32)
        out1 = jnp.maximum(acc1 + b1_ref[...], 0.0)             # (HW, P_p) f32

        # ---- width-only im2col pack into bf16 VMEM scratch ------------------
        # Zero only the 2*W kh-halo rows (interior fully overwritten below);
        # doing it every step keeps the kernel correct under megacore sharding.
        zrow = jnp.zeros((W, 3 * p_p), pack_ref.dtype)
        pack_ref[pl.ds(0, W), :] = zrow
        pack_ref[pl.ds((H + 1) * W, W), :] = zrow

        # Left/right width-neighbours via XLU sublane rotates; rows on the
        # image's left/right edge (and the rotation wrap rows) are masked to 0.
        wcol = jax.lax.broadcasted_iota(jnp.int32, (HW, p_p), 0) % W
        left = jnp.where(wcol > 0, pltpu.roll(out1, 1, 0), 0.0)
        right = jnp.where(wcol < W - 1, pltpu.roll(out1, HW - 1, 0), 0.0)

        pack_ref[pl.ds(W, HW), 0:p_p] = left.astype(pack_ref.dtype)
        pack_ref[pl.ds(W, HW), p_p:2 * p_p] = out1.astype(pack_ref.dtype)
        pack_ref[pl.ds(W, HW), 2 * p_p:3 * p_p] = right.astype(pack_ref.dtype)

        # ---- conv2 (3x3, stride=1, pad=1): 3 matmuls with K = 3*P_p ---------
        acc2 = jnp.zeros((HW, p_p), jnp.float32)
        for kh in range(3):                                      # kh*W is static & aligned
            acc2 = acc2 + jnp.dot(pack_ref[pl.ds(kh * W, HW), :], w2_ref[kh],
                                  preferred_element_type=jnp.float32)
        out2 = jnp.maximum(acc2 + b2_ref[...], 0.0).astype(jnp.bfloat16)

        # ---- conv3 (1x1) + bias + residual add + relu -----------------------
        acc3 = jnp.dot(out2, w3_ref[...], preferred_element_type=jnp.float32)
        out3 = jnp.maximum(acc3 + b3_ref[...] + x2d.astype(jnp.float32), 0.0)
        o_ref[0] = out3.astype(o_ref.dtype)                      # bf16 writeback

    return kernel


# ------------------------------- glue (JAX) ---------------------------------


def _round_up(n, m=128):
    return ((n + m - 1) // m) * m


def _pad_last(a, *targets):
    """Zero-pad the trailing len(targets) dims of `a` up to `targets`."""
    lead = a.ndim - len(targets)
    widths = [(0, 0)] * lead + [(0, t - s) for t, s in zip(targets, a.shape[lead:])]
    if all(w == (0, 0) for w in widths):
        return a
    return jnp.pad(a, widths)


def _fold_bn(gamma, beta, mean, var, eps=1e-5):
    scale = gamma.astype(jnp.float32) / jnp.sqrt(var.astype(jnp.float32) + eps)
    bias = beta.astype(jnp.float32) - mean.astype(jnp.float32) * scale
    return scale, bias


def bottleneck_forward(x_nchw, params, stride=1):
    """Forward of the Bottleneck block (stride=1, downsample=None). Returns bf16 NCHW."""
    assert stride == 1, "fused kernel supports stride=1 / downsample=None only"
    N, cin, H, W = x_nchw.shape
    planes = params["w1"].shape[0]
    cexp = params["w3"].shape[0]
    assert cin == cexp, "identity residual requires inplanes == planes * 4"

    cin_p, p_p, cexp_p = _round_up(cin), _round_up(planes), _round_up(cexp)
    hw = H * W

    # NCHW -> (N, H*W, C) channels-last GEMM layout around the Pallas path.
    x = jnp.transpose(x_nchw, (0, 2, 3, 1)).reshape(N, hw, cin)
    x = _pad_last(x, cin_p).astype(jnp.bfloat16)

    # Fold BN running stats: scale into the conv weights, keep biases separate.
    s1, b1 = _fold_bn(params["g1"], params["b1"], params["m1"], params["v1"])
    s2, b2 = _fold_bn(params["g2"], params["b2"], params["m2"], params["v2"])
    s3, b3 = _fold_bn(params["g3"], params["b3"], params["m3"], params["v3"])

    w1 = params["w1"].reshape(planes, cin).astype(jnp.float32) * s1[:, None]
    w1 = _pad_last(w1.T, cin_p, p_p).astype(jnp.bfloat16)              # (Cin_p, P_p)

    w2 = params["w2"].astype(jnp.float32) * s2[:, None, None, None]    # (co, ci, kh, kw)
    w2 = jnp.transpose(w2, (2, 3, 1, 0))                               # (kh, kw, ci, co)
    w2 = _pad_last(w2, p_p, p_p).reshape(3, 3 * p_p, p_p)              # [kh, kw*P_p+ci, co]
    w2 = w2.astype(jnp.bfloat16)

    w3 = params["w3"].reshape(cexp, planes).astype(jnp.float32) * s3[:, None]
    w3 = _pad_last(w3.T, p_p, cexp_p).astype(jnp.bfloat16)             # (P_p, Cexp_p)

    b1 = _pad_last(b1.reshape(1, -1), p_p)
    b2 = _pad_last(b2.reshape(1, -1), p_p)
    b3 = _pad_last(b3.reshape(1, -1), cexp_p)

    img = lambda n: (n, 0, 0)
    rep2 = lambda n: (0, 0)
    rep3 = lambda n: (0, 0, 0)

    # Per-step VMEM estimate (dbl-buffered bf16 I/O, bf16 pack scratch, weights,
    # f32 accumulator temporaries), capped at half the physical VMEM so the same
    # kernel stays valid on v7x's 64 MiB per-TC budget.
    est = (2 * hw * cin_p * 2                                    # x (dbl-buffered)
           + 2 * hw * cexp_p * 2                                 # out (dbl-buffered)
           + (hw + 2 * W) * 3 * p_p * 2                          # pack scratch
           + 2 * (cin_p * p_p + 9 * p_p * p_p + p_p * cexp_p) * 2  # weights
           + hw * (5 * p_p + 2 * cexp_p) * 4)                    # f32 temporaries
    try:
        phys_vmem = int(pltpu.get_tpu_info().vmem_capacity_bytes)
    except Exception:
        phys_vmem = 64 * 2 ** 20                                 # v7x per-TC (smallest)
    vmem_limit = int(min(phys_vmem // 2, max(16 * 2 ** 20, 3 * est // 2)))

    out = pl.pallas_call(
        _make_bottleneck_kernel(H, W),
        out_shape=jax.ShapeDtypeStruct((N, hw, cexp_p), jnp.bfloat16),
        grid_spec=pltpu.PrefetchScalarGridSpec(
            num_scalar_prefetch=0,
            grid=(N,),
            in_specs=[
                pl.BlockSpec((1, hw, cin_p), img),     # x (per-image tile)
                pl.BlockSpec((cin_p, p_p), rep2),      # w1 (resident)
                pl.BlockSpec((1, p_p), rep2),          # b1
                pl.BlockSpec((3, 3 * p_p, p_p), rep3), # w2 packed (resident)
                pl.BlockSpec((1, p_p), rep2),          # b2
                pl.BlockSpec((p_p, cexp_p), rep2),     # w3 (resident)
                pl.BlockSpec((1, cexp_p), rep2),       # b3
            ],
            out_specs=pl.BlockSpec((1, hw, cexp_p), img),
            scratch_shapes=[pltpu.VMEM(((H + 2) * W, 3 * p_p), jnp.bfloat16)],
        ),
        compiler_params=pltpu.CompilerParams(
            dimension_semantics=("parallel",),
            vmem_limit_bytes=vmem_limit,
        ),
    )(x, w1, b1, w2, b2, w3, b3)

    out = out[..., :cexp].reshape(N, H, W, cexp)        # strip lane padding
    return jnp.transpose(out, (0, 3, 1, 2))             # back to NCHW (bf16)


# ----------------------------- plain-JAX reference --------------------------


def reference_bottleneck(x, p, stride=1, eps=1e-5):
    def conv(x, w, stride=1, pad=0):
        return jax.lax.conv_general_dilated(
            x, w, (stride, stride), [(pad, pad), (pad, pad)],
            dimension_numbers=("NCHW", "OIHW", "NCHW"))

    def bn(x, g, b, m, v):
        sh = (1, -1, 1, 1)
        return (x - m.reshape(sh)) / jnp.sqrt(v.reshape(sh) + eps) * g.reshape(sh) + b.reshape(sh)

    out = jax.nn.relu(bn(conv(x, p["w1"]), p["g1"], p["b1"], p["m1"], p["v1"]))
    out = jax.nn.relu(bn(conv(out, p["w2"], stride, 1), p["g2"], p["b2"], p["m2"], p["v2"]))
    out = bn(conv(out, p["w3"]), p["g3"], p["b3"], p["m3"], p["v3"])
    return jax.nn.relu(out + x)


# ---------------------------------- main ------------------------------------

if __name__ == "__main__":
    key = jax.random.PRNGKey(0)
    inplanes, planes, stride = 16, 4, 1   # inplanes == planes*4 -> downsample=None
    N, H, W = 2, 16, 16
    ks = jax.random.split(key, 16)

    x = jax.random.normal(ks[0], (N, inplanes, H, W), jnp.float32)

    params = {
        "w1": jax.random.normal(ks[1], (planes, inplanes, 1, 1), jnp.float32) * 0.2,
        "w2": jax.random.normal(ks[2], (planes, planes, 3, 3), jnp.float32) * 0.2,
        "w3": jax.random.normal(ks[3], (planes * 4, planes, 1, 1), jnp.float32) * 0.2,
        "g1": jax.random.uniform(ks[4], (planes,), minval=0.5, maxval=1.5),
        "b1": jax.random.normal(ks[5], (planes,)) * 0.1,
        "m1": jax.random.normal(ks[6], (planes,)) * 0.1,
        "v1": jax.random.uniform(ks[7], (planes,), minval=0.5, maxval=1.5),
        "g2": jax.random.uniform(ks[8], (planes,), minval=0.5, maxval=1.5),
        "b2": jax.random.normal(ks[9], (planes,)) * 0.1,
        "m2": jax.random.normal(ks[10], (planes,)) * 0.1,
        "v2": jax.random.uniform(ks[11], (planes,), minval=0.5, maxval=1.5),
        "g3": jax.random.uniform(ks[12], (planes * 4,), minval=0.5, maxval=1.5),
        "b3": jax.random.normal(ks[13], (planes * 4,)) * 0.1,
        "m3": jax.random.normal(ks[14], (planes * 4,)) * 0.1,
        "v3": jax.random.uniform(ks[15], (planes * 4,), minval=0.5, maxval=1.5),
    }

    out = jax.jit(lambda x, p: bottleneck_forward(x, p, stride))(x, params)
    out = jax.block_until_ready(out)

    ref = reference_bottleneck(x, params, stride)
    # bf16 MXU inputs, folded bf16 weights and bf16 output vs f32 reference.
    np.testing.assert_allclose(np.asarray(out, dtype=np.float32), np.asarray(ref),
                               rtol=5e-2, atol=5e-2)

    print("KERNEL_OK")
</pallas_src>

<mosaic_0001>
module attributes {stable_mosaic.version = 11 : i64} {
  func.func @kernel(%arg0: i32, %arg1: memref<1x256x128xbf16, #tpu.memory_space<vmem>>, %arg2: memref<128x128xbf16, #tpu.memory_space<vmem>>, %arg3: memref<1x128xf32, #tpu.memory_space<vmem>>, %arg4: memref<3x384x128xbf16, #tpu.memory_space<vmem>>, %arg5: memref<1x128xf32, #tpu.memory_space<vmem>>, %arg6: memref<128x128xbf16, #tpu.memory_space<vmem>>, %arg7: memref<1x128xf32, #tpu.memory_space<vmem>>, %arg8: memref<1x256x128xbf16, #tpu.memory_space<vmem>>, %arg9: memref<288x384xbf16, #tpu.memory_space<vmem>>) attributes {dimension_semantics = [#tpu.dimension_semantics<parallel>], iteration_bounds = array<i64: 2>, scalar_prefetch = 0 : i64, scratch_operands = 1 : i64, tpu.core_type = #tpu.core_type<tc>, window_params = [{transform_indices = @transform_0, window_bounds = array<i64: 1, 256, 128>}, {pipeline_mode = #tpu.pipeline_mode<synchronous>, transform_indices = @transform_1, window_bounds = array<i64: 128, 128>}, {pipeline_mode = #tpu.pipeline_mode<synchronous>, transform_indices = @transform_2, window_bounds = array<i64: 1, 128>}, {pipeline_mode = #tpu.pipeline_mode<synchronous>, transform_indices = @transform_3, window_bounds = array<i64: 3, 384, 128>}, {pipeline_mode = #tpu.pipeline_mode<synchronous>, transform_indices = @transform_4, window_bounds = array<i64: 1, 128>}, {pipeline_mode = #tpu.pipeline_mode<synchronous>, transform_indices = @transform_5, window_bounds = array<i64: 128, 128>}, {pipeline_mode = #tpu.pipeline_mode<synchronous>, transform_indices = @transform_6, window_bounds = array<i64: 1, 128>}, {transform_indices = @transform_7, window_bounds = array<i64: 1, 256, 128>}]} {
    %c0 = arith.constant 0 : index
    %c0_0 = arith.constant 0 : index
    %c0_1 = arith.constant 0 : index
    %0 = vector.load %arg1[%c0, %c0_0, %c0_1] : memref<1x256x128xbf16, #tpu.memory_space<vmem>>, vector<1x256x128xbf16>
    %1 = vector.shape_cast %0 : vector<1x256x128xbf16> to vector<256x128xbf16>
    %c0_2 = arith.constant 0 : index
    %c0_3 = arith.constant 0 : index
    %2 = vector.load %arg2[%c0_2, %c0_3] : memref<128x128xbf16, #tpu.memory_space<vmem>>, vector<128x128xbf16>
    %cst = arith.constant dense<0.000000e+00> : vector<256x128xf32>
    %3 = tpu.matmul %1, %2, %cst {dimension_numbers = #tpu.dot_dimension_numbers<[1], [0], [0], [1], [0, 0, 1, 1], [], []>} : vector<256x128xbf16>, vector<128x128xbf16>, vector<256x128xf32> -> vector<256x128xf32>
    %c0_4 = arith.constant 0 : index
    %c0_5 = arith.constant 0 : index
    %4 = vector.load %arg3[%c0_4, %c0_5] : memref<1x128xf32, #tpu.memory_space<vmem>>, vector<1x128xf32>
    %5 = vector.broadcast %4 : vector<1x128xf32> to vector<256x128xf32>
    %6 = arith.addf %3, %5 : vector<256x128xf32>
    %cst_6 = arith.constant 0.000000e+00 : f32
    %7 = vector.broadcast %cst_6 : f32 to vector<256x128xf32>
    %8 = arith.maximumf %6, %7 : vector<256x128xf32>
    %cst_7 = arith.constant 0.000000e+00 : bf16
    %9 = vector.broadcast %cst_7 : bf16 to vector<16x384xbf16>
    %c0_8 = arith.constant 0 : index
    %c0_9 = arith.constant 0 : index
    %10 = vector.load %arg9[%c0_8, %c0_9] : memref<288x384xbf16, #tpu.memory_space<vmem>>, vector<16x384xbf16>
    tpu.vector_store %arg9[%c0_8, %c0_9], %9 {strides = array<i32>} : memref<288x384xbf16, #tpu.memory_space<vmem>>, vector<16x384xbf16>,
    %c272 = arith.constant 272 : index
    %c0_10 = arith.constant 0 : index
    %11 = vector.load %arg9[%c272, %c0_10] : memref<288x384xbf16, #tpu.memory_space<vmem>>, vector<16x384xbf16>
    tpu.vector_store %arg9[%c272, %c0_10], %9 {strides = array<i32>} : memref<288x384xbf16, #tpu.memory_space<vmem>>, vector<16x384xbf16>,
    %12 = tpu.iota {dimensions = array<i32: 0>} : vector<256x128xi32>
    %c16_i32 = arith.constant 16 : i32
    %c0_i32 = arith.constant 0 : i32
    %13 = arith.cmpi eq, %c16_i32, %c0_i32 : i32
    %c1_i32 = arith.constant 1 : i32
    %14 = arith.select %13, %c1_i32, %c16_i32 : i32
    %15 = vector.broadcast %14 : i32 to vector<256x128xi32>
    %16 = arith.remsi %12, %15 : vector<256x128xi32>
    %c0_i32_11 = arith.constant 0 : i32
    %17 = vector.broadcast %c0_i32_11 : i32 to vector<256x128xi32>
    %18 = arith.cmpi ne, %16, %17 : vector<256x128xi32>
    %c0_i32_12 = arith.constant 0 : i32
    %19 = vector.broadcast %c0_i32_12 : i32 to vector<256x128xi32>
    %20 = arith.cmpi slt, %16, %19 : vector<256x128xi32>
    %c0_i32_13 = arith.constant 0 : i32
    %21 = arith.cmpi slt, %14, %c0_i32_13 : i32
    %22 = vector.broadcast %21 : i1 to vector<256x128xi1>
    %23 = vector.broadcast %22 : vector<256x128xi1> to vector<256x128xi1>
    %24 = arith.xori %20, %23 : vector<256x128xi1>
    %25 = arith.andi %24, %18 : vector<256x128xi1>
    %26 = vector.broadcast %14 : i32 to vector<256x128xi32>
    %27 = arith.addi %16, %26 : vector<256x128xi32>
    %28 = arith.select %25, %27, %16 : vector<256x128xi1>, vector<256x128xi32>
    %c0_i32_14 = arith.constant 0 : i32
    %29 = vector.broadcast %c0_i32_14 : i32 to vector<256x128xi32>
    %30 = arith.cmpi sgt, %28, %29 : vector<256x128xi32>
    %c1_i32_15 = arith.constant 1 : i32
    %31 = tpu.dynamic_rotate %8 by %c1_i32_15 dim 0 : vector<256x128xf32>, i32 -> vector<256x128xf32>
    %cst_16 = arith.constant 0.000000e+00 : f32
    %32 = vector.broadcast %cst_16 : f32 to vector<256x128xf32>
    %33 = arith.select %30, %31, %32 : vector<256x128xi1>, vector<256x128xf32>
    %c15_i32 = arith.constant 15 : i32
    %34 = vector.broadcast %c15_i32 : i32 to vector<256x128xi32>
    %35 = arith.cmpi slt, %28, %34 : vector<256x128xi32>
    %c255_i32 = arith.constant 255 : i32
    %36 = tpu.dynamic_rotate %8 by %c255_i32 dim 0 : vector<256x128xf32>, i32 -> vector<256x128xf32>
    %cst_17 = arith.constant 0.000000e+00 : f32
    %37 = vector.broadcast %cst_17 : f32 to vector<256x128xf32>
    %38 = arith.select %35, %36, %37 : vector<256x128xi1>, vector<256x128xf32>
    %39 = arith.truncf %33 : vector<256x128xf32> to vector<256x128xbf16>
    %c16 = arith.constant 16 : index
    %c0_18 = arith.constant 0 : index
    %40 = vector.load %arg9[%c16, %c0_18] : memref<288x384xbf16, #tpu.memory_space<vmem>>, vector<256x128xbf16>
    tpu.vector_store %arg9[%c16, %c0_18], %39 {strides = array<i32>} : memref<288x384xbf16, #tpu.memory_space<vmem>>, vector<256x128xbf16>,
    %41 = arith.truncf %8 : vector<256x128xf32> to vector<256x128xbf16>
    %c16_19 = arith.constant 16 : index
    %c128 = arith.constant 128 : index
    %42 = vector.load %arg9[%c16_19, %c128] : memref<288x384xbf16, #tpu.memory_space<vmem>>, vector<256x128xbf16>
    tpu.vector_store %arg9[%c16_19, %c128], %41 {strides = array<i32>} : memref<288x384xbf16, #tpu.memory_space<vmem>>, vector<256x128xbf16>,
    %43 = arith.truncf %38 : vector<256x128xf32> to vector<256x128xbf16>
    %c16_20 = arith.constant 16 : index
    %c256 = arith.constant 256 : index
    %44 = vector.load %arg9[%c16_20, %c256] : memref<288x384xbf16, #tpu.memory_space<vmem>>, vector<256x128xbf16>
    tpu.vector_store %arg9[%c16_20, %c256], %43 {strides = array<i32>} : memref<288x384xbf16, #tpu.memory_space<vmem>>, vector<256x128xbf16>,
    %cst_21 = arith.constant 0.000000e+00 : f32
    %45 = vector.broadcast %cst_21 : f32 to vector<256x128xf32>
    %c0_22 = arith.constant 0 : index
    %c0_23 = arith.constant 0 : index
    %46 = vector.load %arg9[%c0_22, %c0_23] : memref<288x384xbf16, #tpu.memory_space<vmem>>, vector<256x384xbf16>
    %c0_24 = arith.constant 0 : index
    %c0_25 = arith.constant 0 : index
    %c0_26 = arith.constant 0 : index
    %47 = vector.load %arg4[%c0_24, %c0_25, %c0_26] : memref<3x384x128xbf16, #tpu.memory_space<vmem>>, vector<1x384x128xbf16>
    %48 = vector.shape_cast %47 : vector<1x384x128xbf16> to vector<384x128xbf16>
    %cst_27 = arith.constant dense<0.000000e+00> : vector<256x128xf32>
    %49 = tpu.matmul %46, %48, %cst_27 {dimension_numbers = #tpu.dot_dimension_numbers<[1], [0], [0], [1], [0, 0, 1, 1], [], []>} : vector<256x384xbf16>, vector<384x128xbf16>, vector<256x128xf32> -> vector<256x128xf32>
    %50 = arith.addf %45, %49 : vector<256x128xf32>
    %c16_28 = arith.constant 16 : index
    %c0_29 = arith.constant 0 : index
    %51 = vector.load %arg9[%c16_28, %c0_29] : memref<288x384xbf16, #tpu.memory_space<vmem>>, vector<256x384xbf16>
    %c1 = arith.constant 1 : index
    %c0_30 = arith.constant 0 : index
    %c0_31 = arith.constant 0 : index
    %52 = vector.load %arg4[%c1, %c0_30, %c0_31] : memref<3x384x128xbf16, #tpu.memory_space<vmem>>, vector<1x384x128xbf16>
    %53 = vector.shape_cast %52 : vector<1x384x128xbf16> to vector<384x128xbf16>
    %cst_32 = arith.constant dense<0.000000e+00> : vector<256x128xf32>
    %54 = tpu.matmul %51, %53, %cst_32 {dimension_numbers = #tpu.dot_dimension_numbers<[1], [0], [0], [1], [0, 0, 1, 1], [], []>} : vector<256x384xbf16>, vector<384x128xbf16>, vector<256x128xf32> -> vector<256x128xf32>
    %55 = arith.addf %50, %54 : vector<256x128xf32>
    %c32 = arith.constant 32 : index
    %c0_33 = arith.constant 0 : index
    %56 = vector.load %arg9[%c32, %c0_33] : memref<288x384xbf16, #tpu.memory_space<vmem>>, vector<256x384xbf16>
    %c2 = arith.constant 2 : index
    %c0_34 = arith.constant 0 : index
    %c0_35 = arith.constant 0 : index
    %57 = vector.load %arg4[%c2, %c0_34, %c0_35] : memref<3x384x128xbf16, #tpu.memory_space<vmem>>, vector<1x384x128xbf16>
    %58 = vector.shape_cast %57 : vector<1x384x128xbf16> to vector<384x128xbf16>
    %cst_36 = arith.constant dense<0.000000e+00> : vector<256x128xf32>
    %59 = tpu.matmul %56, %58, %cst_36 {dimension_numbers = #tpu.dot_dimension_numbers<[1], [0], [0], [1], [0, 0, 1, 1], [], []>} : vector<256x384xbf16>, vector<384x128xbf16>, vector<256x128xf32> -> vector<256x128xf32>
    %60 = arith.addf %55, %59 : vector<256x128xf32>
    %c0_37 = arith.constant 0 : index
    %c0_38 = arith.constant 0 : index
    %61 = vector.load %arg5[%c0_37, %c0_38] : memref<1x128xf32, #tpu.memory_space<vmem>>, vector<1x128xf32>
    %62 = vector.broadcast %61 : vector<1x128xf32> to vector<256x128xf32>
    %63 = arith.addf %60, %62 : vector<256x128xf32>
    %cst_39 = arith.constant 0.000000e+00 : f32
    %64 = vector.broadcast %cst_39 : f32 to vector<256x128xf32>
    %65 = arith.maximumf %63, %64 : vector<256x128xf32>
    %66 = arith.truncf %65 : vector<256x128xf32> to vector<256x128xbf16>
    %c0_40 = arith.constant 0 : index
    %c0_41 = arith.constant 0 : index
    %67 = vector.load %arg6[%c0_40, %c0_41] : memref<128x128xbf16, #tpu.memory_space<vmem>>, vector<128x128xbf16>
    %cst_42 = arith.constant dense<0.000000e+00> : vector<256x128xf32>
    %68 = tpu.matmul %66, %67, %cst_42 {dimension_numbers = #tpu.dot_dimension_numbers<[1], [0], [0], [1], [0, 0, 1, 1], [], []>} : vector<256x128xbf16>, vector<128x128xbf16>, vector<256x128xf32> -> vector<256x128xf32>
    %c0_43 = arith.constant 0 : index
    %c0_44 = arith.constant 0 : index
    %69 = vector.load %arg7[%c0_43, %c0_44] : memref<1x128xf32, #tpu.memory_space<vmem>>, vector<1x128xf32>
    %70 = vector.broadcast %69 : vector<1x128xf32> to vector<256x128xf32>
    %71 = arith.addf %68, %70 : vector<256x128xf32>
    %72 = arith.extf %1 : vector<256x128xbf16> to vector<256x128xf32>
    %73 = arith.addf %71, %72 : vector<256x128xf32>
    %cst_45 = arith.constant 0.000000e+00 : f32
    %74 = vector.broadcast %cst_45 : f32 to vector<256x128xf32>
    %75 = arith.maximumf %73, %74 : vector<256x128xf32>
    %76 = arith.truncf %75 : vector<256x128xf32> to vector<256x128xbf16>
    %c0_46 = arith.constant 0 : index
    %c0_47 = arith.constant 0 : index
    %c0_48 = arith.constant 0 : index
    %77 = vector.load %arg8[%c0_46, %c0_47, %c0_48] : memref<1x256x128xbf16, #tpu.memory_space<vmem>>, vector<1x256x128xbf16>
    %78 = vector.shape_cast %77 : vector<1x256x128xbf16> to vector<256x128xbf16>
    %79 = vector.shape_cast %76 : vector<256x128xbf16> to vector<1x256x128xbf16>
    tpu.vector_store %arg8[%c0_46, %c0_47, %c0_48], %79 {strides = array<i32>} : memref<1x256x128xbf16, #tpu.memory_space<vmem>>, vector<1x256x128xbf16>,
    return
  }
  func.func @transform_0(%arg0: i32) -> (i32, i32, i32) {
    %c0_i32 = arith.constant 0 : i32
    %c0_i32_0 = arith.constant 0 : i32
    %c0_i32_1 = arith.constant 0 : i32
    return %arg0, %c0_i32, %c0_i32_0 : i32, i32, i32
  }
  func.func @transform_1(%arg0: i32) -> (i32, i32) {
    %c0_i32 = arith.constant 0 : i32
    %c0_i32_0 = arith.constant 0 : i32
    %c0_i32_1 = arith.constant 0 : i32
    return %c0_i32, %c0_i32_0 : i32, i32
  }
  func.func @transform_2(%arg0: i32) -> (i32, i32) {
    %c0_i32 = arith.constant 0 : i32
    %c0_i32_0 = arith.constant 0 : i32
    %c0_i32_1 = arith.constant 0 : i32
    return %c0_i32, %c0_i32_0 : i32, i32
  }
  func.func @transform_3(%arg0: i32) -> (i32, i32, i32) {
    %c0_i32 = arith.constant 0 : i32
    %c0_i32_0 = arith.constant 0 : i32
    %c0_i32_1 = arith.constant 0 : i32
    %c0_i32_2 = arith.constant 0 : i32
    return %c0_i32, %c0_i32_0, %c0_i32_1 : i32, i32, i32
  }
  func.func @transform_4(%arg0: i32) -> (i32, i32) {
    %c0_i32 = arith.constant 0 : i32
    %c0_i32_0 = arith.constant 0 : i32
    %c0_i32_1 = arith.constant 0 : i32
    return %c0_i32, %c0_i32_0 : i32, i32
  }
  func.func @transform_5(%arg0: i32) -> (i32, i32) {
    %c0_i32 = arith.constant 0 : i32
    %c0_i32_0 = arith.constant 0 : i32
    %c0_i32_1 = arith.constant 0 : i32
    return %c0_i32, %c0_i32_0 : i32, i32
  }
  func.func @transform_6(%arg0: i32) -> (i32, i32) {
    %c0_i32 = arith.constant 0 : i32
    %c0_i32_0 = arith.constant 0 : i32
    %c0_i32_1 = arith.constant 0 : i32
    return %c0_i32, %c0_i32_0 : i32, i32
  }
  func.func @transform_7(%arg0: i32) -> (i32, i32, i32) {
    %c0_i32 = arith.constant 0 : i32
    %c0_i32_0 = arith.constant 0 : i32
    %c0_i32_1 = arith.constant 0 : i32
    return %arg0, %c0_i32, %c0_i32_0 : i32, i32, i32
  }
}

</mosaic_0001>

<llo_original>
// kernel: _lambda_.1
$region0: #{_lambda_.1}
  #allocation0 [shape = 'u32[]', space=smem, size = 0x4, offset = 0x4, fixed_abs, tag = 'smem constant byte address 0x4 - core index']
  #allocation1 [shape = 'u32[144,128]{1,0:T(1,128)}', space=vmem, size = 0x12000, scoped, tag = 'internal scratch']
  #allocation2 [shape = 'bf16[288,384]{1,0:T(16,128)(2,1)}', space=vmem, size = 0x36000, scoped, tag = 'scratch operand']
  %s0 = inlined_call_operand.vmem [shape: bf16[2,256,128], index: 0, kind: input, shape index: {}]
  %s1 = inlined_call_operand.vmem [shape: bf16[128,128], index: 1, kind: input, shape index: {}]
  %s2 = inlined_call_operand.vmem [shape: f32[1,128], index: 2, kind: input, shape index: {}]
  %s3 = inlined_call_operand.vmem [shape: bf16[3,384,128], index: 3, kind: input, shape index: {}]
  %s4 = inlined_call_operand.vmem [shape: f32[1,128], index: 4, kind: input, shape index: {}]
  %s5 = inlined_call_operand.vmem [shape: bf16[128,128], index: 5, kind: input, shape index: {}]
  %s6 = inlined_call_operand.vmem [shape: f32[1,128], index: 6, kind: input, shape index: {}]
  %s7 = inlined_call_operand.vmem [shape: bf16[2,256,128], index: 7, kind: output, shape index: {}]
  %s8 = sld [smem:[#allocation0]]
  $region61: #{_lambda_.1} parent=0
    _
  %s10 = ssub.s32 1, %s8
  %s11 = scalar_select 0, %s10, %s8
  loop: start=0, step=1, limit=4
  $region2: #{_lambda_.1} parent=0 // loop_pre_header
    _
  $region3: #{_lambda_.1} parent=0 // loop_header
    %s13 = sphi 0, %s17
    %p14 = scmp.ge.s32.totalorder %s13, 4
    %s23 = sphi 0, %s25
    %s26 = sphi 0, %s23
    %s27 = sphi 0, %s26
    %s43 = sphi 0, %s27
    %s47 = sphi 0, %s47
    %s49 = sphi 0, %s47
    %s50 = sphi 0, %s49
    %s64 = sphi 0, %s50
    %s68 = sphi 0, %s68
    %s70 = sphi 0, %s68
    %s71 = sphi 0, %s70
    %s85 = sphi 0, %s71
    %s89 = sphi 0, %s89
    %s91 = sphi 0, %s89
    %s92 = sphi 0, %s91
    %s106 = sphi 0, %s92
    %s110 = sphi 0, %s110
    %s112 = sphi 0, %s110
    %s113 = sphi 0, %s112
    %s127 = sphi 0, %s113
    %s131 = sphi 0, %s131
    %s133 = sphi 0, %s131
    %s134 = sphi 0, %s133
    %s148 = sphi 0, %s134
    %s152 = sphi 0, %s152
    %s154 = sphi 0, %s152
    %s155 = sphi 0, %s154
    %s169 = sphi 0, %s155
    %s175 = sphi 0, %s177
    %s178 = sphi 0, %s175
    %s179 = sphi 0, %s178
    %s195 = sphi 0, %s179
  $region4: #{_lambda_.1} parent=0 // loop_header_branch
    %16 = sbr.rel (%p14) target = $region8
  $region5: #{_lambda_.1} parent=0 // loop_body
    %s18 = ssub.s32 %s13, 1
    %s19 = ssub.s32 %s13, 2
    %s20 = sadd.s32 %s13, 1
    %s21 = ssub.s32 %s13, %s20
    %p22 = scmp.eq.s32.totalorder %s21, 0
    %s24 = sadd.s32 %s23, 1
    %s25 = scalar_select %p22, %s23, %s24
    %p28 = pneg %p22
    %p29 = scmp.eq.s32.totalorder %s13, 1
    %p30 = por %p28, %p29
    %p31 = scmp.ne.s32.totalorder %s23, %s26
    %p32 = scmp.eq.s32.totalorder %s13, 0
    %p33 = por %p31, %p32
    %p34 = scmp.ne.s32.totalorder %s23, %s26
    %p35 = scmp.eq.s32.totalorder %s18, 1
    %p36 = por %p34, %p35
    %p37 = scmp.ne.s32.totalorder %s26, %s27
    %p38 = scmp.eq.s32.totalorder %s18, 0
    %p39 = por %p37, %p38
    %p40 = scmp.ne.s32.totalorder %s26, %s27
    %p41 = scmp.eq.s32.totalorder %s19, 1
    %p42 = por %p40, %p41
    %p44 = scmp.ne.s32.totalorder %s27, %s43
    %p45 = scmp.eq.s32.totalorder %s19, 0
    %p46 = por %p44, %p45
    %s48 = sadd.s32 %s47, 1
    %p51 = scmp.eq.s32.totalorder %s13, 1
    %p52 = scmp.ne.s32.totalorder %s47, %s49
    %p53 = scmp.eq.s32.totalorder %s13, 0
    %p54 = por %p52, %p53
    %p55 = scmp.ne.s32.totalorder %s47, %s49
    %p56 = scmp.eq.s32.totalorder %s18, 1
    %p57 = por %p55, %p56
    %p58 = scmp.ne.s32.totalorder %s49, %s50
    %p59 = scmp.eq.s32.totalorder %s18, 0
    %p60 = por %p58, %p59
    %p61 = scmp.ne.s32.totalorder %s49, %s50
    %p62 = scmp.eq.s32.totalorder %s19, 1
    %p63 = por %p61, %p62
    %p65 = scmp.ne.s32.totalorder %s50, %s64
    %p66 = scmp.eq.s32.totalorder %s19, 0
    %p67 = por %p65, %p66
    %s69 = sadd.s32 %s68, 1
    %p72 = scmp.eq.s32.totalorder %s13, 1
    %p73 = scmp.ne.s32.totalorder %s68, %s70
    %p74 = scmp.eq.s32.totalorder %s13, 0
    %p75 = por %p73, %p74
    %p76 = scmp.ne.s32.totalorder %s68, %s70
    %p77 = scmp.eq.s32.totalorder %s18, 1
    %p78 = por %p76, %p77
    %p79 = scmp.ne.s32.totalorder %s70, %s71
    %p80 = scmp.eq.s32.totalorder %s18, 0
    %p81 = por %p79, %p80
    %p82 = scmp.ne.s32.totalorder %s70, %s71
    %p83 = scmp.eq.s32.totalorder %s19, 1
    %p84 = por %p82, %p83
    %p86 = scmp.ne.s32.totalorder %s71, %s85
    %p87 = scmp.eq.s32.totalorder %s19, 0
    %p88 = por %p86, %p87
    %s90 = sadd.s32 %s89, 1
    %p93 = scmp.eq.s32.totalorder %s13, 1
    %p94 = scmp.ne.s32.totalorder %s89, %s91
    %p95 = scmp.eq.s32.totalorder %s13, 0
    %p96 = por %p94, %p95
    %p97 = scmp.ne.s32.totalorder %s89, %s91
    %p98 = scmp.eq.s32.totalorder %s18, 1
    %p99 = por %p97, %p98
    %p100 = scmp.ne.s32.totalorder %s91, %s92
    %p101 = scmp.eq.s32.totalorder %s18, 0
    %p102 = por %p100, %p101
    %p103 = scmp.ne.s32.totalorder %s91, %s92
    %p104 = scmp.eq.s32.totalorder %s19, 1
    %p105 = por %p103, %p104
    %p107 = scmp.ne.s32.totalorder %s92, %s106
    %p108 = scmp.eq.s32.totalorder %s19, 0
    %p109 = por %p107, %p108
    %s111 = sadd.s32 %s110, 1
    %p114 = scmp.eq.s32.totalorder %s13, 1
    %p115 = scmp.ne.s32.totalorder %s110, %s112
    %p116 = scmp.eq.s32.totalorder %s13, 0
    %p117 = por %p115, %p116
    %p118 = scmp.ne.s32.totalorder %s110, %s112
    %p119 = scmp.eq.s32.totalorder %s18, 1
    %p120 = por %p118, %p119
    %p121 = scmp.ne.s32.totalorder %s112, %s113
    %p122 = scmp.eq.s32.totalorder %s18, 0
    %p123 = por %p121, %p122
    %p124 = scmp.ne.s32.totalorder %s112, %s113
    %p125 = scmp.eq.s32.totalorder %s19, 1
    %p126 = por %p124, %p125
    %p128 = scmp.ne.s32.totalorder %s113, %s127
    %p129 = scmp.eq.s32.totalorder %s19, 0
    %p130 = por %p128, %p129
    %s132 = sadd.s32 %s131, 1
    %p135 = scmp.eq.s32.totalorder %s13, 1
    %p136 = scmp.ne.s32.totalorder %s131, %s133
    %p137 = scmp.eq.s32.totalorder %s13, 0
    %p138 = por %p136, %p137
    %p139 = scmp.ne.s32.totalorder %s131, %s133
    %p140 = scmp.eq.s32.totalorder %s18, 1
    %p141 = por %p139, %p140
    %p142 = scmp.ne.s32.totalorder %s133, %s134
    %p143 = scmp.eq.s32.totalorder %s18, 0
    %p144 = por %p142, %p143
    %p145 = scmp.ne.s32.totalorder %s133, %s134
    %p146 = scmp.eq.s32.totalorder %s19, 1
    %p147 = por %p145, %p146
    %p149 = scmp.ne.s32.totalorder %s134, %s148
    %p150 = scmp.eq.s32.totalorder %s19, 0
    %p151 = por %p149, %p150
    %s153 = sadd.s32 %s152, 1
    %p156 = scmp.eq.s32.totalorder %s13, 1
    %p157 = scmp.ne.s32.totalorder %s152, %s154
    %p158 = scmp.eq.s32.totalorder %s13, 0
    %p159 = por %p157, %p158
    %p160 = scmp.ne.s32.totalorder %s152, %s154
    %p161 = scmp.eq.s32.totalorder %s18, 1
    %p162 = por %p160, %p161
    %p163 = scmp.ne.s32.totalorder %s154, %s155
    %p164 = scmp.eq.s32.totalorder %s18, 0
    %p165 = por %p163, %p164
    %p166 = scmp.ne.s32.totalorder %s154, %s155
    %p167 = scmp.eq.s32.totalorder %s19, 1
    %p168 = por %p166, %p167
    %p170 = scmp.ne.s32.totalorder %s155, %s169
    %p171 = scmp.eq.s32.totalorder %s19, 0
    %p172 = por %p170, %p171
    %s173 = ssub.s32 %s13, %s20
    %p174 = scmp.eq.s32.totalorder %s173, 0
    %s176 = sadd.s32 %s175, 1
    %s177 = scalar_select %p174, %s175, %s176
    %p180 = pneg %p174
    %p181 = scmp.eq.s32.totalorder %s13, 1
    %p182 = por %p180, %p181
    %p183 = scmp.ne.s32.totalorder %s175, %s178
    %p184 = scmp.eq.s32.totalorder %s13, 0
    %p185 = por %p183, %p184
    %p186 = scmp.ne.s32.totalorder %s175, %s178
    %p187 = scmp.eq.s32.totalorder %s18, 1
    %p188 = por %p186, %p187
    %p189 = scmp.ne.s32.totalorder %s178, %s179
    %p190 = scmp.eq.s32.totalorder %s18, 0
    %p191 = por %p189, %p190
    %p192 = scmp.ne.s32.totalorder %s178, %s179
    %p193 = scmp.eq.s32.totalorder %s19, 1
    %p194 = por %p192, %p193
    %p196 = scmp.ne.s32.totalorder %s179, %s195
    %p197 = scmp.eq.s32.totalorder %s19, 0
    %p198 = por %p196, %p197
    %p199 = scmp.le.s32.totalorder 1, %s13
    %p200 = scmp.lt.s32.totalorder %s13, 3
    %p201 = pnand %p199, %p200
    %p202 = pneg %p201
    // Predicated region
    $region9: #{_lambda_.1} parent=5 // pred_check
      _
    $region10: #{_lambda_.1} parent=5 // pred_check_branch
      %204 = sbr.rel (%p201) target = $region12
    $region11: #{_lambda_.1} parent=5 // pred_region
      %s205 = ssub.s32 %s13, 1
      // Predicated region
      $region13: #{_lambda_.1} parent=11 // pred_check
        %p206 = pneg %p60
      $region14: #{_lambda_.1} parent=11 // pred_check_branch
        %208 = sbr.rel (%p206) target = $region16
      $region15: #{_lambda_.1} parent=11 // pred_region
        _
      $region16: #{_lambda_.1} parent=11 // pred_fallthru
        _
      // Predicated region
      $region17: #{_lambda_.1} parent=11 // pred_check
        %p209 = pneg %p81
      $region18: #{_lambda_.1} parent=11 // pred_check_branch
        %211 = sbr.rel (%p209) target = $region20
      $region19: #{_lambda_.1} parent=11 // pred_region
        _
      $region20: #{_lambda_.1} parent=11 // pred_fallthru
        _
      // Predicated region
      $region21: #{_lambda_.1} parent=11 // pred_check
        %p212 = pneg %p102
      $region22: #{_lambda_.1} parent=11 // pred_check_branch
        %214 = sbr.rel (%p212) target = $region24
      $region23: #{_lambda_.1} parent=11 // pred_region
        _
      $region24: #{_lambda_.1} parent=11 // pred_fallthru
        _
      // Predicated region
      $region25: #{_lambda_.1} parent=11 // pred_check
        %p215 = pneg %p123
      $region26: #{_lambda_.1} parent=11 // pred_check_branch
        %217 = sbr.rel (%p215) target = $region28
      $region27: #{_lambda_.1} parent=11 // pred_region
        _
      $region28: #{_lambda_.1} parent=11 // pred_fallthru
        _
      // Predicated region
      $region29: #{_lambda_.1} parent=11 // pred_check
        %p218 = pneg %p144
      $region30: #{_lambda_.1} parent=11 // pred_check_branch
        %220 = sbr.rel (%p218) target = $region32
      $region31: #{_lambda_.1} parent=11 // pred_region
        _
      $region32: #{_lambda_.1} parent=11 // pred_fallthru
        _
      // Predicated region
      $region33: #{_lambda_.1} parent=11 // pred_check
        %p221 = pneg %p165
      $region34: #{_lambda_.1} parent=11 // pred_check_branch
        %223 = sbr.rel (%p221) target = $region36
      $region35: #{_lambda_.1} parent=11 // pred_region
        _
      $region36: #{_lambda_.1} parent=11 // pred_fallthru
        _
    $region12: #{_lambda_.1} parent=5 // pred_fallthru
      _
    %p224 = scmp.lt.s32.totalorder %s13, 2
    // Predicated region
    $region37: #{_lambda_.1} parent=5 // pred_check
      %p225 = pneg %p224
    $region38: #{_lambda_.1} parent=5 // pred_check_branch
      %227 = sbr.rel (%p225) target = $region40
    $region39: #{_lambda_.1} parent=5 // pred_region
      // Predicated region
      $region41: #{_lambda_.1} parent=39 // pred_check
        %p228 = pneg %p33
      $region42: #{_lambda_.1} parent=39 // pred_check_branch
        %230 = sbr.rel (%p228) target = $region44
      $region43: #{_lambda_.1} parent=39 // pred_region
        %p231 = scmp.lt.s32.totalorder %s13, 1
        %s232 = scalar_select %p231, %s13, 1
        %s233 = smul.addr %s232, 32
        %s234 = smul.addr %s233, 4
        %s235 = scalar_lea.vmem %s0, %s234
      $region44: #{_lambda_.1} parent=39 // pred_fallthru
        _
    $region40: #{_lambda_.1} parent=5 // pred_fallthru
      _
    %p236 = scmp.le.s32.totalorder 1, %s13
    %p237 = scmp.lt.s32.totalorder %s13, 3
    %p238 = pnand %p236, %p237
    %p239 = pneg %p238
    // Predicated region
    $region45: #{_lambda_.1} parent=5 // pred_check
      _
    $region46: #{_lambda_.1} parent=5 // pred_check_branch
      %241 = sbr.rel (%p238) target = $region48
    $region47: #{_lambda_.1} parent=5 // pred_region
      %s242 = ssub.s32 %s13, 1
      %p243 = scmp.lt.s32.totalorder %s18, 1
      %s244 = scalar_select %p243, %s18, 1
      %s245 = smul.addr %s244, 32
      %s246 = smul.addr %s245, 4
      %s247 = scalar_lea.vmem %s0, %s246
      %p248 = pneg %p39
      %p249 = pneg %p36
      %p250 = pneg %p60
      %p251 = pneg %p57
      %p252 = pneg %p81
      %p253 = pneg %p78
      %p254 = pneg %p102
      %p255 = pneg %p99
      %p256 = pneg %p123
      %p257 = pneg %p120
      %p258 = pneg %p144
      %p259 = pneg %p141
      %p260 = pneg %p165
      %p261 = pneg %p162
      %p262 = pneg %p191
      %p263 = pneg %p188
      %p264 = scmp.lt.s32.totalorder %s18, 1
      %s265 = scalar_select %p264, %s18, 1
      %s266 = smul.addr %s265, 32
      %s267 = smul.addr %s266, 4
      %s268 = scalar_lea.vmem %s7, %s267
      %p269 = scmp.lt.s32.totalorder %s18, 1
      %s270 = scalar_select %p269, %s18, 1
      %s271 = smul.addr %s270, 32
      %s272 = smul.addr %s271, 4
      %s273 = scalar_lea.vmem %s0, %s272
      %p274 = scmp.lt.s32.totalorder %s18, 1
      %s275 = scalar_select %p274, %s18, 1
      %s276 = smul.addr %s275, 32
      %s277 = smul.addr %s276, 4
      %s278 = scalar_lea.vmem %s7, %s277
      %v280 = vld [vmem:[%s273] sm:$0xf]
      %v281 = vld [vmem:[%s273 + $0x4] sm:$0xf]
      %v282 = vld [vmem:[%s273 + $0x8] sm:$0xf]
      %v283 = vld [vmem:[%s273 + $0xc] sm:$0xf]
      %v284 = vld [vmem:[%s273 + $0x10] sm:$0xf]
      %v285 = vld [vmem:[%s273 + $0x14] sm:$0xf]
      %v286 = vld [vmem:[%s273 + $0x18] sm:$0xf]
      %v287 = vld [vmem:[%s273 + $0x1c] sm:$0xf]
      %v288 = vld [vmem:[%s273 + $0x20] sm:$0xf]
      %v289 = vld [vmem:[%s273 + $0x24] sm:$0xf]
      %v290 = vld [vmem:[%s273 + $0x28] sm:$0xf]
      %v291 = vld [vmem:[%s273 + $0x2c] sm:$0xf]
      %v292 = vld [vmem:[%s273 + $0x30] sm:$0xf]
      %v293 = vld [vmem:[%s273 + $0x34] sm:$0xf]
      %v294 = vld [vmem:[%s273 + $0x38] sm:$0xf]
      %v295 = vld [vmem:[%s273 + $0x3c] sm:$0xf]
      %v296 = vld [vmem:[%s273 + $0x40] sm:$0xf]
      %v297 = vld [vmem:[%s273 + $0x44] sm:$0xf]
      %v298 = vld [vmem:[%s273 + $0x48] sm:$0xf]
      %v299 = vld [vmem:[%s273 + $0x4c] sm:$0xf]
      %v300 = vld [vmem:[%s273 + $0x50] sm:$0xf]
      %v301 = vld [vmem:[%s273 + $0x54] sm:$0xf]
      %v302 = vld [vmem:[%s273 + $0x58] sm:$0xf]
      %v303 = vld [vmem:[%s273 + $0x5c] sm:$0xf]
      %v304 = vld [vmem:[%s273 + $0x60] sm:$0xf]
      %v305 = vld [vmem:[%s273 + $0x64] sm:$0xf]
      %v306 = vld [vmem:[%s273 + $0x68] sm:$0xf]
      %v307 = vld [vmem:[%s273 + $0x6c] sm:$0xf]
      %v308 = vld [vmem:[%s273 + $0x70] sm:$0xf]
      %v309 = vld [vmem:[%s273 + $0x74] sm:$0xf]
      %v310 = vld [vmem:[%s273 + $0x78] sm:$0xf]
      %v311 = vld [vmem:[%s273 + $0x7c] sm:$0xf]
      %v312 = vld [vmem:[%s1] sm:$0xf]
      %v313 = vld [vmem:[%s1 + $0x4] sm:$0xf]
      %v314 = vld [vmem:[%s1 + $0x8] sm:$0xf]
      %v315 = vld [vmem:[%s1 + $0xc] sm:$0xf]
      %v316 = vld [vmem:[%s1 + $0x10] sm:$0xf]
      %v317 = vld [vmem:[%s1 + $0x14] sm:$0xf]
      %v318 = vld [vmem:[%s1 + $0x18] sm:$0xf]
      %v319 = vld [vmem:[%s1 + $0x1c] sm:$0xf]
      %v320 = vld [vmem:[%s1 + $0x20] sm:$0xf]
      %v321 = vld [vmem:[%s1 + $0x24] sm:$0xf]
      %v322 = vld [vmem:[%s1 + $0x28] sm:$0xf]
      %v323 = vld [vmem:[%s1 + $0x2c] sm:$0xf]
      %v324 = vld [vmem:[%s1 + $0x30] sm:$0xf]
      %v325 = vld [vmem:[%s1 + $0x34] sm:$0xf]
      %v326 = vld [vmem:[%s1 + $0x38] sm:$0xf]
      %v327 = vld [vmem:[%s1 + $0x3c] sm:$0xf]
      %v328 = vld [vmem:[%s2] sm:$0x1]
      %v330 = vlaneseq
      %v331 = vshrl.u32 %v330, 7
      %v332 = vsub.s32 0, %v331
      %v333 = vrot.slane %v328, %v332
      %v367 = vunpack.c.l.b16 %v280
      %v368 = vunpack.c.l.b16 %v281
      %v369 = vunpack.c.l.b16 %v282
      %v370 = vunpack.c.l.b16 %v283
      %v371 = vunpack.c.l.b16 %v284
      %v372 = vunpack.c.l.b16 %v285
      %v373 = vunpack.c.l.b16 %v286
      %v374 = vunpack.c.l.b16 %v287
      %v375 = vunpack.c.l.b16 %v288
      %v376 = vunpack.c.l.b16 %v289
      %v377 = vunpack.c.l.b16 %v290
      %v378 = vunpack.c.l.b16 %v291
      %v379 = vunpack.c.l.b16 %v292
      %v380 = vunpack.c.l.b16 %v293
      %v381 = vunpack.c.l.b16 %v294
      %v382 = vunpack.c.l.b16 %v295
      %v383 = vunpack.c.l.b16 %v296
      %v384 = vunpack.c.l.b16 %v297
      %v385 = vunpack.c.l.b16 %v298
      %v386 = vunpack.c.l.b16 %v299
      %v387 = vunpack.c.l.b16 %v300
      %v388 = vunpack.c.l.b16 %v301
      %v389 = vunpack.c.l.b16 %v302
      %v390 = vunpack.c.l.b16 %v303
      %v391 = vunpack.c.l.b16 %v304
      %v392 = vunpack.c.l.b16 %v305
      %v393 = vunpack.c.l.b16 %v306
      %v394 = vunpack.c.l.b16 %v307
      %v395 = vunpack.c.l.b16 %v308
      %v396 = vunpack.c.l.b16 %v309
      %v397 = vunpack.c.l.b16 %v310
      %v398 = vunpack.c.l.b16 %v311
      %v399 = vpack.c.b16 %v368, %v367
      %v400 = vpack.c.b16 %v370, %v369
      %v401 = vpack.c.b16 %v372, %v371
      %v402 = vpack.c.b16 %v374, %v373
      %v403 = vpack.c.b16 %v376, %v375
      %v404 = vpack.c.b16 %v378, %v377
      %v405 = vpack.c.b16 %v380, %v379
      %v406 = vpack.c.b16 %v382, %v381
      %v407 = vpack.c.b16 %v384, %v383
      %v408 = vpack.c.b16 %v386, %v385
      %v409 = vpack.c.b16 %v388, %v387
      %v410 = vpack.c.b16 %v390, %v389
      %v411 = vpack.c.b16 %v392, %v391
      %v412 = vpack.c.b16 %v394, %v393
      %v413 = vpack.c.b16 %v396, %v395
      %v414 = vpack.c.b16 %v398, %v397
      %v447 = vunpack.c.l.b16 %v312
      %v448 = vunpack.c.l.b16 %v313
      %v449 = vunpack.c.l.b16 %v314
      %v450 = vunpack.c.l.b16 %v315
      %v451 = vunpack.c.l.b16 %v316
      %v452 = vunpack.c.l.b16 %v317
      %v453 = vunpack.c.l.b16 %v318
      %v454 = vunpack.c.l.b16 %v319
      %v455 = vunpack.c.l.b16 %v320
      %v456 = vunpack.c.l.b16 %v321
      %v457 = vunpack.c.l.b16 %v322
      %v458 = vunpack.c.l.b16 %v323
      %v459 = vunpack.c.l.b16 %v324
      %v460 = vunpack.c.l.b16 %v325
      %v461 = vunpack.c.l.b16 %v326
      %v462 = vunpack.c.l.b16 %v327
      %v463 = vpack.c.b16 %v448, %v447
      %v464 = vpack.c.b16 %v450, %v449
      %v465 = vpack.c.b16 %v452, %v451
      %v466 = vpack.c.b16 %v454, %v453
      %v467 = vpack.c.b16 %v456, %v455
      %v468 = vpack.c.b16 %v458, %v457
      %v469 = vpack.c.b16 %v460, %v459
      %v470 = vpack.c.b16 %v462, %v461
      %479 = vmatprep.subr.bf16.mxu0 0
      %480 = vmatpush1.bf16.msra.mxu0 %v463
      %481 = vmatprep.subr.bf16.mxu0 0
      %482 = vmatpush1.bf16.msra.mxu0 %v464
      %483 = vmatprep.subr.bf16.mxu0 0
      %484 = vmatpush1.bf16.msra.mxu0 %v465
      %485 = vmatprep.subr.bf16.mxu0 0
      %486 = vmatpush1.bf16.msra.mxu0 %v466
      %487 = vmatprep.subr.bf16.mxu0 0
      %488 = vmatpush1.bf16.msra.mxu0 %v467
      %489 = vmatprep.subr.bf16.mxu0 0
      %490 = vmatpush1.bf16.msra.mxu0 %v468
      %491 = vmatprep.subr.bf16.mxu0 0
      %492 = vmatpush1.bf16.msra.mxu0 %v469
      %493 = vmatprep.subr.bf16.mxu0 0
      %494 = vmatpush1.bf16.msra.mxu0 %v470
      %495 = vmatprep.subr.bf16.mxu0 0
      %496 = vmatpush1.bf16.msra.mxu0 0
      %497 = vmatprep.subr.bf16.mxu0 0
      %498 = vmatpush1.bf16.msra.mxu0 0
      %499 = vmatprep.subr.bf16.mxu0 0
      %500 = vmatpush1.bf16.msra.mxu0 0
      %501 = vmatprep.subr.bf16.mxu0 0
      %502 = vmatpush1.bf16.msra.mxu0 0
      %503 = vmatprep.subr.bf16.mxu0 0
      %504 = vmatpush1.bf16.msra.mxu0 0
      %505 = vmatprep.subr.bf16.mxu0 0
      %506 = vmatpush1.bf16.msra.mxu0 0
      %507 = vmatprep.subr.bf16.mxu0 0
      %508 = vmatpush1.bf16.msra.mxu0 0
      %509 = vmatprep.subr.bf16.mxu0 0
      %510 = vmatpush1.bf16.msra.mxu0 0
      %511 = vmatprep.mubr.bf16.mxu0 0
      %512 = vmatmul.mubr.bf16.gmra.mrb[0].mxu0 %v399
      %v513 = vpop.f32.mrb[0].mxu0
      %v514 = vadd.f32 %v333, %v513
      %v515 = vpop.f32.mrb[0].mxu0
      %v516 = vpop.f32.mrb[0].mxu0
      %v517 = vadd.f32 %v333, %v516
      %v518 = vpop.f32.mrb[0].mxu0
      %519 = vmatprep.mubr.bf16.mxu0 0
      %520 = vmatmul.mubr.bf16.gmra.mrb[0].mxu0 %v400
      %v521 = vpop.f32.mrb[0].mxu0
      %v522 = vadd.f32 %v333, %v521
      %v523 = vpop.f32.mrb[0].mxu0
      %v524 = vpop.f32.mrb[0].mxu0
      %v525 = vadd.f32 %v333, %v524
      %v526 = vpop.f32.mrb[0].mxu0
      %527 = vmatprep.mubr.bf16.mxu0 0
      %528 = vmatmul.mubr.bf16.gmra.mrb[0].mxu0 %v401
      %v529 = vpop.f32.mrb[0].mxu0
      %v530 = vadd.f32 %v333, %v529
      %v531 = vpop.f32.mrb[0].mxu0
      %v532 = vpop.f32.mrb[0].mxu0
      %v533 = vadd.f32 %v333, %v532
      %v534 = vpop.f32.mrb[0].mxu0
      %535 = vmatprep.mubr.bf16.mxu0 0
      %536 = vmatmul.mubr.bf16.gmra.mrb[0].mxu0 %v402
      %v537 = vpop.f32.mrb[0].mxu0
      %v538 = vadd.f32 %v333, %v537
      %v539 = vpop.f32.mrb[0].mxu0
      %v540 = vpop.f32.mrb[0].mxu0
      %v541 = vadd.f32 %v333, %v540
      %v542 = vpop.f32.mrb[0].mxu0
      %543 = vmatprep.mubr.bf16.mxu0 0
      %544 = vmatmul.mubr.bf16.gmra.mrb[0].mxu0 %v403
      %v545 = vpop.f32.mrb[0].mxu0
      %v546 = vadd.f32 %v333, %v545
      %v547 = vpop.f32.mrb[0].mxu0
      %v548 = vpop.f32.mrb[0].mxu0
      %v549 = vadd.f32 %v333, %v548
      %v550 = vpop.f32.mrb[0].mxu0
      %551 = vmatprep.mubr.bf16.mxu0 0
      %552 = vmatmul.mubr.bf16.gmra.mrb[0].mxu0 %v404
      %v553 = vpop.f32.mrb[0].mxu0
      %v554 = vadd.f32 %v333, %v553
      %v555 = vpop.f32.mrb[0].mxu0
      %v556 = vpop.f32.mrb[0].mxu0
      %v557 = vadd.f32 %v333, %v556
      %v558 = vpop.f32.mrb[0].mxu0
      %559 = vmatprep.mubr.bf16.mxu0 0
      %560 = vmatmul.mubr.bf16.gmra.mrb[0].mxu0 %v405
      %v561 = vpop.f32.mrb[0].mxu0
      %v562 = vadd.f32 %v333, %v561
      %v563 = vpop.f32.mrb[0].mxu0
      %v564 = vpop.f32.mrb[0].mxu0
      %v565 = vadd.f32 %v333, %v564
      %v566 = vpop.f32.mrb[0].mxu0
      %567 = vmatprep.mubr.bf16.mxu0 0
      %568 = vmatmul.mubr.bf16.gmra.mrb[0].mxu0 %v406
      %v569 = vpop.f32.mrb[0].mxu0
      %v570 = vadd.f32 %v333, %v569
      %v571 = vpop.f32.mrb[0].mxu0
      %v572 = vpop.f32.mrb[0].mxu0
      %v573 = vadd.f32 %v333, %v572
      %v574 = vpop.f32.mrb[0].mxu0
      %575 = vmatprep.mubr.bf16.mxu0 0
      %576 = vmatmul.mubr.bf16.gmra.mrb[0].mxu0 %v407
      %v577 = vpop.f32.mrb[0].mxu0
      %v578 = vadd.f32 %v333, %v577
      %v579 = vpop.f32.mrb[0].mxu0
      %v580 = vpop.f32.mrb[0].mxu0
      %v581 = vadd.f32 %v333, %v580
      %v582 = vpop.f32.mrb[0].mxu0
      %583 = vmatprep.mubr.bf16.mxu0 0
      %584 = vmatmul.mubr.bf16.gmra.mrb[0].mxu0 %v408
      %v585 = vpop.f32.mrb[0].mxu0
      %v586 = vadd.f32 %v333, %v585
      %v587 = vpop.f32.mrb[0].mxu0
      %v588 = vpop.f32.mrb[0].mxu0
      %v589 = vadd.f32 %v333, %v588
      %v590 = vpop.f32.mrb[0].mxu0
      %591 = vmatprep.mubr.bf16.mxu0 0
      %592 = vmatmul.mubr.bf16.gmra.mrb[0].mxu0 %v409
      %v593 = vpop.f32.mrb[0].mxu0
      %v594 = vadd.f32 %v333, %v593
      %v595 = vpop.f32.mrb[0].mxu0
      %v596 = vpop.f32.mrb[0].mxu0
      %v597 = vadd.f32 %v333, %v596
      %v598 = vpop.f32.mrb[0].mxu0
      %599 = vmatprep.mubr.bf16.mxu0 0
      %600 = vmatmul.mubr.bf16.gmra.mrb[0].mxu0 %v410
      %v601 = vpop.f32.mrb[0].mxu0
      %v602 = vadd.f32 %v333, %v601
      %v603 = vpop.f32.mrb[0].mxu0
      %v604 = vpop.f32.mrb[0].mxu0
      %v605 = vadd.f32 %v333, %v604
      %v606 = vpop.f32.mrb[0].mxu0
      %607 = vmatprep.mubr.bf16.mxu0 0
      %608 = vmatmul.mubr.bf16.gmra.mrb[0].mxu0 %v411
      %v609 = vpop.f32.mrb[0].mxu0
      %v610 = vadd.f32 %v333, %v609
      %v611 = vpop.f32.mrb[0].mxu0
      %v612 = vpop.f32.mrb[0].mxu0
      %v613 = vadd.f32 %v333, %v612
      %v614 = vpop.f32.mrb[0].mxu0
      %615 = vmatprep.mubr.bf16.mxu0 0
      %616 = vmatmul.mubr.bf16.gmra.mrb[0].mxu0 %v412
      %v617 = vpop.f32.mrb[0].mxu0
      %v618 = vadd.f32 %v333, %v617
      %v619 = vpop.f32.mrb[0].mxu0
      %v620 = vpop.f32.mrb[0].mxu0
      %v621 = vadd.f32 %v333, %v620
      %v622 = vpop.f32.mrb[0].mxu0
      %623 = vmatprep.mubr.bf16.mxu0 0
      %624 = vmatmul.mubr.bf16.gmra.mrb[0].mxu0 %v413
      %v625 = vpop.f32.mrb[0].mxu0
      %v626 = vadd.f32 %v333, %v625
      %v627 = vpop.f32.mrb[0].mxu0
      %v628 = vpop.f32.mrb[0].mxu0
      %v629 = vadd.f32 %v333, %v628
      %v630 = vpop.f32.mrb[0].mxu0
      %631 = vmatprep.mubr.bf16.mxu0 0
      %632 = vmatmul.mubr.bf16.gmra.mrb[0].mxu0 %v414
      %v633 = vpop.f32.mrb[0].mxu0
      %v634 = vadd.f32 %v333, %v633
      %v635 = vpop.f32.mrb[0].mxu0
      %v636 = vpop.f32.mrb[0].mxu0
      %v637 = vadd.f32 %v333, %v636
      %v638 = vpop.f32.mrb[0].mxu0
      %639 = vdwg.mxu0
      %v640 = vmax.f32 %v514, 0.0
      %v641 = vmax.f32 %v517, 0.0
      %v642 = vmax.f32 %v522, 0.0
      %v643 = vmax.f32 %v525, 0.0
      %v644 = vmax.f32 %v530, 0.0
      %v645 = vmax.f32 %v533, 0.0
      %v646 = vmax.f32 %v538, 0.0
      %v647 = vmax.f32 %v541, 0.0
      %v648 = vmax.f32 %v546, 0.0
      %v649 = vmax.f32 %v549, 0.0
      %v650 = vmax.f32 %v554, 0.0
      %v651 = vmax.f32 %v557, 0.0
      %v652 = vmax.f32 %v562, 0.0
      %v653 = vmax.f32 %v565, 0.0
      %v654 = vmax.f32 %v570, 0.0
      %v655 = vmax.f32 %v573, 0.0
      %v656 = vmax.f32 %v578, 0.0
      %v657 = vmax.f32 %v581, 0.0
      %v658 = vmax.f32 %v586, 0.0
      %v659 = vmax.f32 %v589, 0.0
      %v660 = vmax.f32 %v594, 0.0
      %v661 = vmax.f32 %v597, 0.0
      %v662 = vmax.f32 %v602, 0.0
      %v663 = vmax.f32 %v605, 0.0
      %v664 = vmax.f32 %v610, 0.0
      %v665 = vmax.f32 %v613, 0.0
      %v666 = vmax.f32 %v618, 0.0
      %v667 = vmax.f32 %v621, 0.0
      %v668 = vmax.f32 %v626, 0.0
      %v669 = vmax.f32 %v629, 0.0
      %v670 = vmax.f32 %v634, 0.0
      %v671 = vmax.f32 %v637, 0.0
      %672 = vst [vmem:[#allocation2] sm:$0xff] 0
      %673 = vst [vmem:[#allocation2 + $0x8] sm:$0xff] 0
      %674 = vst [vmem:[#allocation2 + $0x10] sm:$0xff] 0
      %675 = vst [vmem:[#allocation2 + $0x198] sm:$0xff] 0
      %676 = vst [vmem:[#allocation2 + $0x1a0] sm:$0xff] 0
      %677 = vst [vmem:[#allocation2 + $0x1a8] sm:$0xff] 0
      %v678 = vlaneseq
      %v679 = vshrl.u32 %v678, 7
      %v680 = vadd.s32 %v679, 8
      %v681 = vadd.s32 %v679, 16
      %v682 = vadd.s32 %v679, 24
      %v683 = vadd.s32 %v679, 32
      %v684 = vadd.s32 %v679, 40
      %v685 = vadd.s32 %v679, 48
      %v686 = vadd.s32 %v679, 56
      %v687 = vadd.s32 %v679, 64
      %v688 = vadd.s32 %v679, 72
      %v689 = vadd.s32 %v679, 80
      %v690 = vadd.s32 %v679, 88
      %v691 = vadd.s32 %v679, 96
      %v692 = vadd.s32 %v679, 104
      %v693 = vadd.s32 %v679, 112
      %v694 = vadd.s32 %v679, 120
      %v695 = vadd.s32 %v679, 128
      %v696 = vadd.s32 %v679, 136
      %v697 = vadd.s32 %v679, 144
      %v698 = vadd.s32 %v679, 152
      %v699 = vadd.s32 %v679, 160
      %v700 = vadd.s32 %v679, 168
      %v701 = vadd.s32 %v679, 176
      %v702 = vadd.s32 %v679, 184
      %v703 = vadd.s32 %v679, 192
      %v704 = vadd.s32 %v679, 200
      %v705 = vadd.s32 %v679, 208
      %v706 = vadd.s32 %v679, 216
      %v707 = vadd.s32 %v679, 224
      %v708 = vadd.s32 %v679, 232
      %v709 = vadd.s32 %v679, 240
      %v710 = vadd.s32 %v679, 248
      %vm711 = vcmp.lt.s32.totalorder %v679, 0
      %v712 = vsub.s32 0, %v679
      %v713 = vsel %vm711, %v712, %v679
      %v714 = vshrl.u32 %v713, 4
      %v715 = vand.u32 %v713, 15
      %v716 = vsub.s32 0, %v715
      %v717 = vsel %vm711, %v716, %v715
      %vm718 = vcmp.lt.s32.totalorder %v680, 0
      %v719 = vsub.s32 0, %v680
      %v720 = vsel %vm718, %v719, %v680
      %v721 = vshrl.u32 %v720, 4
      %v722 = vand.u32 %v720, 15
      %v723 = vsub.s32 0, %v722
      %v724 = vsel %vm718, %v723, %v722
      %vm725 = vcmp.lt.s32.totalorder %v681, 0
      %v726 = vsub.s32 0, %v681
      %v727 = vsel %vm725, %v726, %v681
      %v728 = vshrl.u32 %v727, 4
      %v729 = vand.u32 %v727, 15
      %v730 = vsub.s32 0, %v729
      %v731 = vsel %vm725, %v730, %v729
      %vm732 = vcmp.lt.s32.totalorder %v682, 0
      %v733 = vsub.s32 0, %v682
      %v734 = vsel %vm732, %v733, %v682
      %v735 = vshrl.u32 %v734, 4
      %v736 = vand.u32 %v734, 15
      %v737 = vsub.s32 0, %v736
      %v738 = vsel %vm732, %v737, %v736
      %vm739 = vcmp.lt.s32.totalorder %v683, 0
      %v740 = vsub.s32 0, %v683
      %v741 = vsel %vm739, %v740, %v683
      %v742 = vshrl.u32 %v741, 4
      %v743 = vand.u32 %v741, 15
      %v744 = vsub.s32 0, %v743
      %v745 = vsel %vm739, %v744, %v743
      %vm746 = vcmp.lt.s32.totalorder %v684, 0
      %v747 = vsub.s32 0, %v684
      %v748 = vsel %vm746, %v747, %v684
      %v749 = vshrl.u32 %v748, 4
      %v750 = vand.u32 %v748, 15
      %v751 = vsub.s32 0, %v750
      %v752 = vsel %vm746, %v751, %v750
      %vm753 = vcmp.lt.s32.totalorder %v685, 0
      %v754 = vsub.s32 0, %v685
      %v755 = vsel %vm753, %v754, %v685
      %v756 = vshrl.u32 %v755, 4
      %v757 = vand.u32 %v755, 15
      %v758 = vsub.s32 0, %v757
      %v759 = vsel %vm753, %v758, %v757
      %vm760 = vcmp.lt.s32.totalorder %v686, 0
      %v761 = vsub.s32 0, %v686
      %v762 = vsel %vm760, %v761, %v686
      %v763 = vshrl.u32 %v762, 4
      %v764 = vand.u32 %v762, 15
      %v765 = vsub.s32 0, %v764
      %v766 = vsel %vm760, %v765, %v764
      %vm767 = vcmp.lt.s32.totalorder %v687, 0
      %v768 = vsub.s32 0, %v687
      %v769 = vsel %vm767, %v768, %v687
      %v770 = vshrl.u32 %v769, 4
      %v771 = vand.u32 %v769, 15
      %v772 = vsub.s32 0, %v771
      %v773 = vsel %vm767, %v772, %v771
      %vm774 = vcmp.lt.s32.totalorder %v688, 0
      %v775 = vsub.s32 0, %v688
      %v776 = vsel %vm774, %v775, %v688
      %v777 = vshrl.u32 %v776, 4
      %v778 = vand.u32 %v776, 15
      %v779 = vsub.s32 0, %v778
      %v780 = vsel %vm774, %v779, %v778
      %vm781 = vcmp.lt.s32.totalorder %v689, 0
      %v782 = vsub.s32 0, %v689
      %v783 = vsel %vm781, %v782, %v689
      %v784 = vshrl.u32 %v783, 4
      %v785 = vand.u32 %v783, 15
      %v786 = vsub.s32 0, %v785
      %v787 = vsel %vm781, %v786, %v785
      %vm788 = vcmp.lt.s32.totalorder %v690, 0
      %v789 = vsub.s32 0, %v690
      %v790 = vsel %vm788, %v789, %v690
      %v791 = vshrl.u32 %v790, 4
      %v792 = vand.u32 %v790, 15
      %v793 = vsub.s32 0, %v792
      %v794 = vsel %vm788, %v793, %v792
      %vm795 = vcmp.lt.s32.totalorder %v691, 0
      %v796 = vsub.s32 0, %v691
      %v797 = vsel %vm795, %v796, %v691
      %v798 = vshrl.u32 %v797, 4
      %v799 = vand.u32 %v797, 15
      %v800 = vsub.s32 0, %v799
      %v801 = vsel %vm795, %v800, %v799
      %vm802 = vcmp.lt.s32.totalorder %v692, 0
      %v803 = vsub.s32 0, %v692
      %v804 = vsel %vm802, %v803, %v692
      %v805 = vshrl.u32 %v804, 4
      %v806 = vand.u32 %v804, 15
      %v807 = vsub.s32 0, %v806
      %v808 = vsel %vm802, %v807, %v806
      %vm809 = vcmp.lt.s32.totalorder %v693, 0
      %v810 = vsub.s32 0, %v693
      %v811 = vsel %vm809, %v810, %v693
      %v812 = vshrl.u32 %v811, 4
      %v813 = vand.u32 %v811, 15
      %v814 = vsub.s32 0, %v813
      %v815 = vsel %vm809, %v814, %v813
      %vm816 = vcmp.lt.s32.totalorder %v694, 0
      %v817 = vsub.s32 0, %v694
      %v818 = vsel %vm816, %v817, %v694
      %v819 = vshrl.u32 %v818, 4
      %v820 = vand.u32 %v818, 15
      %v821 = vsub.s32 0, %v820
      %v822 = vsel %vm816, %v821, %v820
      %vm823 = vcmp.lt.s32.totalorder %v695, 0
      %v824 = vsub.s32 0, %v695
      %v825 = vsel %vm823, %v824, %v695
      %v826 = vshrl.u32 %v825, 4
      %v827 = vand.u32 %v825, 15
      %v828 = vsub.s32 0, %v827
      %v829 = vsel %vm823, %v828, %v827
      %vm830 = vcmp.lt.s32.totalorder %v696, 0
      %v831 = vsub.s32 0, %v696
      %v832 = vsel %vm830, %v831, %v696
      %v833 = vshrl.u32 %v832, 4
      %v834 = vand.u32 %v832, 15
      %v835 = vsub.s32 0, %v834
      %v836 = vsel %vm830, %v835, %v834
      %vm837 = vcmp.lt.s32.totalorder %v697, 0
      %v838 = vsub.s32 0, %v697
      %v839 = vsel %vm837, %v838, %v697
      %v840 = vshrl.u32 %v839, 4
      %v841 = vand.u32 %v839, 15
      %v842 = vsub.s32 0, %v841
      %v843 = vsel %vm837, %v842, %v841
      %vm844 = vcmp.lt.s32.totalorder %v698, 0
      %v845 = vsub.s32 0, %v698
      %v846 = vsel %vm844, %v845, %v698
      %v847 = vshrl.u32 %v846, 4
      %v848 = vand.u32 %v846, 15
      %v849 = vsub.s32 0, %v848
      %v850 = vsel %vm844, %v849, %v848
      %vm851 = vcmp.lt.s32.totalorder %v699, 0
      %v852 = vsub.s32 0, %v699
      %v853 = vsel %vm851, %v852, %v699
      %v854 = vshrl.u32 %v853, 4
      %v855 = vand.u32 %v853, 15
      %v856 = vsub.s32 0, %v855
      %v857 = vsel %vm851, %v856, %v855
      %vm858 = vcmp.lt.s32.totalorder %v700, 0
      %v859 = vsub.s32 0, %v700
      %v860 = vsel %vm858, %v859, %v700
      %v861 = vshrl.u32 %v860, 4
      %v862 = vand.u32 %v860, 15
      %v863 = vsub.s32 0, %v862
      %v864 = vsel %vm858, %v863, %v862
      %vm865 = vcmp.lt.s32.totalorder %v701, 0
      %v866 = vsub.s32 0, %v701
      %v867 = vsel %vm865, %v866, %v701
      %v868 = vshrl.u32 %v867, 4
      %v869 = vand.u32 %v867, 15
      %v870 = vsub.s32 0, %v869
      %v871 = vsel %vm865, %v870, %v869
      %vm872 = vcmp.lt.s32.totalorder %v702, 0
      %v873 = vsub.s32 0, %v702
      %v874 = vsel %vm872, %v873, %v702
      %v875 = vshrl.u32 %v874, 4
      %v876 = vand.u32 %v874, 15
      %v877 = vsub.s32 0, %v876
      %v878 = vsel %vm872, %v877, %v876
      %vm879 = vcmp.lt.s32.totalorder %v703, 0
      %v880 = vsub.s32 0, %v703
      %v881 = vsel %vm879, %v880, %v703
      %v882 = vshrl.u32 %v881, 4
      %v883 = vand.u32 %v881, 15
      %v884 = vsub.s32 0, %v883
      %v885 = vsel %vm879, %v884, %v883
      %vm886 = vcmp.lt.s32.totalorder %v704, 0
      %v887 = vsub.s32 0, %v704
      %v888 = vsel %vm886, %v887, %v704
      %v889 = vshrl.u32 %v888, 4
      %v890 = vand.u32 %v888, 15
      %v891 = vsub.s32 0, %v890
      %v892 = vsel %vm886, %v891, %v890
      %vm893 = vcmp.lt.s32.totalorder %v705, 0
      %v894 = vsub.s32 0, %v705
      %v895 = vsel %vm893, %v894, %v705
      %v896 = vshrl.u32 %v895, 4
      %v897 = vand.u32 %v895, 15
      %v898 = vsub.s32 0, %v897
      %v899 = vsel %vm893, %v898, %v897
      %vm900 = vcmp.lt.s32.totalorder %v706, 0
      %v901 = vsub.s32 0, %v706
      %v902 = vsel %vm900, %v901, %v706
      %v903 = vshrl.u32 %v902, 4
      %v904 = vand.u32 %v902, 15
      %v905 = vsub.s32 0, %v904
      %v906 = vsel %vm900, %v905, %v904
      %vm907 = vcmp.lt.s32.totalorder %v707, 0
      %v908 = vsub.s32 0, %v707
      %v909 = vsel %vm907, %v908, %v707
      %v910 = vshrl.u32 %v909, 4
      %v911 = vand.u32 %v909, 15
      %v912 = vsub.s32 0, %v911
      %v913 = vsel %vm907, %v912, %v911
      %vm914 = vcmp.lt.s32.totalorder %v708, 0
      %v915 = vsub.s32 0, %v708
      %v916 = vsel %vm914, %v915, %v708
      %v917 = vshrl.u32 %v916, 4
      %v918 = vand.u32 %v916, 15
      %v919 = vsub.s32 0, %v918
      %v920 = vsel %vm914, %v919, %v918
      %vm921 = vcmp.lt.s32.totalorder %v709, 0
      %v922 = vsub.s32 0, %v709
      %v923 = vsel %vm921, %v922, %v709
      %v924 = vshrl.u32 %v923, 4
      %v925 = vand.u32 %v923, 15
      %v926 = vsub.s32 0, %v925
      %v927 = vsel %vm921, %v926, %v925
      %vm928 = vcmp.lt.s32.totalorder %v710, 0
      %v929 = vsub.s32 0, %v710
      %v930 = vsel %vm928, %v929, %v710
      %v931 = vshrl.u32 %v930, 4
      %v932 = vand.u32 %v930, 15
      %v933 = vsub.s32 0, %v932
      %v934 = vsel %vm928, %v933, %v932
      %vm935 = vcmp.ne.s32.totalorder %v717, 0
      %vm936 = vcmp.ne.s32.totalorder %v724, 0
      %vm937 = vcmp.ne.s32.totalorder %v731, 0
      %vm938 = vcmp.ne.s32.totalorder %v738, 0
      %vm939 = vcmp.ne.s32.totalorder %v745, 0
      %vm940 = vcmp.ne.s32.totalorder %v752, 0
      %vm941 = vcmp.ne.s32.totalorder %v759, 0
      %vm942 = vcmp.ne.s32.totalorder %v766, 0
      %vm943 = vcmp.ne.s32.totalorder %v773, 0
      %vm944 = vcmp.ne.s32.totalorder %v780, 0
      %vm945 = vcmp.ne.s32.totalorder %v787, 0
      %vm946 = vcmp.ne.s32.totalorder %v794, 0
      %vm947 = vcmp.ne.s32.totalorder %v801, 0
      %vm948 = vcmp.ne.s32.totalorder %v808, 0
      %vm949 = vcmp.ne.s32.totalorder %v815, 0
      %vm950 = vcmp.ne.s32.totalorder %v822, 0
      %vm951 = vcmp.ne.s32.totalorder %v829, 0
      %vm952 = vcmp.ne.s32.totalorder %v836, 0
      %vm953 = vcmp.ne.s32.totalorder %v843, 0
      %vm954 = vcmp.ne.s32.totalorder %v850, 0
      %vm955 = vcmp.ne.s32.totalorder %v857, 0
      %vm956 = vcmp.ne.s32.totalorder %v864, 0
      %vm957 = vcmp.ne.s32.totalorder %v871, 0
      %vm958 = vcmp.ne.s32.totalorder %v878, 0
      %vm959 = vcmp.ne.s32.totalorder %v885, 0
      %vm960 = vcmp.ne.s32.totalorder %v892, 0
      %vm961 = vcmp.ne.s32.totalorder %v899, 0
      %vm962 = vcmp.ne.s32.totalorder %v906, 0
      %vm963 = vcmp.ne.s32.totalorder %v913, 0
      %vm964 = vcmp.ne.s32.totalorder %v920, 0
      %vm965 = vcmp.ne.s32.totalorder %v927, 0
      %vm966 = vcmp.ne.s32.totalorder %v934, 0
      %vm967 = vcmp.lt.s32.totalorder %v717, 0
      %vm968 = vcmp.lt.s32.totalorder %v724, 0
      %vm969 = vcmp.lt.s32.totalorder %v731, 0
      %vm970 = vcmp.lt.s32.totalorder %v738, 0
      %vm971 = vcmp.lt.s32.totalorder %v745, 0
      %vm972 = vcmp.lt.s32.totalorder %v752, 0
      %vm973 = vcmp.lt.s32.totalorder %v759, 0
      %vm974 = vcmp.lt.s32.totalorder %v766, 0
      %vm975 = vcmp.lt.s32.totalorder %v773, 0
      %vm976 = vcmp.lt.s32.totalorder %v780, 0
      %vm977 = vcmp.lt.s32.totalorder %v787, 0
      %vm978 = vcmp.lt.s32.totalorder %v794, 0
      %vm979 = vcmp.lt.s32.totalorder %v801, 0
      %vm980 = vcmp.lt.s32.totalorder %v808, 0
      %vm981 = vcmp.lt.s32.totalorder %v815, 0
      %vm982 = vcmp.lt.s32.totalorder %v822, 0
      %vm983 = vcmp.lt.s32.totalorder %v829, 0
      %vm984 = vcmp.lt.s32.totalorder %v836, 0
      %vm985 = vcmp.lt.s32.totalorder %v843, 0
      %vm986 = vcmp.lt.s32.totalorder %v850, 0
      %vm987 = vcmp.lt.s32.totalorder %v857, 0
      %vm988 = vcmp.lt.s32.totalorder %v864, 0
      %vm989 = vcmp.lt.s32.totalorder %v871, 0
      %vm990 = vcmp.lt.s32.totalorder %v878, 0
      %vm991 = vcmp.lt.s32.totalorder %v885, 0
      %vm992 = vcmp.lt.s32.totalorder %v892, 0
      %vm993 = vcmp.lt.s32.totalorder %v899, 0
      %vm994 = vcmp.lt.s32.totalorder %v906, 0
      %vm995 = vcmp.lt.s32.totalorder %v913, 0
      %vm996 = vcmp.lt.s32.totalorder %v920, 0
      %vm997 = vcmp.lt.s32.totalorder %v927, 0
      %vm998 = vcmp.lt.s32.totalorder %v934, 0
      %vm999 = vmand %vm967, %vm935
      %vm1000 = vmand %vm968, %vm936
      %vm1001 = vmand %vm969, %vm937
      %vm1002 = vmand %vm970, %vm938
      %vm1003 = vmand %vm971, %vm939
      %vm1004 = vmand %vm972, %vm940
      %vm1005 = vmand %vm973, %vm941
      %vm1006 = vmand %vm974, %vm942
      %vm1007 = vmand %vm975, %vm943
      %vm1008 = vmand %vm976, %vm944
      %vm1009 = vmand %vm977, %vm945
      %vm1010 = vmand %vm978, %vm946
      %vm1011 = vmand %vm979, %vm947
      %vm1012 = vmand %vm980, %vm948
      %vm1013 = vmand %vm981, %vm949
      %vm1014 = vmand %vm982, %vm950
      %vm1015 = vmand %vm983, %vm951
      %vm1016 = vmand %vm984, %vm952
      %vm1017 = vmand %vm985, %vm953
      %vm1018 = vmand %vm986, %vm954
      %vm1019 = vmand %vm987, %vm955
      %vm1020 = vmand %vm988, %vm956
      %vm1021 = vmand %vm989, %vm957
      %vm1022 = vmand %vm990, %vm958
      %vm1023 = vmand %vm991, %vm959
      %vm1024 = vmand %vm992, %vm960
      %vm1025 = vmand %vm993, %vm961
      %vm1026 = vmand %vm994, %vm962
      %vm1027 = vmand %vm995, %vm963
      %vm1028 = vmand %vm996, %vm964
      %vm1029 = vmand %vm997, %vm965
      %vm1030 = vmand %vm998, %vm966
      %v1031 = vadd.s32 %v717, 16
      %v1032 = vadd.s32 %v724, 16
      %v1033 = vadd.s32 %v731, 16
      %v1034 = vadd.s32 %v738, 16
      %v1035 = vadd.s32 %v745, 16
      %v1036 = vadd.s32 %v752, 16
      %v1037 = vadd.s32 %v759, 16
      %v1038 = vadd.s32 %v766, 16
      %v1039 = vadd.s32 %v773, 16
      %v1040 = vadd.s32 %v780, 16
      %v1041 = vadd.s32 %v787, 16
      %v1042 = vadd.s32 %v794, 16
      %v1043 = vadd.s32 %v801, 16
      %v1044 = vadd.s32 %v808, 16
      %v1045 = vadd.s32 %v815, 16
      %v1046 = vadd.s32 %v822, 16
      %v1047 = vadd.s32 %v829, 16
      %v1048 = vadd.s32 %v836, 16
      %v1049 = vadd.s32 %v843, 16
      %v1050 = vadd.s32 %v850, 16
      %v1051 = vadd.s32 %v857, 16
      %v1052 = vadd.s32 %v864, 16
      %v1053 = vadd.s32 %v871, 16
      %v1054 = vadd.s32 %v878, 16
      %v1055 = vadd.s32 %v885, 16
      %v1056 = vadd.s32 %v892, 16
      %v1057 = vadd.s32 %v899, 16
      %v1058 = vadd.s32 %v906, 16
      %v1059 = vadd.s32 %v913, 16
      %v1060 = vadd.s32 %v920, 16
      %v1061 = vadd.s32 %v927, 16
      %v1062 = vadd.s32 %v934, 16
      %v1063 = vsel %vm999, %v1031, %v717
      %v1064 = vsel %vm1000, %v1032, %v724
      %v1065 = vsel %vm1001, %v1033, %v731
      %v1066 = vsel %vm1002, %v1034, %v738
      %v1067 = vsel %vm1003, %v1035, %v745
      %v1068 = vsel %vm1004, %v1036, %v752
      %v1069 = vsel %vm1005, %v1037, %v759
      %v1070 = vsel %vm1006, %v1038, %v766
      %v1071 = vsel %vm1007, %v1039, %v773
      %v1072 = vsel %vm1008, %v1040, %v780
      %v1073 = vsel %vm1009, %v1041, %v787
      %v1074 = vsel %vm1010, %v1042, %v794
      %v1075 = vsel %vm1011, %v1043, %v801
      %v1076 = vsel %vm1012, %v1044, %v808
      %v1077 = vsel %vm1013, %v1045, %v815
      %v1078 = vsel %vm1014, %v1046, %v822
      %v1079 = vsel %vm1015, %v1047, %v829
      %v1080 = vsel %vm1016, %v1048, %v836
      %v1081 = vsel %vm1017, %v1049, %v843
      %v1082 = vsel %vm1018, %v1050, %v850
      %v1083 = vsel %vm1019, %v1051, %v857
      %v1084 = vsel %vm1020, %v1052, %v864
      %v1085 = vsel %vm1021, %v1053, %v871
      %v1086 = vsel %vm1022, %v1054, %v878
      %v1087 = vsel %vm1023, %v1055, %v885
      %v1088 = vsel %vm1024, %v1056, %v892
      %v1089 = vsel %vm1025, %v1057, %v899
      %v1090 = vsel %vm1026, %v1058, %v906
      %v1091 = vsel %vm1027, %v1059, %v913
      %v1092 = vsel %vm1028, %v1060, %v920
      %v1093 = vsel %vm1029, %v1061, %v927
      %v1094 = vsel %vm1030, %v1062, %v934
      %vm1095 = vcmp.gt.s32.totalorder %v1063, 0
      %vm1096 = vcmp.gt.s32.totalorder %v1064, 0
      %vm1097 = vcmp.gt.s32.totalorder %v1065, 0
      %vm1098 = vcmp.gt.s32.totalorder %v1066, 0
      %vm1099 = vcmp.gt.s32.totalorder %v1067, 0
      %vm1100 = vcmp.gt.s32.totalorder %v1068, 0
      %vm1101 = vcmp.gt.s32.totalorder %v1069, 0
      %vm1102 = vcmp.gt.s32.totalorder %v1070, 0
      %vm1103 = vcmp.gt.s32.totalorder %v1071, 0
      %vm1104 = vcmp.gt.s32.totalorder %v1072, 0
      %vm1105 = vcmp.gt.s32.totalorder %v1073, 0
      %vm1106 = vcmp.gt.s32.totalorder %v1074, 0
      %vm1107 = vcmp.gt.s32.totalorder %v1075, 0
      %vm1108 = vcmp.gt.s32.totalorder %v1076, 0
      %vm1109 = vcmp.gt.s32.totalorder %v1077, 0
      %vm1110 = vcmp.gt.s32.totalorder %v1078, 0
      %vm1111 = vcmp.gt.s32.totalorder %v1079, 0
      %vm1112 = vcmp.gt.s32.totalorder %v1080, 0
      %vm1113 = vcmp.gt.s32.totalorder %v1081, 0
      %vm1114 = vcmp.gt.s32.totalorder %v1082, 0
      %vm1115 = vcmp.gt.s32.totalorder %v1083, 0
      %vm1116 = vcmp.gt.s32.totalorder %v1084, 0
      %vm1117 = vcmp.gt.s32.totalorder %v1085, 0
      %vm1118 = vcmp.gt.s32.totalorder %v1086, 0
      %vm1119 = vcmp.gt.s32.totalorder %v1087, 0
      %vm1120 = vcmp.gt.s32.totalorder %v1088, 0
      %vm1121 = vcmp.gt.s32.totalorder %v1089, 0
      %vm1122 = vcmp.gt.s32.totalorder %v1090, 0
      %vm1123 = vcmp.gt.s32.totalorder %v1091, 0
      %vm1124 = vcmp.gt.s32.totalorder %v1092, 0
      %vm1125 = vcmp.gt.s32.totalorder %v1093, 0
      %vm1126 = vcmp.gt.s32.totalorder %v1094, 0
      %v1127 = vrot.slane %v640, 7
      %v1128 = vrot.slane %v641, 7
      %v1129 = vrot.slane %v642, 7
      %v1130 = vrot.slane %v643, 7
      %v1131 = vrot.slane %v644, 7
      %v1132 = vrot.slane %v645, 7
      %v1133 = vrot.slane %v646, 7
      %v1134 = vrot.slane %v647, 7
      %v1135 = vrot.slane %v648, 7
      %v1136 = vrot.slane %v649, 7
      %v1137 = vrot.slane %v650, 7
      %v1138 = vrot.slane %v651, 7
      %v1139 = vrot.slane %v652, 7
      %v1140 = vrot.slane %v653, 7
      %v1141 = vrot.slane %v654, 7
      %v1142 = vrot.slane %v655, 7
      %v1143 = vrot.slane %v656, 7
      %v1144 = vrot.slane %v657, 7
      %v1145 = vrot.slane %v658, 7
      %v1146 = vrot.slane %v659, 7
      %v1147 = vrot.slane %v660, 7
      %v1148 = vrot.slane %v661, 7
      %v1149 = vrot.slane %v662, 7
      %v1150 = vrot.slane %v663, 7
      %v1151 = vrot.slane %v664, 7
      %v1152 = vrot.slane %v665, 7
      %v1153 = vrot.slane %v666, 7
      %v1154 = vrot.slane %v667, 7
      %v1155 = vrot.slane %v668, 7
      %v1156 = vrot.slane %v669, 7
      %v1157 = vrot.slane %v670, 7
      %v1158 = vrot.slane %v671, 7
      %vm1159 = vcmp.lt.s32.totalorder %v679, 1
      %v1160 = vsel %vm1159, %v1157, %v1158
      %v1161 = vsel %vm1159, %v1156, %v1157
      %v1162 = vsel %vm1159, %v1155, %v1156
      %v1163 = vsel %vm1159, %v1154, %v1155
      %v1164 = vsel %vm1159, %v1153, %v1154
      %v1165 = vsel %vm1159, %v1152, %v1153
      %v1166 = vsel %vm1159, %v1151, %v1152
      %v1167 = vsel %vm1159, %v1150, %v1151
      %v1168 = vsel %vm1159, %v1149, %v1150
      %v1169 = vsel %vm1159, %v1148, %v1149
      %v1170 = vsel %vm1159, %v1147, %v1148
      %v1171 = vsel %vm1159, %v1146, %v1147
      %v1172 = vsel %vm1159, %v1145, %v1146
      %v1173 = vsel %vm1159, %v1144, %v1145
      %v1174 = vsel %vm1159, %v1143, %v1144
      %v1175 = vsel %vm1159, %v1142, %v1143
      %v1176 = vsel %vm1159, %v1141, %v1142
      %v1177 = vsel %vm1159, %v1140, %v1141
      %v1178 = vsel %vm1159, %v1139, %v1140
      %v1179 = vsel %vm1159, %v1138, %v1139
      %v1180 = vsel %vm1159, %v1137, %v1138
      %v1181 = vsel %vm1159, %v1136, %v1137
      %v1182 = vsel %vm1159, %v1135, %v1136
      %v1183 = vsel %vm1159, %v1134, %v1135
      %v1184 = vsel %vm1159, %v1133, %v1134
      %v1185 = vsel %vm1159, %v1132, %v1133
      %v1186 = vsel %vm1159, %v1131, %v1132
      %v1187 = vsel %vm1159, %v1130, %v1131
      %v1188 = vsel %vm1159, %v1129, %v1130
      %v1189 = vsel %vm1159, %v1128, %v1129
      %v1190 = vsel %vm1159, %v1127, %v1128
      %v1191 = vsel %vm1159, %v1158, %v1127
      %v1192 = vsel %vm1095, %v1191, 0.0
      %v1193 = vsel %vm1096, %v1190, 0.0
      %v1194 = vsel %vm1097, %v1189, 0.0
      %v1195 = vsel %vm1098, %v1188, 0.0
      %v1196 = vsel %vm1099, %v1187, 0.0
      %v1197 = vsel %vm1100, %v1186, 0.0
      %v1198 = vsel %vm1101, %v1185, 0.0
      %v1199 = vsel %vm1102, %v1184, 0.0
      %v1200 = vsel %vm1103, %v1183, 0.0
      %v1201 = vsel %vm1104, %v1182, 0.0
      %v1202 = vsel %vm1105, %v1181, 0.0
      %v1203 = vsel %vm1106, %v1180, 0.0
      %v1204 = vsel %vm1107, %v1179, 0.0
      %v1205 = vsel %vm1108, %v1178, 0.0
      %v1206 = vsel %vm1109, %v1177, 0.0
      %v1207 = vsel %vm1110, %v1176, 0.0
      %v1208 = vsel %vm1111, %v1175, 0.0
      %v1209 = vsel %vm1112, %v1174, 0.0
      %v1210 = vsel %vm1113, %v1173, 0.0
      %v1211 = vsel %vm1114, %v1172, 0.0
      %v1212 = vsel %vm1115, %v1171, 0.0
      %v1213 = vsel %vm1116, %v1170, 0.0
      %v1214 = vsel %vm1117, %v1169, 0.0
      %v1215 = vsel %vm1118, %v1168, 0.0
      %v1216 = vsel %vm1119, %v1167, 0.0
      %v1217 = vsel %vm1120, %v1166, 0.0
      %v1218 = vsel %vm1121, %v1165, 0.0
      %v1219 = vsel %vm1122, %v1164, 0.0
      %v1220 = vsel %vm1123, %v1163, 0.0
      %v1221 = vsel %vm1124, %v1162, 0.0
      %v1222 = vsel %vm1125, %v1161, 0.0
      %v1223 = vsel %vm1126, %v1160, 0.0
      %vm1224 = vcmp.lt.s32.totalorder %v1063, 15
      %vm1225 = vcmp.lt.s32.totalorder %v1064, 15
      %vm1226 = vcmp.lt.s32.totalorder %v1065, 15
      %vm1227 = vcmp.lt.s32.totalorder %v1066, 15
      %vm1228 = vcmp.lt.s32.totalorder %v1067, 15
      %vm1229 = vcmp.lt.s32.totalorder %v1068, 15
      %vm1230 = vcmp.lt.s32.totalorder %v1069, 15
      %vm1231 = vcmp.lt.s32.totalorder %v1070, 15
      %vm1232 = vcmp.lt.s32.totalorder %v1071, 15
      %vm1233 = vcmp.lt.s32.totalorder %v1072, 15
      %vm1234 = vcmp.lt.s32.totalorder %v1073, 15
      %vm1235 = vcmp.lt.s32.totalorder %v1074, 15
      %vm1236 = vcmp.lt.s32.totalorder %v1075, 15
      %vm1237 = vcmp.lt.s32.totalorder %v1076, 15
      %vm1238 = vcmp.lt.s32.totalorder %v1077, 15
      %vm1239 = vcmp.lt.s32.totalorder %v1078, 15
      %vm1240 = vcmp.lt.s32.totalorder %v1079, 15
      %vm1241 = vcmp.lt.s32.totalorder %v1080, 15
      %vm1242 = vcmp.lt.s32.totalorder %v1081, 15
      %vm1243 = vcmp.lt.s32.totalorder %v1082, 15
      %vm1244 = vcmp.lt.s32.totalorder %v1083, 15
      %vm1245 = vcmp.lt.s32.totalorder %v1084, 15
      %vm1246 = vcmp.lt.s32.totalorder %v1085, 15
      %vm1247 = vcmp.lt.s32.totalorder %v1086, 15
      %vm1248 = vcmp.lt.s32.totalorder %v1087, 15
      %vm1249 = vcmp.lt.s32.totalorder %v1088, 15
      %vm1250 = vcmp.lt.s32.totalorder %v1089, 15
      %vm1251 = vcmp.lt.s32.totalorder %v1090, 15
      %vm1252 = vcmp.lt.s32.totalorder %v1091, 15
      %vm1253 = vcmp.lt.s32.totalorder %v1092, 15
      %vm1254 = vcmp.lt.s32.totalorder %v1093, 15
      %vm1255 = vcmp.lt.s32.totalorder %v1094, 15
      %v1256 = vrot.slane %v640, 1
      %v1257 = vrot.slane %v641, 1
      %v1258 = vrot.slane %v642, 1
      %v1259 = vrot.slane %v643, 1
      %v1260 = vrot.slane %v644, 1
      %v1261 = vrot.slane %v645, 1
      %v1262 = vrot.slane %v646, 1
      %v1263 = vrot.slane %v647, 1
      %v1264 = vrot.slane %v648, 1
      %v1265 = vrot.slane %v649, 1
      %v1266 = vrot.slane %v650, 1
      %v1267 = vrot.slane %v651, 1
      %v1268 = vrot.slane %v652, 1
      %v1269 = vrot.slane %v653, 1
      %v1270 = vrot.slane %v654, 1
      %v1271 = vrot.slane %v655, 1
      %v1272 = vrot.slane %v656, 1
      %v1273 = vrot.slane %v657, 1
      %v1274 = vrot.slane %v658, 1
      %v1275 = vrot.slane %v659, 1
      %v1276 = vrot.slane %v660, 1
      %v1277 = vrot.slane %v661, 1
      %v1278 = vrot.slane %v662, 1
      %v1279 = vrot.slane %v663, 1
      %v1280 = vrot.slane %v664, 1
      %v1281 = vrot.slane %v665, 1
      %v1282 = vrot.slane %v666, 1
      %v1283 = vrot.slane %v667, 1
      %v1284 = vrot.slane %v668, 1
      %v1285 = vrot.slane %v669, 1
      %v1286 = vrot.slane %v670, 1
      %v1287 = vrot.slane %v671, 1
      %vm1288 = vcmp.lt.s32.totalorder %v679, 7
      %v1289 = vsel %vm1288, %v1286, %v1287
      %v1290 = vsel %vm1288, %v1285, %v1286
      %v1291 = vsel %vm1288, %v1284, %v1285
      %v1292 = vsel %vm1288, %v1283, %v1284
      %v1293 = vsel %vm1288, %v1282, %v1283
      %v1294 = vsel %vm1288, %v1281, %v1282
      %v1295 = vsel %vm1288, %v1280, %v1281
      %v1296 = vsel %vm1288, %v1279, %v1280
      %v1297 = vsel %vm1288, %v1278, %v1279
      %v1298 = vsel %vm1288, %v1277, %v1278
      %v1299 = vsel %vm1288, %v1276, %v1277
      %v1300 = vsel %vm1288, %v1275, %v1276
      %v1301 = vsel %vm1288, %v1274, %v1275
      %v1302 = vsel %vm1288, %v1273, %v1274
      %v1303 = vsel %vm1288, %v1272, %v1273
      %v1304 = vsel %vm1288, %v1271, %v1272
      %v1305 = vsel %vm1288, %v1270, %v1271
      %v1306 = vsel %vm1288, %v1269, %v1270
      %v1307 = vsel %vm1288, %v1268, %v1269
      %v1308 = vsel %vm1288, %v1267, %v1268
      %v1309 = vsel %vm1288, %v1266, %v1267
      %v1310 = vsel %vm1288, %v1265, %v1266
      %v1311 = vsel %vm1288, %v1264, %v1265
      %v1312 = vsel %vm1288, %v1263, %v1264
      %v1313 = vsel %vm1288, %v1262, %v1263
      %v1314 = vsel %vm1288, %v1261, %v1262
      %v1315 = vsel %vm1288, %v1260, %v1261
      %v1316 = vsel %vm1288, %v1259, %v1260
      %v1317 = vsel %vm1288, %v1258, %v1259
      %v1318 = vsel %vm1288, %v1257, %v1258
      %v1319 = vsel %vm1288, %v1256, %v1257
      %v1320 = vsel %vm1288, %v1287, %v1256
      %v1321 = vsel %vm1224, %v1319, 0.0
      %v1322 = vsel %vm1225, %v1318, 0.0
      %v1323 = vsel %vm1226, %v1317, 0.0
      %v1324 = vsel %vm1227, %v1316, 0.0
      %v1325 = vsel %vm1228, %v1315, 0.0
      %v1326 = vsel %vm1229, %v1314, 0.0
      %v1327 = vsel %vm1230, %v1313, 0.0
      %v1328 = vsel %vm1231, %v1312, 0.0
      %v1329 = vsel %vm1232, %v1311, 0.0
      %v1330 = vsel %vm1233, %v1310, 0.0
      %v1331 = vsel %vm1234, %v1309, 0.0
      %v1332 = vsel %vm1235, %v1308, 0.0
      %v1333 = vsel %vm1236, %v1307, 0.0
      %v1334 = vsel %vm1237, %v1306, 0.0
      %v1335 = vsel %vm1238, %v1305, 0.0
      %v1336 = vsel %vm1239, %v1304, 0.0
      %v1337 = vsel %vm1240, %v1303, 0.0
      %v1338 = vsel %vm1241, %v1302, 0.0
      %v1339 = vsel %vm1242, %v1301, 0.0
      %v1340 = vsel %vm1243, %v1300, 0.0
      %v1341 = vsel %vm1244, %v1299, 0.0
      %v1342 = vsel %vm1245, %v1298, 0.0
      %v1343 = vsel %vm1246, %v1297, 0.0
      %v1344 = vsel %vm1247, %v1296, 0.0
      %v1345 = vsel %vm1248, %v1295, 0.0
      %v1346 = vsel %vm1249, %v1294, 0.0
      %v1347 = vsel %vm1250, %v1293, 0.0
      %v1348 = vsel %vm1251, %v1292, 0.0
      %v1349 = vsel %vm1252, %v1291, 0.0
      %v1350 = vsel %vm1253, %v1290, 0.0
      %v1351 = vsel %vm1254, %v1289, 0.0
      %v1352 = vsel %vm1255, %v1320, 0.0
      %v1353 = vpack.c.bf16 %v1193, %v1192
      %v1354 = vpack.c.bf16 %v1195, %v1194
      %v1355 = vpack.c.bf16 %v1197, %v1196
      %v1356 = vpack.c.bf16 %v1199, %v1198
      %v1357 = vpack.c.bf16 %v1201, %v1200
      %v1358 = vpack.c.bf16 %v1203, %v1202
      %v1359 = vpack.c.bf16 %v1205, %v1204
      %v1360 = vpack.c.bf16 %v1207, %v1206
      %v1361 = vpack.c.bf16 %v1209, %v1208
      %v1362 = vpack.c.bf16 %v1211, %v1210
      %v1363 = vpack.c.bf16 %v1213, %v1212
      %v1364 = vpack.c.bf16 %v1215, %v1214
      %v1365 = vpack.c.bf16 %v1217, %v1216
      %v1366 = vpack.c.bf16 %v1219, %v1218
      %v1367 = vpack.c.bf16 %v1221, %v1220
      %v1368 = vpack.c.bf16 %v1223, %v1222
      %1369 = vst [vmem:[#allocation2 + $0x18] sm:$0xff] %v1353
      %1370 = vst [vmem:[#allocation2 + $0x30] sm:$0xff] %v1354
      %1371 = vst [vmem:[#allocation2 + $0x48] sm:$0xff] %v1355
      %1372 = vst [vmem:[#allocation2 + $0x60] sm:$0xff] %v1356
      %1373 = vst [vmem:[#allocation2 + $0x78] sm:$0xff] %v1357
      %1374 = vst [vmem:[#allocation2 + $0x90] sm:$0xff] %v1358
      %1375 = vst [vmem:[#allocation2 + $0xa8] sm:$0xff] %v1359
      %1376 = vst [vmem:[#allocation2 + $0xc0] sm:$0xff] %v1360
      %1377 = vst [vmem:[#allocation2 + $0xd8] sm:$0xff] %v1361
      %1378 = vst [vmem:[#allocation2 + $0xf0] sm:$0xff] %v1362
      %1379 = vst [vmem:[#allocation2 + $0x108] sm:$0xff] %v1363
      %1380 = vst [vmem:[#allocation2 + $0x120] sm:$0xff] %v1364
      %1381 = vst [vmem:[#allocation2 + $0x138] sm:$0xff] %v1365
      %1382 = vst [vmem:[#allocation2 + $0x150] sm:$0xff] %v1366
      %1383 = vst [vmem:[#allocation2 + $0x168] sm:$0xff] %v1367
      %1384 = vst [vmem:[#allocation2 + $0x180] sm:$0xff] %v1368
      %v1385 = vpack.c.bf16 %v641, %v640
      %v1386 = vpack.c.bf16 %v643, %v642
      %v1387 = vpack.c.bf16 %v645, %v644
      %v1388 = vpack.c.bf16 %v647, %v646
      %v1389 = vpack.c.bf16 %v649, %v648
      %v1390 = vpack.c.bf16 %v651, %v650
      %v1391 = vpack.c.bf16 %v653, %v652
      %v1392 = vpack.c.bf16 %v655, %v654
      %v1393 = vpack.c.bf16 %v657, %v656
      %v1394 = vpack.c.bf16 %v659, %v658
      %v1395 = vpack.c.bf16 %v661, %v660
      %v1396 = vpack.c.bf16 %v663, %v662
      %v1397 = vpack.c.bf16 %v665, %v664
      %v1398 = vpack.c.bf16 %v667, %v666
      %v1399 = vpack.c.bf16 %v669, %v668
      %v1400 = vpack.c.bf16 %v671, %v670
      %1401 = vst [vmem:[#allocation2 + $0x20] sm:$0xff] %v1385
      %1402 = vst [vmem:[#allocation2 + $0x38] sm:$0xff] %v1386
      %1403 = vst [vmem:[#allocation2 + $0x50] sm:$0xff] %v1387
      %1404 = vst [vmem:[#allocation2 + $0x68] sm:$0xff] %v1388
      %1405 = vst [vmem:[#allocation2 + $0x80] sm:$0xff] %v1389
      %1406 = vst [vmem:[#allocation2 + $0x98] sm:$0xff] %v1390
      %1407 = vst [vmem:[#allocation2 + $0xb0] sm:$0xff] %v1391
      %1408 = vst [vmem:[#allocation2 + $0xc8] sm:$0xff] %v1392
      %1409 = vst [vmem:[#allocation2 + $0xe0] sm:$0xff] %v1393
      %1410 = vst [vmem:[#allocation2 + $0xf8] sm:$0xff] %v1394
      %1411 = vst [vmem:[#allocation2 + $0x110] sm:$0xff] %v1395
      %1412 = vst [vmem:[#allocation2 + $0x128] sm:$0xff] %v1396
      %1413 = vst [vmem:[#allocation2 + $0x140] sm:$0xff] %v1397
      %1414 = vst [vmem:[#allocation2 + $0x158] sm:$0xff] %v1398
      %1415 = vst [vmem:[#allocation2 + $0x170] sm:$0xff] %v1399
      %1416 = vst [vmem:[#allocation2 + $0x188] sm:$0xff] %v1400
      %v1417 = vpack.c.bf16 %v1322, %v1321
      %v1418 = vpack.c.bf16 %v1324, %v1323
      %v1419 = vpack.c.bf16 %v1326, %v1325
      %v1420 = vpack.c.bf16 %v1328, %v1327
      %v1421 = vpack.c.bf16 %v1330, %v1329
      %v1422 = vpack.c.bf16 %v1332, %v1331
      %v1423 = vpack.c.bf16 %v1334, %v1333
      %v1424 = vpack.c.bf16 %v1336, %v1335
      %v1425 = vpack.c.bf16 %v1338, %v1337
      %v1426 = vpack.c.bf16 %v1340, %v1339
      %v1427 = vpack.c.bf16 %v1342, %v1341
      %v1428 = vpack.c.bf16 %v1344, %v1343
      %v1429 = vpack.c.bf16 %v1346, %v1345
      %v1430 = vpack.c.bf16 %v1348, %v1347
      %v1431 = vpack.c.bf16 %v1350, %v1349
      %v1432 = vpack.c.bf16 %v1352, %v1351
      %1433 = vst [vmem:[#allocation2 + $0x28] sm:$0xff] %v1417
      %1434 = vst [vmem:[#allocation2 + $0x40] sm:$0xff] %v1418
      %1435 = vst [vmem:[#allocation2 + $0x58] sm:$0xff] %v1419
      %1436 = vst [vmem:[#allocation2 + $0x70] sm:$0xff] %v1420
      %1437 = vst [vmem:[#allocation2 + $0x88] sm:$0xff] %v1421
      %1438 = vst [vmem:[#allocation2 + $0xa0] sm:$0xff] %v1422
      %1439 = vst [vmem:[#allocation2 + $0xb8] sm:$0xff] %v1423
      %1440 = vst [vmem:[#allocation2 + $0xd0] sm:$0xff] %v1424
      %1441 = vst [vmem:[#allocation2 + $0xe8] sm:$0xff] %v1425
      %1442 = vst [vmem:[#allocation2 + $0x100] sm:$0xff] %v1426
      %1443 = vst [vmem:[#allocation2 + $0x118] sm:$0xff] %v1427
      %1444 = vst [vmem:[#allocation2 + $0x130] sm:$0xff] %v1428
      %1445 = vst [vmem:[#allocation2 + $0x148] sm:$0xff] %v1429
      %1446 = vst [vmem:[#allocation2 + $0x160] sm:$0xff] %v1430
      %1447 = vst [vmem:[#allocation2 + $0x178] sm:$0xff] %v1431
      %1448 = vst [vmem:[#allocation2 + $0x190] sm:$0xff] %v1432
      %v1449 = vld [vmem:[#allocation2] sm:$0xff]
      %v1450 = vld [vmem:[#allocation2 + $0x8] sm:$0xff]
      %v1451 = vld [vmem:[#allocation2 + $0x10] sm:$0xff]
      %v1452 = vld [vmem:[#allocation2 + $0x18] sm:$0xff]
      %v1453 = vld [vmem:[#allocation2 + $0x20] sm:$0xff]
      %v1454 = vld [vmem:[#allocation2 + $0x28] sm:$0xff]
      %v1455 = vld [vmem:[#allocation2 + $0x30] sm:$0xff]
      %v1456 = vld [vmem:[#allocation2 + $0x38] sm:$0xff]
      %v1457 = vld [vmem:[#allocation2 + $0x40] sm:$0xff]
      %v1458 = vld [vmem:[#allocation2 + $0x48] sm:$0xff]
      %v1459 = vld [vmem:[#allocation2 + $0x50] sm:$0xff]
      %v1460 = vld [vmem:[#allocation2 + $0x58] sm:$0xff]
      %v1461 = vld [vmem:[#allocation2 + $0x60] sm:$0xff]
      %v1462 = vld [vmem:[#allocation2 + $0x68] sm:$0xff]
      %v1463 = vld [vmem:[#allocation2 + $0x70] sm:$0xff]
      %v1464 = vld [vmem:[#allocation2 + $0x78] sm:$0xff]
      %v1465 = vld [vmem:[#allocation2 + $0x80] sm:$0xff]
      %v1466 = vld [vmem:[#allocation2 + $0x88] sm:$0xff]
      %v1467 = vld [vmem:[#allocation2 + $0x90] sm:$0xff]
      %v1468 = vld [vmem:[#allocation2 + $0x98] sm:$0xff]
      %v1469 = vld [vmem:[#allocation2 + $0xa0] sm:$0xff]
      %v1470 = vld [vmem:[#allocation2 + $0xa8] sm:$0xff]
      %v1471 = vld [vmem:[#allocation2 + $0xb0] sm:$0xff]
      %v1472 = vld [vmem:[#allocation2 + $0xb8] sm:$0xff]
      %v1473 = vld [vmem:[#allocation2 + $0xc0] sm:$0xff]
      %v1474 = vld [vmem:[#allocation2 + $0xc8] sm:$0xff]
      %v1475 = vld [vmem:[#allocation2 + $0xd0] sm:$0xff]
      %v1476 = vld [vmem:[#allocation2 + $0xd8] sm:$0xff]
      %v1477 = vld [vmem:[#allocation2 + $0xe0] sm:$0xff]
      %v1478 = vld [vmem:[#allocation2 + $0xe8] sm:$0xff]
      %v1479 = vld [vmem:[#allocation2 + $0xf0] sm:$0xff]
      %v1480 = vld [vmem:[#allocation2 + $0xf8] sm:$0xff]
      %v1481 = vld [vmem:[#allocation2 + $0x100] sm:$0xff]
      %v1482 = vld [vmem:[#allocation2 + $0x108] sm:$0xff]
      %v1483 = vld [vmem:[#allocation2 + $0x110] sm:$0xff]
      %v1484 = vld [vmem:[#allocation2 + $0x118] sm:$0xff]
      %v1485 = vld [vmem:[#allocation2 + $0x120] sm:$0xff]
      %v1486 = vld [vmem:[#allocation2 + $0x128] sm:$0xff]
      %v1487 = vld [vmem:[#allocation2 + $0x130] sm:$0xff]
      %v1488 = vld [vmem:[#allocation2 + $0x138] sm:$0xff]
      %v1489 = vld [vmem:[#allocation2 + $0x140] sm:$0xff]
      %v1490 = vld [vmem:[#allocation2 + $0x148] sm:$0xff]
      %v1491 = vld [vmem:[#allocation2 + $0x150] sm:$0xff]
      %v1492 = vld [vmem:[#allocation2 + $0x158] sm:$0xff]
      %v1493 = vld [vmem:[#allocation2 + $0x160] sm:$0xff]
      %v1494 = vld [vmem:[#allocation2 + $0x168] sm:$0xff]
      %v1495 = vld [vmem:[#allocation2 + $0x170] sm:$0xff]
      %v1496 = vld [vmem:[#allocation2 + $0x178] sm:$0xff]
      %v1497 = vld [vmem:[%s3] sm:$0xf]
      %v1498 = vld [vmem:[%s3 + $0x4] sm:$0xf]
      %v1499 = vld [vmem:[%s3 + $0x8] sm:$0xf]
      %v1500 = vld [vmem:[%s3 + $0xc] sm:$0xf]
      %v1501 = vld [vmem:[%s3 + $0x10] sm:$0xf]
      %v1502 = vld [vmem:[%s3 + $0x14] sm:$0xf]
      %v1503 = vld [vmem:[%s3 + $0x18] sm:$0xf]
      %v1504 = vld [vmem:[%s3 + $0x1c] sm:$0xf]
      %v1505 = vld [vmem:[%s3 + $0x20] sm:$0xf]
      %v1506 = vld [vmem:[%s3 + $0x24] sm:$0xf]
      %v1507 = vld [vmem:[%s3 + $0x28] sm:$0xf]
      %v1508 = vld [vmem:[%s3 + $0x2c] sm:$0xf]
      %v1509 = vld [vmem:[%s3 + $0x30] sm:$0xf]
      %v1510 = vld [vmem:[%s3 + $0x34] sm:$0xf]
      %v1511 = vld [vmem:[%s3 + $0x38] sm:$0xf]
      %v1512 = vld [vmem:[%s3 + $0x3c] sm:$0xf]
      %v1513 = vld [vmem:[%s3 + $0x40] sm:$0xf]
      %v1514 = vld [vmem:[%s3 + $0x44] sm:$0xf]
      %v1515 = vld [vmem:[%s3 + $0x48] sm:$0xf]
      %v1516 = vld [vmem:[%s3 + $0x4c] sm:$0xf]
      %v1517 = vld [vmem:[%s3 + $0x50] sm:$0xf]
      %v1518 = vld [vmem:[%s3 + $0x54] sm:$0xf]
      %v1519 = vld [vmem:[%s3 + $0x58] sm:$0xf]
      %v1520 = vld [vmem:[%s3 + $0x5c] sm:$0xf]
      %v1521 = vld [vmem:[%s3 + $0x60] sm:$0xf]
      %v1522 = vld [vmem:[%s3 + $0x64] sm:$0xf]
      %v1523 = vld [vmem:[%s3 + $0x68] sm:$0xf]
      %v1524 = vld [vmem:[%s3 + $0x6c] sm:$0xf]
      %v1525 = vld [vmem:[%s3 + $0x70] sm:$0xf]
      %v1526 = vld [vmem:[%s3 + $0x74] sm:$0xf]
      %v1527 = vld [vmem:[%s3 + $0x78] sm:$0xf]
      %v1528 = vld [vmem:[%s3 + $0x7c] sm:$0xf]
      %v1529 = vld [vmem:[%s3 + $0x80] sm:$0xf]
      %v1530 = vld [vmem:[%s3 + $0x84] sm:$0xf]
      %v1531 = vld [vmem:[%s3 + $0x88] sm:$0xf]
      %v1532 = vld [vmem:[%s3 + $0x8c] sm:$0xf]
      %v1533 = vld [vmem:[%s3 + $0x90] sm:$0xf]
      %v1534 = vld [vmem:[%s3 + $0x94] sm:$0xf]
      %v1535 = vld [vmem:[%s3 + $0x98] sm:$0xf]
      %v1536 = vld [vmem:[%s3 + $0x9c] sm:$0xf]
      %v1537 = vld [vmem:[%s3 + $0xa0] sm:$0xf]
      %v1538 = vld [vmem:[%s3 + $0xa4] sm:$0xf]
      %v1539 = vld [vmem:[%s3 + $0xa8] sm:$0xf]
      %v1540 = vld [vmem:[%s3 + $0xac] sm:$0xf]
      %v1541 = vld [vmem:[%s3 + $0xb0] sm:$0xf]
      %v1542 = vld [vmem:[%s3 + $0xb4] sm:$0xf]
      %v1543 = vld [vmem:[%s3 + $0xb8] sm:$0xf]
      %v1544 = vld [vmem:[%s3 + $0xbc] sm:$0xf]
      %v1545 = vld [vmem:[#allocation2 + $0x180] sm:$0xff]
      %v1546 = vld [vmem:[#allocation2 + $0x188] sm:$0xff]
      %v1547 = vld [vmem:[#allocation2 + $0x190] sm:$0xff]
      %s1548 = scalar_lea.vmem %s3, 192
      %v1549 = vld [vmem:[%s1548] sm:$0xf]
      %v1550 = vld [vmem:[%s1548 + $0x4] sm:$0xf]
      %v1551 = vld [vmem:[%s1548 + $0x8] sm:$0xf]
      %v1552 = vld [vmem:[%s1548 + $0xc] sm:$0xf]
      %v1553 = vld [vmem:[%s1548 + $0x10] sm:$0xf]
      %v1554 = vld [vmem:[%s1548 + $0x14] sm:$0xf]
      %v1555 = vld [vmem:[%s1548 + $0x18] sm:$0xf]
      %v1556 = vld [vmem:[%s1548 + $0x1c] sm:$0xf]
      %v1557 = vld [vmem:[%s1548 + $0x20] sm:$0xf]
      %v1558 = vld [vmem:[%s1548 + $0x24] sm:$0xf]
      %v1559 = vld [vmem:[%s1548 + $0x28] sm:$0xf]
      %v1560 = vld [vmem:[%s1548 + $0x2c] sm:$0xf]
      %v1561 = vld [vmem:[%s1548 + $0x30] sm:$0xf]
      %v1562 = vld [vmem:[%s1548 + $0x34] sm:$0xf]
      %v1563 = vld [vmem:[%s1548 + $0x38] sm:$0xf]
      %v1564 = vld [vmem:[%s1548 + $0x3c] sm:$0xf]
      %v1565 = vld [vmem:[%s1548 + $0x40] sm:$0xf]
      %v1566 = vld [vmem:[%s1548 + $0x44] sm:$0xf]
      %v1567 = vld [vmem:[%s1548 + $0x48] sm:$0xf]
      %v1568 = vld [vmem:[%s1548 + $0x4c] sm:$0xf]
      %v1569 = vld [vmem:[%s1548 + $0x50] sm:$0xf]
      %v1570 = vld [vmem:[%s1548 + $0x54] sm:$0xf]
      %v1571 = vld [vmem:[%s1548 + $0x58] sm:$0xf]
      %v1572 = vld [vmem:[%s1548 + $0x5c] sm:$0xf]
      %v1573 = vld [vmem:[%s1548 + $0x60] sm:$0xf]
      %v1574 = vld [vmem:[%s1548 + $0x64] sm:$0xf]
      %v1575 = vld [vmem:[%s1548 + $0x68] sm:$0xf]
      %v1576 = vld [vmem:[%s1548 + $0x6c] sm:$0xf]
      %v1577 = vld [vmem:[%s1548 + $0x70] sm:$0xf]
      %v1578 = vld [vmem:[%s1548 + $0x74] sm:$0xf]
      %v1579 = vld [vmem:[%s1548 + $0x78] sm:$0xf]
      %v1580 = vld [vmem:[%s1548 + $0x7c] sm:$0xf]
      %v1581 = vld [vmem:[%s1548 + $0x80] sm:$0xf]
      %v1582 = vld [vmem:[%s1548 + $0x84] sm:$0xf]
      %v1583 = vld [vmem:[%s1548 + $0x88] sm:$0xf]
      %v1584 = vld [vmem:[%s1548 + $0x8c] sm:$0xf]
      %v1585 = vld [vmem:[%s1548 + $0x90] sm:$0xf]
      %v1586 = vld [vmem:[%s1548 + $0x94] sm:$0xf]
      %v1587 = vld [vmem:[%s1548 + $0x98] sm:$0xf]
      %v1588 = vld [vmem:[%s1548 + $0x9c] sm:$0xf]
      %v1589 = vld [vmem:[%s1548 + $0xa0] sm:$0xf]
      %v1590 = vld [vmem:[%s1548 + $0xa4] sm:$0xf]
      %v1591 = vld [vmem:[%s1548 + $0xa8] sm:$0xf]
      %v1592 = vld [vmem:[%s1548 + $0xac] sm:$0xf]
      %v1593 = vld [vmem:[%s1548 + $0xb0] sm:$0xf]
      %v1594 = vld [vmem:[%s1548 + $0xb4] sm:$0xf]
      %v1595 = vld [vmem:[%s1548 + $0xb8] sm:$0xf]
      %v1596 = vld [vmem:[%s1548 + $0xbc] sm:$0xf]
      %v1645 = vunpack.c.l.b16 %v1549
      %v1646 = vunpack.c.l.b16 %v1550
      %v1647 = vunpack.c.l.b16 %v1551
      %v1648 = vunpack.c.l.b16 %v1552
      %v1649 = vunpack.c.l.b16 %v1553
      %v1650 = vunpack.c.l.b16 %v1554
      %v1651 = vunpack.c.l.b16 %v1555
      %v1652 = vunpack.c.l.b16 %v1556
      %v1653 = vunpack.c.l.b16 %v1557
      %v1654 = vunpack.c.l.b16 %v1558
      %v1655 = vunpack.c.l.b16 %v1559
      %v1656 = vunpack.c.l.b16 %v1560
      %v1657 = vunpack.c.l.b16 %v1561
      %v1658 = vunpack.c.l.b16 %v1562
      %v1659 = vunpack.c.l.b16 %v1563
      %v1660 = vunpack.c.l.b16 %v1564
      %v1661 = vunpack.c.l.b16 %v1565
      %v1662 = vunpack.c.l.b16 %v1566
      %v1663 = vunpack.c.l.b16 %v1567
      %v1664 = vunpack.c.l.b16 %v1568
      %v1665 = vunpack.c.l.b16 %v1569
      %v1666 = vunpack.c.l.b16 %v1570
      %v1667 = vunpack.c.l.b16 %v1571
      %v1668 = vunpack.c.l.b16 %v1572
      %v1669 = vunpack.c.l.b16 %v1573
      %v1670 = vunpack.c.l.b16 %v1574
      %v1671 = vunpack.c.l.b16 %v1575
      %v1672 = vunpack.c.l.b16 %v1576
      %v1673 = vunpack.c.l.b16 %v1577
      %v1674 = vunpack.c.l.b16 %v1578
      %v1675 = vunpack.c.l.b16 %v1579
      %v1676 = vunpack.c.l.b16 %v1580
      %v1677 = vunpack.c.l.b16 %v1581
      %v1678 = vunpack.c.l.b16 %v1582
      %v1679 = vunpack.c.l.b16 %v1583
      %v1680 = vunpack.c.l.b16 %v1584
      %v1681 = vunpack.c.l.b16 %v1585
      %v1682 = vunpack.c.l.b16 %v1586
      %v1683 = vunpack.c.l.b16 %v1587
      %v1684 = vunpack.c.l.b16 %v1588
      %v1685 = vunpack.c.l.b16 %v1589
      %v1686 = vunpack.c.l.b16 %v1590
      %v1687 = vunpack.c.l.b16 %v1591
      %v1688 = vunpack.c.l.b16 %v1592
      %v1689 = vunpack.c.l.b16 %v1593
      %v1690 = vunpack.c.l.b16 %v1594
      %v1691 = vunpack.c.l.b16 %v1595
      %v1692 = vunpack.c.l.b16 %v1596
      %v1693 = vpack.c.b16 %v1646, %v1645
      %v1694 = vpack.c.b16 %v1648, %v1647
      %v1695 = vpack.c.b16 %v1650, %v1649
      %v1696 = vpack.c.b16 %v1652, %v1651
      %v1697 = vpack.c.b16 %v1654, %v1653
      %v1698 = vpack.c.b16 %v1656, %v1655
      %v1699 = vpack.c.b16 %v1658, %v1657
      %v1700 = vpack.c.b16 %v1660, %v1659
      %v1701 = vpack.c.b16 %v1662, %v1661
      %v1702 = vpack.c.b16 %v1664, %v1663
      %v1703 = vpack.c.b16 %v1666, %v1665
      %v1704 = vpack.c.b16 %v1668, %v1667
      %v1705 = vpack.c.b16 %v1670, %v1669
      %v1706 = vpack.c.b16 %v1672, %v1671
      %v1707 = vpack.c.b16 %v1674, %v1673
      %v1708 = vpack.c.b16 %v1676, %v1675
      %v1709 = vpack.c.b16 %v1678, %v1677
      %v1710 = vpack.c.b16 %v1680, %v1679
      %v1711 = vpack.c.b16 %v1682, %v1681
      %v1712 = vpack.c.b16 %v1684, %v1683
      %v1713 = vpack.c.b16 %v1686, %v1685
      %v1714 = vpack.c.b16 %v1688, %v1687
      %v1715 = vpack.c.b16 %v1690, %v1689
      %v1716 = vpack.c.b16 %v1692, %v1691
      %1741 = vmatprep.subr.bf16.mxu0 0
      %1742 = vmatpush1.bf16.msra.mxu0 %v1693
      %1743 = vmatprep.subr.bf16.mxu0 0
      %1744 = vmatpush1.bf16.msra.mxu0 %v1694
      %1745 = vmatprep.subr.bf16.mxu0 0
      %1746 = vmatpush1.bf16.msra.mxu0 %v1695
      %1747 = vmatprep.subr.bf16.mxu0 0
      %1748 = vmatpush1.bf16.msra.mxu0 %v1696
      %1749 = vmatprep.subr.bf16.mxu0 0
      %1750 = vmatpush1.bf16.msra.mxu0 %v1697
      %1751 = vmatprep.subr.bf16.mxu0 0
      %1752 = vmatpush1.bf16.msra.mxu0 %v1698
      %1753 = vmatprep.subr.bf16.mxu0 0
      %1754 = vmatpush1.bf16.msra.mxu0 %v1699
      %1755 = vmatprep.subr.bf16.mxu0 0
      %1756 = vmatpush1.bf16.msra.mxu0 %v1700
      %1757 = vmatprep.subr.bf16.mxu0 0
      %1758 = vmatpush1.bf16.msra.mxu0 %v1701
      %1759 = vmatprep.subr.bf16.mxu0 0
      %1760 = vmatpush1.bf16.msra.mxu0 %v1702
      %1761 = vmatprep.subr.bf16.mxu0 0
      %1762 = vmatpush1.bf16.msra.mxu0 %v1703
      %1763 = vmatprep.subr.bf16.mxu0 0
      %1764 = vmatpush1.bf16.msra.mxu0 %v1704
      %1765 = vmatprep.subr.bf16.mxu0 0
      %1766 = vmatpush1.bf16.msra.mxu0 %v1705
      %1767 = vmatprep.subr.bf16.mxu0 0
      %1768 = vmatpush1.bf16.msra.mxu0 %v1706
      %1769 = vmatprep.subr.bf16.mxu0 0
      %1770 = vmatpush1.bf16.msra.mxu0 %v1707
      %1771 = vmatprep.subr.bf16.mxu0 0
      %1772 = vmatpush1.bf16.msra.mxu0 %v1708
      %1773 = vmatprep.mubr.bf16.mxu0 %v1453
      %1774 = vmatmul.mubr.bf16.gmra.mrb[0].mxu0 %v1452
      %v1775 = vpop.f32.mrb[0].mxu0
      %v1776 = vadd.f32 0.0, %v1775
      %v1777 = vpop.f32.mrb[0].mxu0
      %v1778 = vpop.f32.mrb[0].mxu0
      %v1779 = vadd.f32 0.0, %v1778
      %v1780 = vpop.f32.mrb[0].mxu0
      %1781 = vmatprep.mubr.bf16.mxu0 %v1456
      %1782 = vmatmul.mubr.bf16.gmra.mrb[0].mxu0 %v1455
      %v1783 = vpop.f32.mrb[0].mxu0
      %v1784 = vadd.f32 0.0, %v1783
      %v1785 = vpop.f32.mrb[0].mxu0
      %v1786 = vpop.f32.mrb[0].mxu0
      %v1787 = vadd.f32 0.0, %v1786
      %v1788 = vpop.f32.mrb[0].mxu0
      %1789 = vmatprep.mubr.bf16.mxu0 %v1459
      %1790 = vmatmul.mubr.bf16.gmra.mrb[0].mxu0 %v1458
      %v1791 = vpop.f32.mrb[0].mxu0
      %v1792 = vadd.f32 0.0, %v1791
      %v1793 = vpop.f32.mrb[0].mxu0
      %v1794 = vpop.f32.mrb[0].mxu0
      %v1795 = vadd.f32 0.0, %v1794
      %v1796 = vpop.f32.mrb[0].mxu0
      %1797 = vmatprep.mubr.bf16.mxu0 %v1462
      %1798 = vmatmul.mubr.bf16.gmra.mrb[0].mxu0 %v1461
      %v1799 = vpop.f32.mrb[0].mxu0
      %v1800 = vadd.f32 0.0, %v1799
      %v1801 = vpop.f32.mrb[0].mxu0
      %v1802 = vpop.f32.mrb[0].mxu0
      %v1803 = vadd.f32 0.0, %v1802
      %v1804 = vpop.f32.mrb[0].mxu0
      %1805 = vmatprep.mubr.bf16.mxu0 %v1465
      %1806 = vmatmul.mubr.bf16.gmra.mrb[0].mxu0 %v1464
      %v1807 = vpop.f32.mrb[0].mxu0
      %v1808 = vadd.f32 0.0, %v1807
      %v1809 = vpop.f32.mrb[0].mxu0
      %v1810 = vpop.f32.mrb[0].mxu0
      %v1811 = vadd.f32 0.0, %v1810
      %v1812 = vpop.f32.mrb[0].mxu0
      %1813 = vmatprep.mubr.bf16.mxu0 %v1468
      %1814 = vmatmul.mubr.bf16.gmra.mrb[0].mxu0 %v1467
      %v1815 = vpop.f32.mrb[0].mxu0
      %v1816 = vadd.f32 0.0, %v1815
      %v1817 = vpop.f32.mrb[0].mxu0
      %v1818 = vpop.f32.mrb[0].mxu0
      %v1819 = vadd.f32 0.0, %v1818
      %v1820 = vpop.f32.mrb[0].mxu0
      %1821 = vmatprep.mubr.bf16.mxu0 %v1471
      %1822 = vmatmul.mubr.bf16.gmra.mrb[0].mxu0 %v1470
      %v1823 = vpop.f32.mrb[0].mxu0
      %v1824 = vadd.f32 0.0, %v1823
      %v1825 = vpop.f32.mrb[0].mxu0
      %v1826 = vpop.f32.mrb[0].mxu0
      %v1827 = vadd.f32 0.0, %v1826
      %v1828 = vpop.f32.mrb[0].mxu0
      %1829 = vmatprep.mubr.bf16.mxu0 %v1474
      %1830 = vmatmul.mubr.bf16.gmra.mrb[0].mxu0 %v1473
      %v1831 = vpop.f32.mrb[0].mxu0
      %v1832 = vadd.f32 0.0, %v1831
      %v1833 = vpop.f32.mrb[0].mxu0
      %v1834 = vpop.f32.mrb[0].mxu0
      %v1835 = vadd.f32 0.0, %v1834
      %v1836 = vpop.f32.mrb[0].mxu0
      %1837 = vmatprep.mubr.bf16.mxu0 %v1477
      %1838 = vmatmul.mubr.bf16.gmra.mrb[0].mxu0 %v1476
      %v1839 = vpop.f32.mrb[0].mxu0
      %v1840 = vadd.f32 0.0, %v1839
      %v1841 = vpop.f32.mrb[0].mxu0
      %v1842 = vpop.f32.mrb[0].mxu0
      %v1843 = vadd.f32 0.0, %v1842
      %v1844 = vpop.f32.mrb[0].mxu0
      %1845 = vmatprep.mubr.bf16.mxu0 %v1480
      %1846 = vmatmul.mubr.bf16.gmra.mrb[0].mxu0 %v1479
      %v1847 = vpop.f32.mrb[0].mxu0
      %v1848 = vadd.f32 0.0, %v1847
      %v1849 = vpop.f32.mrb[0].mxu0
      %v1850 = vpop.f32.mrb[0].mxu0
      %v1851 = vadd.f32 0.0, %v1850
      %v1852 = vpop.f32.mrb[0].mxu0
      %1853 = vmatprep.mubr.bf16.mxu0 %v1483
      %1854 = vmatmul.mubr.bf16.gmra.mrb[0].mxu0 %v1482
      %v1855 = vpop.f32.mrb[0].mxu0
      %v1856 = vadd.f32 0.0, %v1855
      %v1857 = vpop.f32.mrb[0].mxu0
      %v1858 = vpop.f32.mrb[0].mxu0
      %v1859 = vadd.f32 0.0, %v1858
      %v1860 = vpop.f32.mrb[0].mxu0
      %1861 = vmatprep.mubr.bf16.mxu0 %v1486
      %1862 = vmatmul.mubr.bf16.gmra.mrb[0].mxu0 %v1485
      %v1863 = vpop.f32.mrb[0].mxu0
      %v1864 = vadd.f32 0.0, %v1863
      %v1865 = vpop.f32.mrb[0].mxu0
      %v1866 = vpop.f32.mrb[0].mxu0
      %v1867 = vadd.f32 0.0, %v1866
      %v1868 = vpop.f32.mrb[0].mxu0
      %1869 = vmatprep.mubr.bf16.mxu0 %v1489
      %1870 = vmatmul.mubr.bf16.gmra.mrb[0].mxu0 %v1488
      %v1871 = vpop.f32.mrb[0].mxu0
      %v1872 = vadd.f32 0.0, %v1871
      %v1873 = vpop.f32.mrb[0].mxu0
      %v1874 = vpop.f32.mrb[0].mxu0
      %v1875 = vadd.f32 0.0, %v1874
      %v1876 = vpop.f32.mrb[0].mxu0
      %1877 = vmatprep.mubr.bf16.mxu0 %v1492
      %1878 = vmatmul.mubr.bf16.gmra.mrb[0].mxu0 %v1491
      %v1879 = vpop.f32.mrb[0].mxu0
      %v1880 = vadd.f32 0.0, %v1879
      %v1881 = vpop.f32.mrb[0].mxu0
      %v1882 = vpop.f32.mrb[0].mxu0
      %v1883 = vadd.f32 0.0, %v1882
      %v1884 = vpop.f32.mrb[0].mxu0
      %1885 = vmatprep.mubr.bf16.mxu0 %v1495
      %1886 = vmatmul.mubr.bf16.gmra.mrb[0].mxu0 %v1494
      %v1887 = vpop.f32.mrb[0].mxu0
      %v1888 = vadd.f32 0.0, %v1887
      %v1889 = vpop.f32.mrb[0].mxu0
      %v1890 = vpop.f32.mrb[0].mxu0
      %v1891 = vadd.f32 0.0, %v1890
      %v1892 = vpop.f32.mrb[0].mxu0
      %1893 = vmatprep.mubr.bf16.mxu0 %v1546
      %1894 = vmatmul.mubr.bf16.gmra.mrb[0].mxu0 %v1545
      %v1895 = vpop.f32.mrb[0].mxu0
      %v1896 = vadd.f32 0.0, %v1895
      %v1897 = vpop.f32.mrb[0].mxu0
      %v1898 = vpop.f32.mrb[0].mxu0
      %v1899 = vadd.f32 0.0, %v1898
      %v1900 = vpop.f32.mrb[0].mxu0
      %1901 = vdwg.mxu0
      %1902 = vmatprep.subr.bf16.mxu0 0
      %1903 = vmatpush1.bf16.msra.mxu0 %v1709
      %1904 = vmatprep.subr.bf16.mxu0 0
      %1905 = vmatpush1.bf16.msra.mxu0 %v1710
      %1906 = vmatprep.subr.bf16.mxu0 0
      %1907 = vmatpush1.bf16.msra.mxu0 %v1711
      %1908 = vmatprep.subr.bf16.mxu0 0
      %1909 = vmatpush1.bf16.msra.mxu0 %v1712
      %1910 = vmatprep.subr.bf16.mxu0 0
      %1911 = vmatpush1.bf16.msra.mxu0 %v1713
      %1912 = vmatprep.subr.bf16.mxu0 0
      %1913 = vmatpush1.bf16.msra.mxu0 %v1714
      %1914 = vmatprep.subr.bf16.mxu0 0
      %1915 = vmatpush1.bf16.msra.mxu0 %v1715
      %1916 = vmatprep.subr.bf16.mxu0 0
      %1917 = vmatpush1.bf16.msra.mxu0 %v1716
      %1918 = vmatprep.subr.bf16.mxu0 0
      %1919 = vmatpush1.bf16.msra.mxu0 0
      %1920 = vmatprep.subr.bf16.mxu0 0
      %1921 = vmatpush1.bf16.msra.mxu0 0
      %1922 = vmatprep.subr.bf16.mxu0 0
      %1923 = vmatpush1.bf16.msra.mxu0 0
      %1924 = vmatprep.subr.bf16.mxu0 0
      %1925 = vmatpush1.bf16.msra.mxu0 0
      %1926 = vmatprep.subr.bf16.mxu0 0
      %1927 = vmatpush1.bf16.msra.mxu0 0
      %1928 = vmatprep.subr.bf16.mxu0 0
      %1929 = vmatpush1.bf16.msra.mxu0 0
      %1930 = vmatprep.subr.bf16.mxu0 0
      %1931 = vmatpush1.bf16.msra.mxu0 0
      %1932 = vmatprep.subr.bf16.mxu0 0
      %1933 = vmatpush1.bf16.msra.mxu0 0
      %1934 = vmatprep.mubr.bf16.mxu0 0
      %1935 = vmatmul.mubr.bf16.gmra.mrb[0].mxu0 %v1454
      %v1936 = vpop.f32.mrb[0].mxu0
      %v1937 = vadd.f32 %v1776, %v1936
      %v1938 = vpop.f32.mrb[0].mxu0
      %v1939 = vpop.f32.mrb[0].mxu0
      %v1940 = vadd.f32 %v1779, %v1939
      %v1941 = vpop.f32.mrb[0].mxu0
      %1942 = vmatprep.mubr.bf16.mxu0 0
      %1943 = vmatmul.mubr.bf16.gmra.mrb[0].mxu0 %v1457
      %v1944 = vpop.f32.mrb[0].mxu0
      %v1945 = vadd.f32 %v1784, %v1944
      %v1946 = vpop.f32.mrb[0].mxu0
      %v1947 = vpop.f32.mrb[0].mxu0
      %v1948 = vadd.f32 %v1787, %v1947
      %v1949 = vpop.f32.mrb[0].mxu0
      %1950 = vmatprep.mubr.bf16.mxu0 0
      %1951 = vmatmul.mubr.bf16.gmra.mrb[0].mxu0 %v1460
      %v1952 = vpop.f32.mrb[0].mxu0
      %v1953 = vadd.f32 %v1792, %v1952
      %v1954 = vpop.f32.mrb[0].mxu0
      %v1955 = vpop.f32.mrb[0].mxu0
      %v1956 = vadd.f32 %v1795, %v1955
      %v1957 = vpop.f32.mrb[0].mxu0
      %1958 = vmatprep.mubr.bf16.mxu0 0
      %1959 = vmatmul.mubr.bf16.gmra.mrb[0].mxu0 %v1463
      %v1960 = vpop.f32.mrb[0].mxu0
      %v1961 = vadd.f32 %v1800, %v1960
      %v1962 = vpop.f32.mrb[0].mxu0
      %v1963 = vpop.f32.mrb[0].mxu0
      %v1964 = vadd.f32 %v1803, %v1963
      %v1965 = vpop.f32.mrb[0].mxu0
      %1966 = vmatprep.mubr.bf16.mxu0 0
      %1967 = vmatmul.mubr.bf16.gmra.mrb[0].mxu0 %v1466
      %v1968 = vpop.f32.mrb[0].mxu0
      %v1969 = vadd.f32 %v1808, %v1968
      %v1970 = vpop.f32.mrb[0].mxu0
      %v1971 = vpop.f32.mrb[0].mxu0
      %v1972 = vadd.f32 %v1811, %v1971
      %v1973 = vpop.f32.mrb[0].mxu0
      %1974 = vmatprep.mubr.bf16.mxu0 0
      %1975 = vmatmul.mubr.bf16.gmra.mrb[0].mxu0 %v1469
      %v1976 = vpop.f32.mrb[0].mxu0
      %v1977 = vadd.f32 %v1816, %v1976
      %v1978 = vpop.f32.mrb[0].mxu0
      %v1979 = vpop.f32.mrb[0].mxu0
      %v1980 = vadd.f32 %v1819, %v1979
      %v1981 = vpop.f32.mrb[0].mxu0
      %1982 = vmatprep.mubr.bf16.mxu0 0
      %1983 = vmatmul.mubr.bf16.gmra.mrb[0].mxu0 %v1472
      %v1984 = vpop.f32.mrb[0].mxu0
      %v1985 = vadd.f32 %v1824, %v1984
      %v1986 = vpop.f32.mrb[0].mxu0
      %v1987 = vpop.f32.mrb[0].mxu0
      %v1988 = vadd.f32 %v1827, %v1987
      %v1989 = vpop.f32.mrb[0].mxu0
      %1990 = vmatprep.mubr.bf16.mxu0 0
      %1991 = vmatmul.mubr.bf16.gmra.mrb[0].mxu0 %v1475
      %v1992 = vpop.f32.mrb[0].mxu0
      %v1993 = vadd.f32 %v1832, %v1992
      %v1994 = vpop.f32.mrb[0].mxu0
      %v1995 = vpop.f32.mrb[0].mxu0
      %v1996 = vadd.f32 %v1835, %v1995
      %v1997 = vpop.f32.mrb[0].mxu0
      %1998 = vmatprep.mubr.bf16.mxu0 0
      %1999 = vmatmul.mubr.bf16.gmra.mrb[0].mxu0 %v1478
      %v2000 = vpop.f32.mrb[0].mxu0
      %v2001 = vadd.f32 %v1840, %v2000
      %v2002 = vpop.f32.mrb[0].mxu0
      %v2003 = vpop.f32.mrb[0].mxu0
      %v2004 = vadd.f32 %v1843, %v2003
      %v2005 = vpop.f32.mrb[0].mxu0
      %2006 = vmatprep.mubr.bf16.mxu0 0
      %2007 = vmatmul.mubr.bf16.gmra.mrb[0].mxu0 %v1481
      %v2008 = vpop.f32.mrb[0].mxu0
      %v2009 = vadd.f32 %v1848, %v2008
      %v2010 = vpop.f32.mrb[0].mxu0
      %v2011 = vpop.f32.mrb[0].mxu0
      %v2012 = vadd.f32 %v1851, %v2011
      %v2013 = vpop.f32.mrb[0].mxu0
      %2014 = vmatprep.mubr.bf16.mxu0 0
      %2015 = vmatmul.mubr.bf16.gmra.mrb[0].mxu0 %v1484
      %v2016 = vpop.f32.mrb[0].mxu0
      %v2017 = vadd.f32 %v1856, %v2016
      %v2018 = vpop.f32.mrb[0].mxu0
      %v2019 = vpop.f32.mrb[0].mxu0
      %v2020 = vadd.f32 %v1859, %v2019
      %v2021 = vpop.f32.mrb[0].mxu0
      %2022 = vmatprep.mubr.bf16.mxu0 0
      %2023 = vmatmul.mubr.bf16.gmra.mrb[0].mxu0 %v1487
      %v2024 = vpop.f32.mrb[0].mxu0
      %v2025 = vadd.f32 %v1864, %v2024
      %v2026 = vpop.f32.mrb[0].mxu0
      %v2027 = vpop.f32.mrb[0].mxu0
      %v2028 = vadd.f32 %v1867, %v2027
      %v2029 = vpop.f32.mrb[0].mxu0
      %2030 = vmatprep.mubr.bf16.mxu0 0
      %2031 = vmatmul.mubr.bf16.gmra.mrb[0].mxu0 %v1490
      %v2032 = vpop.f32.mrb[0].mxu0
      %v2033 = vadd.f32 %v1872, %v2032
      %v2034 = vpop.f32.mrb[0].mxu0
      %v2035 = vpop.f32.mrb[0].mxu0
      %v2036 = vadd.f32 %v1875, %v2035
      %v2037 = vpop.f32.mrb[0].mxu0
      %2038 = vmatprep.mubr.bf16.mxu0 0
      %2039 = vmatmul.mubr.bf16.gmra.mrb[0].mxu0 %v1493
      %v2040 = vpop.f32.mrb[0].mxu0
      %v2041 = vadd.f32 %v1880, %v2040
      %v2042 = vpop.f32.mrb[0].mxu0
      %v2043 = vpop.f32.mrb[0].mxu0
      %v2044 = vadd.f32 %v1883, %v2043
      %v2045 = vpop.f32.mrb[0].mxu0
      %2046 = vmatprep.mubr.bf16.mxu0 0
      %2047 = vmatmul.mubr.bf16.gmra.mrb[0].mxu0 %v1496
      %v2048 = vpop.f32.mrb[0].mxu0
      %v2049 = vadd.f32 %v1888, %v2048
      %v2050 = vpop.f32.mrb[0].mxu0
      %v2051 = vpop.f32.mrb[0].mxu0
      %v2052 = vadd.f32 %v1891, %v2051
      %v2053 = vpop.f32.mrb[0].mxu0
      %2054 = vmatprep.mubr.bf16.mxu0 0
      %2055 = vmatmul.mubr.bf16.gmra.mrb[0].mxu0 %v1547
      %v2056 = vpop.f32.mrb[0].mxu0
      %v2057 = vadd.f32 %v1896, %v2056
      %v2058 = vpop.f32.mrb[0].mxu0
      %v2059 = vpop.f32.mrb[0].mxu0
      %v2060 = vadd.f32 %v1899, %v2059
      %v2061 = vpop.f32.mrb[0].mxu0
      %2062 = vdwg.mxu0
      %v2111 = vunpack.c.l.b16 %v1497
      %v2112 = vunpack.c.l.b16 %v1498
      %v2113 = vunpack.c.l.b16 %v1499
      %v2114 = vunpack.c.l.b16 %v1500
      %v2115 = vunpack.c.l.b16 %v1501
      %v2116 = vunpack.c.l.b16 %v1502
      %v2117 = vunpack.c.l.b16 %v1503
      %v2118 = vunpack.c.l.b16 %v1504
      %v2119 = vunpack.c.l.b16 %v1505
      %v2120 = vunpack.c.l.b16 %v1506
      %v2121 = vunpack.c.l.b16 %v1507
      %v2122 = vunpack.c.l.b16 %v1508
      %v2123 = vunpack.c.l.b16 %v1509
      %v2124 = vunpack.c.l.b16 %v1510
      %v2125 = vunpack.c.l.b16 %v1511
      %v2126 = vunpack.c.l.b16 %v1512
      %v2127 = vunpack.c.l.b16 %v1513
      %v2128 = vunpack.c.l.b16 %v1514
      %v2129 = vunpack.c.l.b16 %v1515
      %v2130 = vunpack.c.l.b16 %v1516
      %v2131 = vunpack.c.l.b16 %v1517
      %v2132 = vunpack.c.l.b16 %v1518
      %v2133 = vunpack.c.l.b16 %v1519
      %v2134 = vunpack.c.l.b16 %v1520
      %v2135 = vunpack.c.l.b16 %v1521
      %v2136 = vunpack.c.l.b16 %v1522
      %v2137 = vunpack.c.l.b16 %v1523
      %v2138 = vunpack.c.l.b16 %v1524
      %v2139 = vunpack.c.l.b16 %v1525
      %v2140 = vunpack.c.l.b16 %v1526
      %v2141 = vunpack.c.l.b16 %v1527
      %v2142 = vunpack.c.l.b16 %v1528
      %v2143 = vunpack.c.l.b16 %v1529
      %v2144 = vunpack.c.l.b16 %v1530
      %v2145 = vunpack.c.l.b16 %v1531
      %v2146 = vunpack.c.l.b16 %v1532
      %v2147 = vunpack.c.l.b16 %v1533
      %v2148 = vunpack.c.l.b16 %v1534
      %v2149 = vunpack.c.l.b16 %v1535
      %v2150 = vunpack.c.l.b16 %v1536
      %v2151 = vunpack.c.l.b16 %v1537
      %v2152 = vunpack.c.l.b16 %v1538
      %v2153 = vunpack.c.l.b16 %v1539
      %v2154 = vunpack.c.l.b16 %v1540
      %v2155 = vunpack.c.l.b16 %v1541
      %v2156 = vunpack.c.l.b16 %v1542
      %v2157 = vunpack.c.l.b16 %v1543
      %v2158 = vunpack.c.l.b16 %v1544
      %v2159 = vpack.c.b16 %v2112, %v2111
      %v2160 = vpack.c.b16 %v2114, %v2113
      %v2161 = vpack.c.b16 %v2116, %v2115
      %v2162 = vpack.c.b16 %v2118, %v2117
      %v2163 = vpack.c.b16 %v2120, %v2119
      %v2164 = vpack.c.b16 %v2122, %v2121
      %v2165 = vpack.c.b16 %v2124, %v2123
      %v2166 = vpack.c.b16 %v2126, %v2125
      %v2167 = vpack.c.b16 %v2128, %v2127
      %v2168 = vpack.c.b16 %v2130, %v2129
      %v2169 = vpack.c.b16 %v2132, %v2131
      %v2170 = vpack.c.b16 %v2134, %v2133
      %v2171 = vpack.c.b16 %v2136, %v2135
      %v2172 = vpack.c.b16 %v2138, %v2137
      %v2173 = vpack.c.b16 %v2140, %v2139
      %v2174 = vpack.c.b16 %v2142, %v2141
      %v2175 = vpack.c.b16 %v2144, %v2143
      %v2176 = vpack.c.b16 %v2146, %v2145
      %v2177 = vpack.c.b16 %v2148, %v2147
      %v2178 = vpack.c.b16 %v2150, %v2149
      %v2179 = vpack.c.b16 %v2152, %v2151
      %v2180 = vpack.c.b16 %v2154, %v2153
      %v2181 = vpack.c.b16 %v2156, %v2155
      %v2182 = vpack.c.b16 %v2158, %v2157
      %2207 = vmatprep.subr.bf16.mxu0 0
      %2208 = vmatpush1.bf16.msra.mxu0 %v2159
      %2209 = vmatprep.subr.bf16.mxu0 0
      %2210 = vmatpush1.bf16.msra.mxu0 %v2160
      %2211 = vmatprep.subr.bf16.mxu0 0
      %2212 = vmatpush1.bf16.msra.mxu0 %v2161
      %2213 = vmatprep.subr.bf16.mxu0 0
      %2214 = vmatpush1.bf16.msra.mxu0 %v2162
      %2215 = vmatprep.subr.bf16.mxu0 0
      %2216 = vmatpush1.bf16.msra.mxu0 %v2163
      %2217 = vmatprep.subr.bf16.mxu0 0
      %2218 = vmatpush1.bf16.msra.mxu0 %v2164
      %2219 = vmatprep.subr.bf16.mxu0 0
      %2220 = vmatpush1.bf16.msra.mxu0 %v2165
      %2221 = vmatprep.subr.bf16.mxu0 0
      %2222 = vmatpush1.bf16.msra.mxu0 %v2166
      %2223 = vmatprep.subr.bf16.mxu0 0
      %2224 = vmatpush1.bf16.msra.mxu0 %v2167
      %2225 = vmatprep.subr.bf16.mxu0 0
      %2226 = vmatpush1.bf16.msra.mxu0 %v2168
      %2227 = vmatprep.subr.bf16.mxu0 0
      %2228 = vmatpush1.bf16.msra.mxu0 %v2169
      %2229 = vmatprep.subr.bf16.mxu0 0
      %2230 = vmatpush1.bf16.msra.mxu0 %v2170
      %2231 = vmatprep.subr.bf16.mxu0 0
      %2232 = vmatpush1.bf16.msra.mxu0 %v2171
      %2233 = vmatprep.subr.bf16.mxu0 0
      %2234 = vmatpush1.bf16.msra.mxu0 %v2172
      %2235 = vmatprep.subr.bf16.mxu0 0
      %2236 = vmatpush1.bf16.msra.mxu0 %v2173
      %2237 = vmatprep.subr.bf16.mxu0 0
      %2238 = vmatpush1.bf16.msra.mxu0 %v2174
      %2239 = vmatprep.mubr.bf16.mxu0 %v1450
      %2240 = vmatmul.mubr.bf16.gmra.mrb[0].mxu0 %v1449
      %v2241 = vpop.f32.mrb[0].mxu0
      %v2242 = vadd.f32 %v1937, %v2241
      %v2243 = vpop.f32.mrb[0].mxu0
      %v2244 = vpop.f32.mrb[0].mxu0
      %v2245 = vadd.f32 %v1940, %v2244
      %v2246 = vpop.f32.mrb[0].mxu0
      %2247 = vmatprep.mubr.bf16.mxu0 %v1453
      %2248 = vmatmul.mubr.bf16.gmra.mrb[0].mxu0 %v1452
      %v2249 = vpop.f32.mrb[0].mxu0
      %v2250 = vadd.f32 %v1945, %v2249
      %v2251 = vpop.f32.mrb[0].mxu0
      %v2252 = vpop.f32.mrb[0].mxu0
      %v2253 = vadd.f32 %v1948, %v2252
      %v2254 = vpop.f32.mrb[0].mxu0
      %2255 = vmatprep.mubr.bf16.mxu0 %v1456
      %2256 = vmatmul.mubr.bf16.gmra.mrb[0].mxu0 %v1455
      %v2257 = vpop.f32.mrb[0].mxu0
      %v2258 = vadd.f32 %v1953, %v2257
      %v2259 = vpop.f32.mrb[0].mxu0
      %v2260 = vpop.f32.mrb[0].mxu0
      %v2261 = vadd.f32 %v1956, %v2260
      %v2262 = vpop.f32.mrb[0].mxu0
      %2263 = vmatprep.mubr.bf16.mxu0 %v1459
      %2264 = vmatmul.mubr.bf16.gmra.mrb[0].mxu0 %v1458
      %v2265 = vpop.f32.mrb[0].mxu0
      %v2266 = vadd.f32 %v1961, %v2265
      %v2267 = vpop.f32.mrb[0].mxu0
      %v2268 = vpop.f32.mrb[0].mxu0
      %v2269 = vadd.f32 %v1964, %v2268
      %v2270 = vpop.f32.mrb[0].mxu0
      %2271 = vmatprep.mubr.bf16.mxu0 %v1462
      %2272 = vmatmul.mubr.bf16.gmra.mrb[0].mxu0 %v1461
      %v2273 = vpop.f32.mrb[0].mxu0
      %v2274 = vadd.f32 %v1969, %v2273
      %v2275 = vpop.f32.mrb[0].mxu0
      %v2276 = vpop.f32.mrb[0].mxu0
      %v2277 = vadd.f32 %v1972, %v2276
      %v2278 = vpop.f32.mrb[0].mxu0
      %2279 = vmatprep.mubr.bf16.mxu0 %v1465
      %2280 = vmatmul.mubr.bf16.gmra.mrb[0].mxu0 %v1464
      %v2281 = vpop.f32.mrb[0].mxu0
      %v2282 = vadd.f32 %v1977, %v2281
      %v2283 = vpop.f32.mrb[0].mxu0
      %v2284 = vpop.f32.mrb[0].mxu0
      %v2285 = vadd.f32 %v1980, %v2284
      %v2286 = vpop.f32.mrb[0].mxu0
      %2287 = vmatprep.mubr.bf16.mxu0 %v1468
      %2288 = vmatmul.mubr.bf16.gmra.mrb[0].mxu0 %v1467
      %v2289 = vpop.f32.mrb[0].mxu0
      %v2290 = vadd.f32 %v1985, %v2289
      %v2291 = vpop.f32.mrb[0].mxu0
      %v2292 = vpop.f32.mrb[0].mxu0
      %v2293 = vadd.f32 %v1988, %v2292
      %v2294 = vpop.f32.mrb[0].mxu0
      %2295 = vmatprep.mubr.bf16.mxu0 %v1471
      %2296 = vmatmul.mubr.bf16.gmra.mrb[0].mxu0 %v1470
      %v2297 = vpop.f32.mrb[0].mxu0
      %v2298 = vadd.f32 %v1993, %v2297
      %v2299 = vpop.f32.mrb[0].mxu0
      %v2300 = vpop.f32.mrb[0].mxu0
      %v2301 = vadd.f32 %v1996, %v2300
      %v2302 = vpop.f32.mrb[0].mxu0
      %2303 = vmatprep.mubr.bf16.mxu0 %v1474
      %2304 = vmatmul.mubr.bf16.gmra.mrb[0].mxu0 %v1473
      %v2305 = vpop.f32.mrb[0].mxu0
      %v2306 = vadd.f32 %v2001, %v2305
      %v2307 = vpop.f32.mrb[0].mxu0
      %v2308 = vpop.f32.mrb[0].mxu0
      %v2309 = vadd.f32 %v2004, %v2308
      %v2310 = vpop.f32.mrb[0].mxu0
      %2311 = vmatprep.mubr.bf16.mxu0 %v1477
      %2312 = vmatmul.mubr.bf16.gmra.mrb[0].mxu0 %v1476
      %v2313 = vpop.f32.mrb[0].mxu0
      %v2314 = vadd.f32 %v2009, %v2313
      %v2315 = vpop.f32.mrb[0].mxu0
      %v2316 = vpop.f32.mrb[0].mxu0
      %v2317 = vadd.f32 %v2012, %v2316
      %v2318 = vpop.f32.mrb[0].mxu0
      %2319 = vmatprep.mubr.bf16.mxu0 %v1480
      %2320 = vmatmul.mubr.bf16.gmra.mrb[0].mxu0 %v1479
      %v2321 = vpop.f32.mrb[0].mxu0
      %v2322 = vadd.f32 %v2017, %v2321
      %v2323 = vpop.f32.mrb[0].mxu0
      %v2324 = vpop.f32.mrb[0].mxu0
      %v2325 = vadd.f32 %v2020, %v2324
      %v2326 = vpop.f32.mrb[0].mxu0
      %2327 = vmatprep.mubr.bf16.mxu0 %v1483
      %2328 = vmatmul.mubr.bf16.gmra.mrb[0].mxu0 %v1482
      %v2329 = vpop.f32.mrb[0].mxu0
      %v2330 = vadd.f32 %v2025, %v2329
      %v2331 = vpop.f32.mrb[0].mxu0
      %v2332 = vpop.f32.mrb[0].mxu0
      %v2333 = vadd.f32 %v2028, %v2332
      %v2334 = vpop.f32.mrb[0].mxu0
      %2335 = vmatprep.mubr.bf16.mxu0 %v1486
      %2336 = vmatmul.mubr.bf16.gmra.mrb[0].mxu0 %v1485
      %v2337 = vpop.f32.mrb[0].mxu0
      %v2338 = vadd.f32 %v2033, %v2337
      %v2339 = vpop.f32.mrb[0].mxu0
      %v2340 = vpop.f32.mrb[0].mxu0
      %v2341 = vadd.f32 %v2036, %v2340
      %v2342 = vpop.f32.mrb[0].mxu0
      %2343 = vmatprep.mubr.bf16.mxu0 %v1489
      %2344 = vmatmul.mubr.bf16.gmra.mrb[0].mxu0 %v1488
      %v2345 = vpop.f32.mrb[0].mxu0
      %v2346 = vadd.f32 %v2041, %v2345
      %v2347 = vpop.f32.mrb[0].mxu0
      %v2348 = vpop.f32.mrb[0].mxu0
      %v2349 = vadd.f32 %v2044, %v2348
      %v2350 = vpop.f32.mrb[0].mxu0
      %2351 = vmatprep.mubr.bf16.mxu0 %v1492
      %2352 = vmatmul.mubr.bf16.gmra.mrb[0].mxu0 %v1491
      %v2353 = vpop.f32.mrb[0].mxu0
      %v2354 = vadd.f32 %v2049, %v2353
      %v2355 = vpop.f32.mrb[0].mxu0
      %v2356 = vpop.f32.mrb[0].mxu0
      %v2357 = vadd.f32 %v2052, %v2356
      %v2358 = vpop.f32.mrb[0].mxu0
      %2359 = vmatprep.mubr.bf16.mxu0 %v1495
      %2360 = vmatmul.mubr.bf16.gmra.mrb[0].mxu0 %v1494
      %v2361 = vpop.f32.mrb[0].mxu0
      %v2362 = vadd.f32 %v2057, %v2361
      %v2363 = vpop.f32.mrb[0].mxu0
      %v2364 = vpop.f32.mrb[0].mxu0
      %v2365 = vadd.f32 %v2060, %v2364
      %v2366 = vpop.f32.mrb[0].mxu0
      %2367 = vdwg.mxu0
      %2368 = vmatprep.subr.bf16.mxu0 0
      %2369 = vmatpush1.bf16.msra.mxu0 %v2175
      %2370 = vmatprep.subr.bf16.mxu0 0
      %2371 = vmatpush1.bf16.msra.mxu0 %v2176
      %2372 = vmatprep.subr.bf16.mxu0 0
      %2373 = vmatpush1.bf16.msra.mxu0 %v2177
      %2374 = vmatprep.subr.bf16.mxu0 0
      %2375 = vmatpush1.bf16.msra.mxu0 %v2178
      %2376 = vmatprep.subr.bf16.mxu0 0
      %2377 = vmatpush1.bf16.msra.mxu0 %v2179
      %2378 = vmatprep.subr.bf16.mxu0 0
      %2379 = vmatpush1.bf16.msra.mxu0 %v2180
      %2380 = vmatprep.subr.bf16.mxu0 0
      %2381 = vmatpush1.bf16.msra.mxu0 %v2181
      %2382 = vmatprep.subr.bf16.mxu0 0
      %2383 = vmatpush1.bf16.msra.mxu0 %v2182
      %2384 = vmatprep.subr.bf16.mxu0 0
      %2385 = vmatpush1.bf16.msra.mxu0 0
      %2386 = vmatprep.subr.bf16.mxu0 0
      %2387 = vmatpush1.bf16.msra.mxu0 0
      %2388 = vmatprep.subr.bf16.mxu0 0
      %2389 = vmatpush1.bf16.msra.mxu0 0
      %2390 = vmatprep.subr.bf16.mxu0 0
      %2391 = vmatpush1.bf16.msra.mxu0 0
      %2392 = vmatprep.subr.bf16.mxu0 0
      %2393 = vmatpush1.bf16.msra.mxu0 0
      %2394 = vmatprep.subr.bf16.mxu0 0
      %2395 = vmatpush1.bf16.msra.mxu0 0
      %2396 = vmatprep.subr.bf16.mxu0 0
      %2397 = vmatpush1.bf16.msra.mxu0 0
      %2398 = vmatprep.subr.bf16.mxu0 0
      %2399 = vmatpush1.bf16.msra.mxu0 0
      %2400 = vmatprep.mubr.bf16.mxu0 0
      %2401 = vmatmul.mubr.bf16.gmra.mrb[0].mxu0 %v1451
      %v2402 = vpop.f32.mrb[0].mxu0
      %v2403 = vadd.f32 %v2242, %v2402
      %v2404 = vpop.f32.mrb[0].mxu0
      %v2405 = vpop.f32.mrb[0].mxu0
      %v2406 = vadd.f32 %v2245, %v2405
      %v2407 = vpop.f32.mrb[0].mxu0
      %2408 = vmatprep.mubr.bf16.mxu0 0
      %2409 = vmatmul.mubr.bf16.gmra.mrb[0].mxu0 %v1454
      %v2410 = vpop.f32.mrb[0].mxu0
      %v2411 = vadd.f32 %v2250, %v2410
      %v2412 = vpop.f32.mrb[0].mxu0
      %v2413 = vpop.f32.mrb[0].mxu0
      %v2414 = vadd.f32 %v2253, %v2413
      %v2415 = vpop.f32.mrb[0].mxu0
      %2416 = vmatprep.mubr.bf16.mxu0 0
      %2417 = vmatmul.mubr.bf16.gmra.mrb[0].mxu0 %v1457
      %v2418 = vpop.f32.mrb[0].mxu0
      %v2419 = vadd.f32 %v2258, %v2418
      %v2420 = vpop.f32.mrb[0].mxu0
      %v2421 = vpop.f32.mrb[0].mxu0
      %v2422 = vadd.f32 %v2261, %v2421
      %v2423 = vpop.f32.mrb[0].mxu0
      %2424 = vmatprep.mubr.bf16.mxu0 0
      %2425 = vmatmul.mubr.bf16.gmra.mrb[0].mxu0 %v1460
      %v2426 = vpop.f32.mrb[0].mxu0
      %v2427 = vadd.f32 %v2266, %v2426
      %v2428 = vpop.f32.mrb[0].mxu0
      %v2429 = vpop.f32.mrb[0].mxu0
      %v2430 = vadd.f32 %v2269, %v2429
      %v2431 = vpop.f32.mrb[0].mxu0
      %2432 = vmatprep.mubr.bf16.mxu0 0
      %2433 = vmatmul.mubr.bf16.gmra.mrb[0].mxu0 %v1463
      %v2434 = vpop.f32.mrb[0].mxu0
      %v2435 = vadd.f32 %v2274, %v2434
      %v2436 = vpop.f32.mrb[0].mxu0
      %v2437 = vpop.f32.mrb[0].mxu0
      %v2438 = vadd.f32 %v2277, %v2437
      %v2439 = vpop.f32.mrb[0].mxu0
      %2440 = vmatprep.mubr.bf16.mxu0 0
      %2441 = vmatmul.mubr.bf16.gmra.mrb[0].mxu0 %v1466
      %v2442 = vpop.f32.mrb[0].mxu0
      %v2443 = vadd.f32 %v2282, %v2442
      %v2444 = vpop.f32.mrb[0].mxu0
      %v2445 = vpop.f32.mrb[0].mxu0
      %v2446 = vadd.f32 %v2285, %v2445
      %v2447 = vpop.f32.mrb[0].mxu0
      %2448 = vmatprep.mubr.bf16.mxu0 0
      %2449 = vmatmul.mubr.bf16.gmra.mrb[0].mxu0 %v1469
      %v2450 = vpop.f32.mrb[0].mxu0
      %v2451 = vadd.f32 %v2290, %v2450
      %v2452 = vpop.f32.mrb[0].mxu0
      %v2453 = vpop.f32.mrb[0].mxu0
      %v2454 = vadd.f32 %v2293, %v2453
      %v2455 = vpop.f32.mrb[0].mxu0
      %2456 = vmatprep.mubr.bf16.mxu0 0
      %2457 = vmatmul.mubr.bf16.gmra.mrb[0].mxu0 %v1472
      %v2458 = vpop.f32.mrb[0].mxu0
      %v2459 = vadd.f32 %v2298, %v2458
      %v2460 = vpop.f32.mrb[0].mxu0
      %v2461 = vpop.f32.mrb[0].mxu0
      %v2462 = vadd.f32 %v2301, %v2461
      %v2463 = vpop.f32.mrb[0].mxu0
      %2464 = vmatprep.mubr.bf16.mxu0 0
      %2465 = vmatmul.mubr.bf16.gmra.mrb[0].mxu0 %v1475
      %v2466 = vpop.f32.mrb[0].mxu0
      %v2467 = vadd.f32 %v2306, %v2466
      %v2468 = vpop.f32.mrb[0].mxu0
      %v2469 = vpop.f32.mrb[0].mxu0
      %v2470 = vadd.f32 %v2309, %v2469
      %v2471 = vpop.f32.mrb[0].mxu0
      %2472 = vmatprep.mubr.bf16.mxu0 0
      %2473 = vmatmul.mubr.bf16.gmra.mrb[0].mxu0 %v1478
      %v2474 = vpop.f32.mrb[0].mxu0
      %v2475 = vadd.f32 %v2314, %v2474
      %v2476 = vpop.f32.mrb[0].mxu0
      %v2477 = vpop.f32.mrb[0].mxu0
      %v2478 = vadd.f32 %v2317, %v2477
      %v2479 = vpop.f32.mrb[0].mxu0
      %2480 = vmatprep.mubr.bf16.mxu0 0
      %2481 = vmatmul.mubr.bf16.gmra.mrb[0].mxu0 %v1481
      %v2482 = vpop.f32.mrb[0].mxu0
      %v2483 = vadd.f32 %v2322, %v2482
      %v2484 = vpop.f32.mrb[0].mxu0
      %v2485 = vpop.f32.mrb[0].mxu0
      %v2486 = vadd.f32 %v2325, %v2485
      %v2487 = vpop.f32.mrb[0].mxu0
      %2488 = vmatprep.mubr.bf16.mxu0 0
      %2489 = vmatmul.mubr.bf16.gmra.mrb[0].mxu0 %v1484
      %v2490 = vpop.f32.mrb[0].mxu0
      %v2491 = vadd.f32 %v2330, %v2490
      %v2492 = vpop.f32.mrb[0].mxu0
      %v2493 = vpop.f32.mrb[0].mxu0
      %v2494 = vadd.f32 %v2333, %v2493
      %v2495 = vpop.f32.mrb[0].mxu0
      %2496 = vmatprep.mubr.bf16.mxu0 0
      %2497 = vmatmul.mubr.bf16.gmra.mrb[0].mxu0 %v1487
      %v2498 = vpop.f32.mrb[0].mxu0
      %v2499 = vadd.f32 %v2338, %v2498
      %v2500 = vpop.f32.mrb[0].mxu0
      %v2501 = vpop.f32.mrb[0].mxu0
      %v2502 = vadd.f32 %v2341, %v2501
      %v2503 = vpop.f32.mrb[0].mxu0
      %2504 = vmatprep.mubr.bf16.mxu0 0
      %2505 = vmatmul.mubr.bf16.gmra.mrb[0].mxu0 %v1490
      %v2506 = vpop.f32.mrb[0].mxu0
      %v2507 = vadd.f32 %v2346, %v2506
      %v2508 = vpop.f32.mrb[0].mxu0
      %v2509 = vpop.f32.mrb[0].mxu0
      %v2510 = vadd.f32 %v2349, %v2509
      %v2511 = vpop.f32.mrb[0].mxu0
      %2512 = vmatprep.mubr.bf16.mxu0 0
      %2513 = vmatmul.mubr.bf16.gmra.mrb[0].mxu0 %v1493
      %v2514 = vpop.f32.mrb[0].mxu0
      %v2515 = vadd.f32 %v2354, %v2514
      %v2516 = vpop.f32.mrb[0].mxu0
      %v2517 = vpop.f32.mrb[0].mxu0
      %v2518 = vadd.f32 %v2357, %v2517
      %v2519 = vpop.f32.mrb[0].mxu0
      %2520 = vmatprep.mubr.bf16.mxu0 0
      %2521 = vmatmul.mubr.bf16.gmra.mrb[0].mxu0 %v1496
      %v2522 = vpop.f32.mrb[0].mxu0
      %v2523 = vadd.f32 %v2362, %v2522
      %v2524 = vpop.f32.mrb[0].mxu0
      %v2525 = vpop.f32.mrb[0].mxu0
      %v2526 = vadd.f32 %v2365, %v2525
      %v2527 = vpop.f32.mrb[0].mxu0
      %2528 = vdwg.mxu0
      %v2529 = vld [vmem:[#allocation2 + $0x30] sm:$0xff]
      %v2530 = vld [vmem:[#allocation2 + $0x38] sm:$0xff]
      %v2531 = vld [vmem:[#allocation2 + $0x40] sm:$0xff]
      %v2532 = vld [vmem:[#allocation2 + $0x48] sm:$0xff]
      %v2533 = vld [vmem:[#allocation2 + $0x50] sm:$0xff]
      %v2534 = vld [vmem:[#allocation2 + $0x58] sm:$0xff]
      %v2535 = vld [vmem:[#allocation2 + $0x60] sm:$0xff]
      %v2536 = vld [vmem:[#allocation2 + $0x68] sm:$0xff]
      %v2537 = vld [vmem:[#allocation2 + $0x70] sm:$0xff]
      %v2538 = vld [vmem:[#allocation2 + $0x78] sm:$0xff]
      %v2539 = vld [vmem:[#allocation2 + $0x80] sm:$0xff]
      %v2540 = vld [vmem:[#allocation2 + $0x88] sm:$0xff]
      %v2541 = vld [vmem:[#allocation2 + $0x90] sm:$0xff]
      %v2542 = vld [vmem:[#allocation2 + $0x98] sm:$0xff]
      %v2543 = vld [vmem:[#allocation2 + $0xa0] sm:$0xff]
      %v2544 = vld [vmem:[#allocation2 + $0xa8] sm:$0xff]
      %v2545 = vld [vmem:[#allocation2 + $0xb0] sm:$0xff]
      %v2546 = vld [vmem:[#allocation2 + $0xb8] sm:$0xff]
      %v2547 = vld [vmem:[#allocation2 + $0xc0] sm:$0xff]
      %v2548 = vld [vmem:[#allocation2 + $0xc8] sm:$0xff]
      %v2549 = vld [vmem:[#allocation2 + $0xd0] sm:$0xff]
      %v2550 = vld [vmem:[#allocation2 + $0xd8] sm:$0xff]
      %v2551 = vld [vmem:[#allocation2 + $0xe0] sm:$0xff]
      %v2552 = vld [vmem:[#allocation2 + $0xe8] sm:$0xff]
      %v2553 = vld [vmem:[#allocation2 + $0xf0] sm:$0xff]
      %v2554 = vld [vmem:[#allocation2 + $0xf8] sm:$0xff]
      %v2555 = vld [vmem:[#allocation2 + $0x100] sm:$0xff]
      %v2556 = vld [vmem:[#allocation2 + $0x108] sm:$0xff]
      %v2557 = vld [vmem:[#allocation2 + $0x110] sm:$0xff]
      %v2558 = vld [vmem:[#allocation2 + $0x118] sm:$0xff]
      %v2559 = vld [vmem:[#allocation2 + $0x120] sm:$0xff]
      %v2560 = vld [vmem:[#allocation2 + $0x128] sm:$0xff]
      %v2561 = vld [vmem:[#allocation2 + $0x130] sm:$0xff]
      %v2562 = vld [vmem:[#allocation2 + $0x138] sm:$0xff]
      %v2563 = vld [vmem:[#allocation2 + $0x140] sm:$0xff]
      %v2564 = vld [vmem:[#allocation2 + $0x148] sm:$0xff]
      %v2565 = vld [vmem:[#allocation2 + $0x150] sm:$0xff]
      %v2566 = vld [vmem:[#allocation2 + $0x158] sm:$0xff]
      %v2567 = vld [vmem:[#allocation2 + $0x160] sm:$0xff]
      %v2568 = vld [vmem:[#allocation2 + $0x168] sm:$0xff]
      %v2569 = vld [vmem:[#allocation2 + $0x170] sm:$0xff]
      %v2570 = vld [vmem:[#allocation2 + $0x178] sm:$0xff]
      %v2571 = vld [vmem:[#allocation2 + $0x180] sm:$0xff]
      %v2572 = vld [vmem:[#allocation2 + $0x188] sm:$0xff]
      %v2573 = vld [vmem:[#allocation2 + $0x190] sm:$0xff]
      %v2574 = vld [vmem:[#allocation2 + $0x198] sm:$0xff]
      %v2575 = vld [vmem:[#allocation2 + $0x1a0] sm:$0xff]
      %v2576 = vld [vmem:[#allocation2 + $0x1a8] sm:$0xff]
      %s2577 = scalar_lea.vmem %s3, 384
      %v2578 = vld [vmem:[%s2577] sm:$0xf]
      %v2579 = vld [vmem:[%s2577 + $0x4] sm:$0xf]
      %v2580 = vld [vmem:[%s2577 + $0x8] sm:$0xf]
      %v2581 = vld [vmem:[%s2577 + $0xc] sm:$0xf]
      %v2582 = vld [vmem:[%s2577 + $0x10] sm:$0xf]
      %v2583 = vld [vmem:[%s2577 + $0x14] sm:$0xf]
      %v2584 = vld [vmem:[%s2577 + $0x18] sm:$0xf]
      %v2585 = vld [vmem:[%s2577 + $0x1c] sm:$0xf]
      %v2586 = vld [vmem:[%s2577 + $0x20] sm:$0xf]
      %v2587 = vld [vmem:[%s2577 + $0x24] sm:$0xf]
      %v2588 = vld [vmem:[%s2577 + $0x28] sm:$0xf]
      %v2589 = vld [vmem:[%s2577 + $0x2c] sm:$0xf]
      %v2590 = vld [vmem:[%s2577 + $0x30] sm:$0xf]
      %v2591 = vld [vmem:[%s2577 + $0x34] sm:$0xf]
      %v2592 = vld [vmem:[%s2577 + $0x38] sm:$0xf]
      %v2593 = vld [vmem:[%s2577 + $0x3c] sm:$0xf]
      %v2594 = vld [vmem:[%s2577 + $0x40] sm:$0xf]
      %v2595 = vld [vmem:[%s2577 + $0x44] sm:$0xf]
      %v2596 = vld [vmem:[%s2577 + $0x48] sm:$0xf]
      %v2597 = vld [vmem:[%s2577 + $0x4c] sm:$0xf]
      %v2598 = vld [vmem:[%s2577 + $0x50] sm:$0xf]
      %v2599 = vld [vmem:[%s2577 + $0x54] sm:$0xf]
      %v2600 = vld [vmem:[%s2577 + $0x58] sm:$0xf]
      %v2601 = vld [vmem:[%s2577 + $0x5c] sm:$0xf]
      %v2602 = vld [vmem:[%s2577 + $0x60] sm:$0xf]
      %v2603 = vld [vmem:[%s2577 + $0x64] sm:$0xf]
      %v2604 = vld [vmem:[%s2577 + $0x68] sm:$0xf]
      %v2605 = vld [vmem:[%s2577 + $0x6c] sm:$0xf]
      %v2606 = vld [vmem:[%s2577 + $0x70] sm:$0xf]
      %v2607 = vld [vmem:[%s2577 + $0x74] sm:$0xf]
      %v2608 = vld [vmem:[%s2577 + $0x78] sm:$0xf]
      %v2609 = vld [vmem:[%s2577 + $0x7c] sm:$0xf]
      %v2610 = vld [vmem:[%s2577 + $0x80] sm:$0xf]
      %v2611 = vld [vmem:[%s2577 + $0x84] sm:$0xf]
      %v2612 = vld [vmem:[%s2577 + $0x88] sm:$0xf]
      %v2613 = vld [vmem:[%s2577 + $0x8c] sm:$0xf]
      %v2614 = vld [vmem:[%s2577 + $0x90] sm:$0xf]
      %v2615 = vld [vmem:[%s2577 + $0x94] sm:$0xf]
      %v2616 = vld [vmem:[%s2577 + $0x98] sm:$0xf]
      %v2617 = vld [vmem:[%s2577 + $0x9c] sm:$0xf]
      %v2618 = vld [vmem:[%s2577 + $0xa0] sm:$0xf]
      %v2619 = vld [vmem:[%s2577 + $0xa4] sm:$0xf]
      %v2620 = vld [vmem:[%s2577 + $0xa8] sm:$0xf]
      %v2621 = vld [vmem:[%s2577 + $0xac] sm:$0xf]
      %v2622 = vld [vmem:[%s2577 + $0xb0] sm:$0xf]
      %v2623 = vld [vmem:[%s2577 + $0xb4] sm:$0xf]
      %v2624 = vld [vmem:[%s2577 + $0xb8] sm:$0xf]
      %v2625 = vld [vmem:[%s2577 + $0xbc] sm:$0xf]
      %v2674 = vunpack.c.l.b16 %v2578
      %v2675 = vunpack.c.l.b16 %v2579
      %v2676 = vunpack.c.l.b16 %v2580
      %v2677 = vunpack.c.l.b16 %v2581
      %v2678 = vunpack.c.l.b16 %v2582
      %v2679 = vunpack.c.l.b16 %v2583
      %v2680 = vunpack.c.l.b16 %v2584
      %v2681 = vunpack.c.l.b16 %v2585
      %v2682 = vunpack.c.l.b16 %v2586
      %v2683 = vunpack.c.l.b16 %v2587
      %v2684 = vunpack.c.l.b16 %v2588
      %v2685 = vunpack.c.l.b16 %v2589
      %v2686 = vunpack.c.l.b16 %v2590
      %v2687 = vunpack.c.l.b16 %v2591
      %v2688 = vunpack.c.l.b16 %v2592
      %v2689 = vunpack.c.l.b16 %v2593
      %v2690 = vunpack.c.l.b16 %v2594
      %v2691 = vunpack.c.l.b16 %v2595
      %v2692 = vunpack.c.l.b16 %v2596
      %v2693 = vunpack.c.l.b16 %v2597
      %v2694 = vunpack.c.l.b16 %v2598
      %v2695 = vunpack.c.l.b16 %v2599
      %v2696 = vunpack.c.l.b16 %v2600
      %v2697 = vunpack.c.l.b16 %v2601
      %v2698 = vunpack.c.l.b16 %v2602
      %v2699 = vunpack.c.l.b16 %v2603
      %v2700 = vunpack.c.l.b16 %v2604
      %v2701 = vunpack.c.l.b16 %v2605
      %v2702 = vunpack.c.l.b16 %v2606
      %v2703 = vunpack.c.l.b16 %v2607
      %v2704 = vunpack.c.l.b16 %v2608
      %v2705 = vunpack.c.l.b16 %v2609
      %v2706 = vunpack.c.l.b16 %v2610
      %v2707 = vunpack.c.l.b16 %v2611
      %v2708 = vunpack.c.l.b16 %v2612
      %v2709 = vunpack.c.l.b16 %v2613
      %v2710 = vunpack.c.l.b16 %v2614
      %v2711 = vunpack.c.l.b16 %v2615
      %v2712 = vunpack.c.l.b16 %v2616
      %v2713 = vunpack.c.l.b16 %v2617
      %v2714 = vunpack.c.l.b16 %v2618
      %v2715 = vunpack.c.l.b16 %v2619
      %v2716 = vunpack.c.l.b16 %v2620
      %v2717 = vunpack.c.l.b16 %v2621
      %v2718 = vunpack.c.l.b16 %v2622
      %v2719 = vunpack.c.l.b16 %v2623
      %v2720 = vunpack.c.l.b16 %v2624
      %v2721 = vunpack.c.l.b16 %v2625
      %v2722 = vpack.c.b16 %v2675, %v2674
      %v2723 = vpack.c.b16 %v2677, %v2676
      %v2724 = vpack.c.b16 %v2679, %v2678
      %v2725 = vpack.c.b16 %v2681, %v2680
      %v2726 = vpack.c.b16 %v2683, %v2682
      %v2727 = vpack.c.b16 %v2685, %v2684
      %v2728 = vpack.c.b16 %v2687, %v2686
      %v2729 = vpack.c.b16 %v2689, %v2688
      %v2730 = vpack.c.b16 %v2691, %v2690
      %v2731 = vpack.c.b16 %v2693, %v2692
      %v2732 = vpack.c.b16 %v2695, %v2694
      %v2733 = vpack.c.b16 %v2697, %v2696
      %v2734 = vpack.c.b16 %v2699, %v2698
      %v2735 = vpack.c.b16 %v2701, %v2700
      %v2736 = vpack.c.b16 %v2703, %v2702
      %v2737 = vpack.c.b16 %v2705, %v2704
      %v2738 = vpack.c.b16 %v2707, %v2706
      %v2739 = vpack.c.b16 %v2709, %v2708
      %v2740 = vpack.c.b16 %v2711, %v2710
      %v2741 = vpack.c.b16 %v2713, %v2712
      %v2742 = vpack.c.b16 %v2715, %v2714
      %v2743 = vpack.c.b16 %v2717, %v2716
      %v2744 = vpack.c.b16 %v2719, %v2718
      %v2745 = vpack.c.b16 %v2721, %v2720
      %2770 = vmatprep.subr.bf16.mxu0 0
      %2771 = vmatpush1.bf16.msra.mxu0 %v2722
      %2772 = vmatprep.subr.bf16.mxu0 0
      %2773 = vmatpush1.bf16.msra.mxu0 %v2723
      %2774 = vmatprep.subr.bf16.mxu0 0
      %2775 = vmatpush1.bf16.msra.mxu0 %v2724
      %2776 = vmatprep.subr.bf16.mxu0 0
      %2777 = vmatpush1.bf16.msra.mxu0 %v2725
      %2778 = vmatprep.subr.bf16.mxu0 0
      %2779 = vmatpush1.bf16.msra.mxu0 %v2726
      %2780 = vmatprep.subr.bf16.mxu0 0
      %2781 = vmatpush1.bf16.msra.mxu0 %v2727
      %2782 = vmatprep.subr.bf16.mxu0 0
      %2783 = vmatpush1.bf16.msra.mxu0 %v2728
      %2784 = vmatprep.subr.bf16.mxu0 0
      %2785 = vmatpush1.bf16.msra.mxu0 %v2729
      %2786 = vmatprep.subr.bf16.mxu0 0
      %2787 = vmatpush1.bf16.msra.mxu0 %v2730
      %2788 = vmatprep.subr.bf16.mxu0 0
      %2789 = vmatpush1.bf16.msra.mxu0 %v2731
      %2790 = vmatprep.subr.bf16.mxu0 0
      %2791 = vmatpush1.bf16.msra.mxu0 %v2732
      %2792 = vmatprep.subr.bf16.mxu0 0
      %2793 = vmatpush1.bf16.msra.mxu0 %v2733
      %2794 = vmatprep.subr.bf16.mxu0 0
      %2795 = vmatpush1.bf16.msra.mxu0 %v2734
      %2796 = vmatprep.subr.bf16.mxu0 0
      %2797 = vmatpush1.bf16.msra.mxu0 %v2735
      %2798 = vmatprep.subr.bf16.mxu0 0
      %2799 = vmatpush1.bf16.msra.mxu0 %v2736
      %2800 = vmatprep.subr.bf16.mxu0 0
      %2801 = vmatpush1.bf16.msra.mxu0 %v2737
      %2802 = vmatprep.mubr.bf16.mxu0 %v2530
      %2803 = vmatmul.mubr.bf16.gmra.mrb[0].mxu0 %v2529
      %v2804 = vpop.f32.mrb[0].mxu0
      %v2805 = vadd.f32 0.0, %v2804
      %v2806 = vpop.f32.mrb[0].mxu0
      %v2807 = vpop.f32.mrb[0].mxu0
      %v2808 = vadd.f32 0.0, %v2807
      %v2809 = vpop.f32.mrb[0].mxu0
      %2810 = vmatprep.mubr.bf16.mxu0 %v2533
      %2811 = vmatmul.mubr.bf16.gmra.mrb[0].mxu0 %v2532
      %v2812 = vpop.f32.mrb[0].mxu0
      %v2813 = vadd.f32 0.0, %v2812
      %v2814 = vpop.f32.mrb[0].mxu0
      %v2815 = vpop.f32.mrb[0].mxu0
      %v2816 = vadd.f32 0.0, %v2815
      %v2817 = vpop.f32.mrb[0].mxu0
      %2818 = vmatprep.mubr.bf16.mxu0 %v2536
      %2819 = vmatmul.mubr.bf16.gmra.mrb[0].mxu0 %v2535
      %v2820 = vpop.f32.mrb[0].mxu0
      %v2821 = vadd.f32 0.0, %v2820
      %v2822 = vpop.f32.mrb[0].mxu0
      %v2823 = vpop.f32.mrb[0].mxu0
      %v2824 = vadd.f32 0.0, %v2823
      %v2825 = vpop.f32.mrb[0].mxu0
      %2826 = vmatprep.mubr.bf16.mxu0 %v2539
      %2827 = vmatmul.mubr.bf16.gmra.mrb[0].mxu0 %v2538
      %v2828 = vpop.f32.mrb[0].mxu0
      %v2829 = vadd.f32 0.0, %v2828
      %v2830 = vpop.f32.mrb[0].mxu0
      %v2831 = vpop.f32.mrb[0].mxu0
      %v2832 = vadd.f32 0.0, %v2831
      %v2833 = vpop.f32.mrb[0].mxu0
      %2834 = vmatprep.mubr.bf16.mxu0 %v2542
      %2835 = vmatmul.mubr.bf16.gmra.mrb[0].mxu0 %v2541
      %v2836 = vpop.f32.mrb[0].mxu0
      %v2837 = vadd.f32 0.0, %v2836
      %v2838 = vpop.f32.mrb[0].mxu0
      %v2839 = vpop.f32.mrb[0].mxu0
      %v2840 = vadd.f32 0.0, %v2839
      %v2841 = vpop.f32.mrb[0].mxu0
      %2842 = vmatprep.mubr.bf16.mxu0 %v2545
      %2843 = vmatmul.mubr.bf16.gmra.mrb[0].mxu0 %v2544
      %v2844 = vpop.f32.mrb[0].mxu0
      %v2845 = vadd.f32 0.0, %v2844
      %v2846 = vpop.f32.mrb[0].mxu0
      %v2847 = vpop.f32.mrb[0].mxu0
      %v2848 = vadd.f32 0.0, %v2847
      %v2849 = vpop.f32.mrb[0].mxu0
      %2850 = vmatprep.mubr.bf16.mxu0 %v2548
      %2851 = vmatmul.mubr.bf16.gmra.mrb[0].mxu0 %v2547
      %v2852 = vpop.f32.mrb[0].mxu0
      %v2853 = vadd.f32 0.0, %v2852
      %v2854 = vpop.f32.mrb[0].mxu0
      %v2855 = vpop.f32.mrb[0].mxu0
      %v2856 = vadd.f32 0.0, %v2855
      %v2857 = vpop.f32.mrb[0].mxu0
      %2858 = vmatprep.mubr.bf16.mxu0 %v2551
      %2859 = vmatmul.mubr.bf16.gmra.mrb[0].mxu0 %v2550
      %v2860 = vpop.f32.mrb[0].mxu0
      %v2861 = vadd.f32 0.0, %v2860
      %v2862 = vpop.f32.mrb[0].mxu0
      %v2863 = vpop.f32.mrb[0].mxu0
      %v2864 = vadd.f32 0.0, %v2863
      %v2865 = vpop.f32.mrb[0].mxu0
      %2866 = vmatprep.mubr.bf16.mxu0 %v2554
      %2867 = vmatmul.mubr.bf16.gmra.mrb[0].mxu0 %v2553
      %v2868 = vpop.f32.mrb[0].mxu0
      %v2869 = vadd.f32 0.0, %v2868
      %v2870 = vpop.f32.mrb[0].mxu0
      %v2871 = vpop.f32.mrb[0].mxu0
      %v2872 = vadd.f32 0.0, %v2871
      %v2873 = vpop.f32.mrb[0].mxu0
      %2874 = vmatprep.mubr.bf16.mxu0 %v2557
      %2875 = vmatmul.mubr.bf16.gmra.mrb[0].mxu0 %v2556
      %v2876 = vpop.f32.mrb[0].mxu0
      %v2877 = vadd.f32 0.0, %v2876
      %v2878 = vpop.f32.mrb[0].mxu0
      %v2879 = vpop.f32.mrb[0].mxu0
      %v2880 = vadd.f32 0.0, %v2879
      %v2881 = vpop.f32.mrb[0].mxu0
      %2882 = vmatprep.mubr.bf16.mxu0 %v2560
      %2883 = vmatmul.mubr.bf16.gmra.mrb[0].mxu0 %v2559
      %v2884 = vpop.f32.mrb[0].mxu0
      %v2885 = vadd.f32 0.0, %v2884
      %v2886 = vpop.f32.mrb[0].mxu0
      %v2887 = vpop.f32.mrb[0].mxu0
      %v2888 = vadd.f32 0.0, %v2887
      %v2889 = vpop.f32.mrb[0].mxu0
      %2890 = vmatprep.mubr.bf16.mxu0 %v2563
      %2891 = vmatmul.mubr.bf16.gmra.mrb[0].mxu0 %v2562
      %v2892 = vpop.f32.mrb[0].mxu0
      %v2893 = vadd.f32 0.0, %v2892
      %v2894 = vpop.f32.mrb[0].mxu0
      %v2895 = vpop.f32.mrb[0].mxu0
      %v2896 = vadd.f32 0.0, %v2895
      %v2897 = vpop.f32.mrb[0].mxu0
      %2898 = vmatprep.mubr.bf16.mxu0 %v2566
      %2899 = vmatmul.mubr.bf16.gmra.mrb[0].mxu0 %v2565
      %v2900 = vpop.f32.mrb[0].mxu0
      %v2901 = vadd.f32 0.0, %v2900
      %v2902 = vpop.f32.mrb[0].mxu0
      %v2903 = vpop.f32.mrb[0].mxu0
      %v2904 = vadd.f32 0.0, %v2903
      %v2905 = vpop.f32.mrb[0].mxu0
      %2906 = vmatprep.mubr.bf16.mxu0 %v2569
      %2907 = vmatmul.mubr.bf16.gmra.mrb[0].mxu0 %v2568
      %v2908 = vpop.f32.mrb[0].mxu0
      %v2909 = vadd.f32 0.0, %v2908
      %v2910 = vpop.f32.mrb[0].mxu0
      %v2911 = vpop.f32.mrb[0].mxu0
      %v2912 = vadd.f32 0.0, %v2911
      %v2913 = vpop.f32.mrb[0].mxu0
      %2914 = vmatprep.mubr.bf16.mxu0 %v2572
      %2915 = vmatmul.mubr.bf16.gmra.mrb[0].mxu0 %v2571
      %v2916 = vpop.f32.mrb[0].mxu0
      %v2917 = vadd.f32 0.0, %v2916
      %v2918 = vpop.f32.mrb[0].mxu0
      %v2919 = vpop.f32.mrb[0].mxu0
      %v2920 = vadd.f32 0.0, %v2919
      %v2921 = vpop.f32.mrb[0].mxu0
      %2922 = vmatprep.mubr.bf16.mxu0 %v2575
      %2923 = vmatmul.mubr.bf16.gmra.mrb[0].mxu0 %v2574
      %v2924 = vpop.f32.mrb[0].mxu0
      %v2925 = vadd.f32 0.0, %v2924
      %v2926 = vpop.f32.mrb[0].mxu0
      %v2927 = vpop.f32.mrb[0].mxu0
      %v2928 = vadd.f32 0.0, %v2927
      %v2929 = vpop.f32.mrb[0].mxu0
      %2930 = vdwg.mxu0
      %2931 = vmatprep.subr.bf16.mxu0 0
      %2932 = vmatpush1.bf16.msra.mxu0 %v2738
      %2933 = vmatprep.subr.bf16.mxu0 0
      %2934 = vmatpush1.bf16.msra.mxu0 %v2739
      %2935 = vmatprep.subr.bf16.mxu0 0
      %2936 = vmatpush1.bf16.msra.mxu0 %v2740
      %2937 = vmatprep.subr.bf16.mxu0 0
      %2938 = vmatpush1.bf16.msra.mxu0 %v2741
      %2939 = vmatprep.subr.bf16.mxu0 0
      %2940 = vmatpush1.bf16.msra.mxu0 %v2742
      %2941 = vmatprep.subr.bf16.mxu0 0
      %2942 = vmatpush1.bf16.msra.mxu0 %v2743
      %2943 = vmatprep.subr.bf16.mxu0 0
      %2944 = vmatpush1.bf16.msra.mxu0 %v2744
      %2945 = vmatprep.subr.bf16.mxu0 0
      %2946 = vmatpush1.bf16.msra.mxu0 %v2745
      %2947 = vmatprep.subr.bf16.mxu0 0
      %2948 = vmatpush1.bf16.msra.mxu0 0
      %2949 = vmatprep.subr.bf16.mxu0 0
      %2950 = vmatpush1.bf16.msra.mxu0 0
      %2951 = vmatprep.subr.bf16.mxu0 0
      %2952 = vmatpush1.bf16.msra.mxu0 0
      %2953 = vmatprep.subr.bf16.mxu0 0
      %2954 = vmatpush1.bf16.msra.mxu0 0
      %2955 = vmatprep.subr.bf16.mxu0 0
      %2956 = vmatpush1.bf16.msra.mxu0 0
      %2957 = vmatprep.subr.bf16.mxu0 0
      %2958 = vmatpush1.bf16.msra.mxu0 0
      %2959 = vmatprep.subr.bf16.mxu0 0
      %2960 = vmatpush1.bf16.msra.mxu0 0
      %2961 = vmatprep.subr.bf16.mxu0 0
      %2962 = vmatpush1.bf16.msra.mxu0 0
      %2963 = vmatprep.mubr.bf16.mxu0 0
      %2964 = vmatmul.mubr.bf16.gmra.mrb[0].mxu0 %v2531
      %v2965 = vpop.f32.mrb[0].mxu0
      %v2966 = vadd.f32 %v2805, %v2965
      %v2967 = vpop.f32.mrb[0].mxu0
      %v2968 = vpop.f32.mrb[0].mxu0
      %v2969 = vadd.f32 %v2808, %v2968
      %v2970 = vpop.f32.mrb[0].mxu0
      %2971 = vmatprep.mubr.bf16.mxu0 0
      %2972 = vmatmul.mubr.bf16.gmra.mrb[0].mxu0 %v2534
      %v2973 = vpop.f32.mrb[0].mxu0
      %v2974 = vadd.f32 %v2813, %v2973
      %v2975 = vpop.f32.mrb[0].mxu0
      %v2976 = vpop.f32.mrb[0].mxu0
      %v2977 = vadd.f32 %v2816, %v2976
      %v2978 = vpop.f32.mrb[0].mxu0
      %2979 = vmatprep.mubr.bf16.mxu0 0
      %2980 = vmatmul.mubr.bf16.gmra.mrb[0].mxu0 %v2537
      %v2981 = vpop.f32.mrb[0].mxu0
      %v2982 = vadd.f32 %v2821, %v2981
      %v2983 = vpop.f32.mrb[0].mxu0
      %v2984 = vpop.f32.mrb[0].mxu0
      %v2985 = vadd.f32 %v2824, %v2984
      %v2986 = vpop.f32.mrb[0].mxu0
      %2987 = vmatprep.mubr.bf16.mxu0 0
      %2988 = vmatmul.mubr.bf16.gmra.mrb[0].mxu0 %v2540
      %v2989 = vpop.f32.mrb[0].mxu0
      %v2990 = vadd.f32 %v2829, %v2989
      %v2991 = vpop.f32.mrb[0].mxu0
      %v2992 = vpop.f32.mrb[0].mxu0
      %v2993 = vadd.f32 %v2832, %v2992
      %v2994 = vpop.f32.mrb[0].mxu0
      %2995 = vmatprep.mubr.bf16.mxu0 0
      %2996 = vmatmul.mubr.bf16.gmra.mrb[0].mxu0 %v2543
      %v2997 = vpop.f32.mrb[0].mxu0
      %v2998 = vadd.f32 %v2837, %v2997
      %v2999 = vpop.f32.mrb[0].mxu0
      %v3000 = vpop.f32.mrb[0].mxu0
      %v3001 = vadd.f32 %v2840, %v3000
      %v3002 = vpop.f32.mrb[0].mxu0
      %3003 = vmatprep.mubr.bf16.mxu0 0
      %3004 = vmatmul.mubr.bf16.gmra.mrb[0].mxu0 %v2546
      %v3005 = vpop.f32.mrb[0].mxu0
      %v3006 = vadd.f32 %v2845, %v3005
      %v3007 = vpop.f32.mrb[0].mxu0
      %v3008 = vpop.f32.mrb[0].mxu0
      %v3009 = vadd.f32 %v2848, %v3008
      %v3010 = vpop.f32.mrb[0].mxu0
      %3011 = vmatprep.mubr.bf16.mxu0 0
      %3012 = vmatmul.mubr.bf16.gmra.mrb[0].mxu0 %v2549
      %v3013 = vpop.f32.mrb[0].mxu0
      %v3014 = vadd.f32 %v2853, %v3013
      %v3015 = vpop.f32.mrb[0].mxu0
      %v3016 = vpop.f32.mrb[0].mxu0
      %v3017 = vadd.f32 %v2856, %v3016
      %v3018 = vpop.f32.mrb[0].mxu0
      %3019 = vmatprep.mubr.bf16.mxu0 0
      %3020 = vmatmul.mubr.bf16.gmra.mrb[0].mxu0 %v2552
      %v3021 = vpop.f32.mrb[0].mxu0
      %v3022 = vadd.f32 %v2861, %v3021
      %v3023 = vpop.f32.mrb[0].mxu0
      %v3024 = vpop.f32.mrb[0].mxu0
      %v3025 = vadd.f32 %v2864, %v3024
      %v3026 = vpop.f32.mrb[0].mxu0
      %3027 = vmatprep.mubr.bf16.mxu0 0
      %3028 = vmatmul.mubr.bf16.gmra.mrb[0].mxu0 %v2555
      %v3029 = vpop.f32.mrb[0].mxu0
      %v3030 = vadd.f32 %v2869, %v3029
      %v3031 = vpop.f32.mrb[0].mxu0
      %v3032 = vpop.f32.mrb[0].mxu0
      %v3033 = vadd.f32 %v2872, %v3032
      %v3034 = vpop.f32.mrb[0].mxu0
      %3035 = vmatprep.mubr.bf16.mxu0 0
      %3036 = vmatmul.mubr.bf16.gmra.mrb[0].mxu0 %v2558
      %v3037 = vpop.f32.mrb[0].mxu0
      %v3038 = vadd.f32 %v2877, %v3037
      %v3039 = vpop.f32.mrb[0].mxu0
      %v3040 = vpop.f32.mrb[0].mxu0
      %v3041 = vadd.f32 %v2880, %v3040
      %v3042 = vpop.f32.mrb[0].mxu0
      %3043 = vmatprep.mubr.bf16.mxu0 0
      %3044 = vmatmul.mubr.bf16.gmra.mrb[0].mxu0 %v2561
      %v3045 = vpop.f32.mrb[0].mxu0
      %v3046 = vadd.f32 %v2885, %v3045
      %v3047 = vpop.f32.mrb[0].mxu0
      %v3048 = vpop.f32.mrb[0].mxu0
      %v3049 = vadd.f32 %v2888, %v3048
      %v3050 = vpop.f32.mrb[0].mxu0
      %3051 = vmatprep.mubr.bf16.mxu0 0
      %3052 = vmatmul.mubr.bf16.gmra.mrb[0].mxu0 %v2564
      %v3053 = vpop.f32.mrb[0].mxu0
      %v3054 = vadd.f32 %v2893, %v3053
      %v3055 = vpop.f32.mrb[0].mxu0
      %v3056 = vpop.f32.mrb[0].mxu0
      %v3057 = vadd.f32 %v2896, %v3056
      %v3058 = vpop.f32.mrb[0].mxu0
      %3059 = vmatprep.mubr.bf16.mxu0 0
      %3060 = vmatmul.mubr.bf16.gmra.mrb[0].mxu0 %v2567
      %v3061 = vpop.f32.mrb[0].mxu0
      %v3062 = vadd.f32 %v2901, %v3061
      %v3063 = vpop.f32.mrb[0].mxu0
      %v3064 = vpop.f32.mrb[0].mxu0
      %v3065 = vadd.f32 %v2904, %v3064
      %v3066 = vpop.f32.mrb[0].mxu0
      %3067 = vmatprep.mubr.bf16.mxu0 0
      %3068 = vmatmul.mubr.bf16.gmra.mrb[0].mxu0 %v2570
      %v3069 = vpop.f32.mrb[0].mxu0
      %v3070 = vadd.f32 %v2909, %v3069
      %v3071 = vpop.f32.mrb[0].mxu0
      %v3072 = vpop.f32.mrb[0].mxu0
      %v3073 = vadd.f32 %v2912, %v3072
      %v3074 = vpop.f32.mrb[0].mxu0
      %3075 = vmatprep.mubr.bf16.mxu0 0
      %3076 = vmatmul.mubr.bf16.gmra.mrb[0].mxu0 %v2573
      %v3077 = vpop.f32.mrb[0].mxu0
      %v3078 = vadd.f32 %v2917, %v3077
      %v3079 = vpop.f32.mrb[0].mxu0
      %v3080 = vpop.f32.mrb[0].mxu0
      %v3081 = vadd.f32 %v2920, %v3080
      %v3082 = vpop.f32.mrb[0].mxu0
      %3083 = vmatprep.mubr.bf16.mxu0 0
      %3084 = vmatmul.mubr.bf16.gmra.mrb[0].mxu0 %v2576
      %v3085 = vpop.f32.mrb[0].mxu0
      %v3086 = vadd.f32 %v2925, %v3085
      %v3087 = vpop.f32.mrb[0].mxu0
      %v3088 = vpop.f32.mrb[0].mxu0
      %v3089 = vadd.f32 %v2928, %v3088
      %v3090 = vpop.f32.mrb[0].mxu0
      %3091 = vdwg.mxu0
      %v3092 = vadd.f32 %v2403, %v2966
      %v3093 = vadd.f32 %v2406, %v2969
      %v3094 = vadd.f32 %v2411, %v2974
      %v3095 = vadd.f32 %v2414, %v2977
      %v3096 = vadd.f32 %v2419, %v2982
      %v3097 = vadd.f32 %v2422, %v2985
      %v3098 = vadd.f32 %v2427, %v2990
      %v3099 = vadd.f32 %v2430, %v2993
      %v3100 = vadd.f32 %v2435, %v2998
      %v3101 = vadd.f32 %v2438, %v3001
      %v3102 = vadd.f32 %v2443, %v3006
      %v3103 = vadd.f32 %v2446, %v3009
      %v3104 = vadd.f32 %v2451, %v3014
      %v3105 = vadd.f32 %v2454, %v3017
      %v3106 = vadd.f32 %v2459, %v3022
      %v3107 = vadd.f32 %v2462, %v3025
      %v3108 = vadd.f32 %v2467, %v3030
      %v3109 = vadd.f32 %v2470, %v3033
      %v3110 = vadd.f32 %v2475, %v3038
      %v3111 = vadd.f32 %v2478, %v3041
      %v3112 = vadd.f32 %v2483, %v3046
      %v3113 = vadd.f32 %v2486, %v3049
      %v3114 = vadd.f32 %v2491, %v3054
      %v3115 = vadd.f32 %v2494, %v3057
      %v3116 = vadd.f32 %v2499, %v3062
      %v3117 = vadd.f32 %v2502, %v3065
      %v3118 = vadd.f32 %v2507, %v3070
      %v3119 = vadd.f32 %v2510, %v3073
      %v3120 = vadd.f32 %v2515, %v3078
      %v3121 = vadd.f32 %v2518, %v3081
      %v3122 = vadd.f32 %v2523, %v3086
      %v3123 = vadd.f32 %v2526, %v3089
      %v3124 = vld [vmem:[%s4] sm:$0x1]
      %v3126 = vlaneseq
      %v3127 = vshrl.u32 %v3126, 7
      %v3128 = vsub.s32 0, %v3127
      %v3129 = vrot.slane %v3124, %v3128
      %v3131 = vadd.f32 %v3092, %v3129
      %v3132 = vadd.f32 %v3093, %v3129
      %v3133 = vadd.f32 %v3094, %v3129
      %v3134 = vadd.f32 %v3095, %v3129
      %v3135 = vadd.f32 %v3096, %v3129
      %v3136 = vadd.f32 %v3097, %v3129
      %v3137 = vadd.f32 %v3098, %v3129
      %v3138 = vadd.f32 %v3099, %v3129
      %v3139 = vadd.f32 %v3100, %v3129
      %v3140 = vadd.f32 %v3101, %v3129
      %v3141 = vadd.f32 %v3102, %v3129
      %v3142 = vadd.f32 %v3103, %v3129
      %v3143 = vadd.f32 %v3104, %v3129
      %v3144 = vadd.f32 %v3105, %v3129
      %v3145 = vadd.f32 %v3106, %v3129
      %v3146 = vadd.f32 %v3107, %v3129
      %v3147 = vadd.f32 %v3108, %v3129
      %v3148 = vadd.f32 %v3109, %v3129
      %v3149 = vadd.f32 %v3110, %v3129
      %v3150 = vadd.f32 %v3111, %v3129
      %v3151 = vadd.f32 %v3112, %v3129
      %v3152 = vadd.f32 %v3113, %v3129
      %v3153 = vadd.f32 %v3114, %v3129
      %v3154 = vadd.f32 %v3115, %v3129
      %v3155 = vadd.f32 %v3116, %v3129
      %v3156 = vadd.f32 %v3117, %v3129
      %v3157 = vadd.f32 %v3118, %v3129
      %v3158 = vadd.f32 %v3119, %v3129
      %v3159 = vadd.f32 %v3120, %v3129
      %v3160 = vadd.f32 %v3121, %v3129
      %v3161 = vadd.f32 %v3122, %v3129
      %v3162 = vadd.f32 %v3123, %v3129
      %v3163 = vmax.f32 %v3131, 0.0
      %v3164 = vmax.f32 %v3132, 0.0
      %v3165 = vmax.f32 %v3133, 0.0
      %v3166 = vmax.f32 %v3134, 0.0
      %v3167 = vmax.f32 %v3135, 0.0
      %v3168 = vmax.f32 %v3136, 0.0
      %v3169 = vmax.f32 %v3137, 0.0
      %v3170 = vmax.f32 %v3138, 0.0
      %v3171 = vmax.f32 %v3139, 0.0
      %v3172 = vmax.f32 %v3140, 0.0
      %v3173 = vmax.f32 %v3141, 0.0
      %v3174 = vmax.f32 %v3142, 0.0
      %v3175 = vmax.f32 %v3143, 0.0
      %v3176 = vmax.f32 %v3144, 0.0
      %v3177 = vmax.f32 %v3145, 0.0
      %v3178 = vmax.f32 %v3146, 0.0
      %v3179 = vmax.f32 %v3147, 0.0
      %v3180 = vmax.f32 %v3148, 0.0
      %v3181 = vmax.f32 %v3149, 0.0
      %v3182 = vmax.f32 %v3150, 0.0
      %v3183 = vmax.f32 %v3151, 0.0
      %v3184 = vmax.f32 %v3152, 0.0
      %v3185 = vmax.f32 %v3153, 0.0
      %v3186 = vmax.f32 %v3154, 0.0
      %v3187 = vmax.f32 %v3155, 0.0
      %v3188 = vmax.f32 %v3156, 0.0
      %v3189 = vmax.f32 %v3157, 0.0
      %v3190 = vmax.f32 %v3158, 0.0
      %v3191 = vmax.f32 %v3159, 0.0
      %v3192 = vmax.f32 %v3160, 0.0
      %v3193 = vmax.f32 %v3161, 0.0
      %v3194 = vmax.f32 %v3162, 0.0
      %v3195 = vpack.c.bf16 %v3164, %v3163
      %v3196 = vpack.c.bf16 %v3166, %v3165
      %v3197 = vpack.c.bf16 %v3168, %v3167
      %v3198 = vpack.c.bf16 %v3170, %v3169
      %v3199 = vpack.c.bf16 %v3172, %v3171
      %v3200 = vpack.c.bf16 %v3174, %v3173
      %v3201 = vpack.c.bf16 %v3176, %v3175
      %v3202 = vpack.c.bf16 %v3178, %v3177
      %v3203 = vpack.c.bf16 %v3180, %v3179
      %v3204 = vpack.c.bf16 %v3182, %v3181
      %v3205 = vpack.c.bf16 %v3184, %v3183
      %v3206 = vpack.c.bf16 %v3186, %v3185
      %v3207 = vpack.c.bf16 %v3188, %v3187
      %v3208 = vpack.c.bf16 %v3190, %v3189
      %v3209 = vpack.c.bf16 %v3192, %v3191
      %v3210 = vpack.c.bf16 %v3194, %v3193
      %v3211 = vld [vmem:[%s5] sm:$0xf]
      %v3212 = vld [vmem:[%s5 + $0x4] sm:$0xf]
      %v3213 = vld [vmem:[%s5 + $0x8] sm:$0xf]
      %v3214 = vld [vmem:[%s5 + $0xc] sm:$0xf]
      %v3215 = vld [vmem:[%s5 + $0x10] sm:$0xf]
      %v3216 = vld [vmem:[%s5 + $0x14] sm:$0xf]
      %v3217 = vld [vmem:[%s5 + $0x18] sm:$0xf]
      %v3218 = vld [vmem:[%s5 + $0x1c] sm:$0xf]
      %v3219 = vld [vmem:[%s5 + $0x20] sm:$0xf]
      %v3220 = vld [vmem:[%s5 + $0x24] sm:$0xf]
      %v3221 = vld [vmem:[%s5 + $0x28] sm:$0xf]
      %v3222 = vld [vmem:[%s5 + $0x2c] sm:$0xf]
      %v3223 = vld [vmem:[%s5 + $0x30] sm:$0xf]
      %v3224 = vld [vmem:[%s5 + $0x34] sm:$0xf]
      %v3225 = vld [vmem:[%s5 + $0x38] sm:$0xf]
      %v3226 = vld [vmem:[%s5 + $0x3c] sm:$0xf]
      %v3227 = vld [vmem:[%s6] sm:$0x1]
      %v3229 = vlaneseq
      %v3230 = vshrl.u32 %v3229, 7
      %v3231 = vsub.s32 0, %v3230
      %v3232 = vrot.slane %v3227, %v3231
      %v3250 = vunpack.c.l.b16 %v3211
      %v3251 = vunpack.c.l.b16 %v3212
      %v3252 = vunpack.c.l.b16 %v3213
      %v3253 = vunpack.c.l.b16 %v3214
      %v3254 = vunpack.c.l.b16 %v3215
      %v3255 = vunpack.c.l.b16 %v3216
      %v3256 = vunpack.c.l.b16 %v3217
      %v3257 = vunpack.c.l.b16 %v3218
      %v3258 = vunpack.c.l.b16 %v3219
      %v3259 = vunpack.c.l.b16 %v3220
      %v3260 = vunpack.c.l.b16 %v3221
      %v3261 = vunpack.c.l.b16 %v3222
      %v3262 = vunpack.c.l.b16 %v3223
      %v3263 = vunpack.c.l.b16 %v3224
      %v3264 = vunpack.c.l.b16 %v3225
      %v3265 = vunpack.c.l.b16 %v3226
      %v3266 = vpack.c.b16 %v3251, %v3250
      %v3267 = vpack.c.b16 %v3253, %v3252
      %v3268 = vpack.c.b16 %v3255, %v3254
      %v3269 = vpack.c.b16 %v3257, %v3256
      %v3270 = vpack.c.b16 %v3259, %v3258
      %v3271 = vpack.c.b16 %v3261, %v3260
      %v3272 = vpack.c.b16 %v3263, %v3262
      %v3273 = vpack.c.b16 %v3265, %v3264
      %3282 = vmatprep.subr.bf16.mxu0 0
      %3283 = vmatpush1.bf16.msra.mxu0 %v3266
      %3284 = vmatprep.subr.bf16.mxu0 0
      %3285 = vmatpush1.bf16.msra.mxu0 %v3267
      %3286 = vmatprep.subr.bf16.mxu0 0
      %3287 = vmatpush1.bf16.msra.mxu0 %v3268
      %3288 = vmatprep.subr.bf16.mxu0 0
      %3289 = vmatpush1.bf16.msra.mxu0 %v3269
      %3290 = vmatprep.subr.bf16.mxu0 0
      %3291 = vmatpush1.bf16.msra.mxu0 %v3270
      %3292 = vmatprep.subr.bf16.mxu0 0
      %3293 = vmatpush1.bf16.msra.mxu0 %v3271
      %3294 = vmatprep.subr.bf16.mxu0 0
      %3295 = vmatpush1.bf16.msra.mxu0 %v3272
      %3296 = vmatprep.subr.bf16.mxu0 0
      %3297 = vmatpush1.bf16.msra.mxu0 %v3273
      %3298 = vmatprep.subr.bf16.mxu0 0
      %3299 = vmatpush1.bf16.msra.mxu0 0
      %3300 = vmatprep.subr.bf16.mxu0 0
      %3301 = vmatpush1.bf16.msra.mxu0 0
      %3302 = vmatprep.subr.bf16.mxu0 0
      %3303 = vmatpush1.bf16.msra.mxu0 0
      %3304 = vmatprep.subr.bf16.mxu0 0
      %3305 = vmatpush1.bf16.msra.mxu0 0
      %3306 = vmatprep.subr.bf16.mxu0 0
      %3307 = vmatpush1.bf16.msra.mxu0 0
      %3308 = vmatprep.subr.bf16.mxu0 0
      %3309 = vmatpush1.bf16.msra.mxu0 0
      %3310 = vmatprep.subr.bf16.mxu0 0
      %3311 = vmatpush1.bf16.msra.mxu0 0
      %3312 = vmatprep.subr.bf16.mxu0 0
      %3313 = vmatpush1.bf16.msra.mxu0 0
      %3314 = vmatprep.mubr.bf16.mxu0 0
      %3315 = vmatmul.mubr.bf16.gmra.mrb[0].mxu0 %v3195
      %v3316 = vpop.f32.mrb[0].mxu0
      %v3317 = vadd.f32 %v3232, %v3316
      %v3318 = vpop.f32.mrb[0].mxu0
      %v3319 = vpop.f32.mrb[0].mxu0
      %v3320 = vadd.f32 %v3232, %v3319
      %v3321 = vpop.f32.mrb[0].mxu0
      %3322 = vmatprep.mubr.bf16.mxu0 0
      %3323 = vmatmul.mubr.bf16.gmra.mrb[0].mxu0 %v3196
      %v3324 = vpop.f32.mrb[0].mxu0
      %v3325 = vadd.f32 %v3232, %v3324
      %v3326 = vpop.f32.mrb[0].mxu0
      %v3327 = vpop.f32.mrb[0].mxu0
      %v3328 = vadd.f32 %v3232, %v3327
      %v3329 = vpop.f32.mrb[0].mxu0
      %3330 = vmatprep.mubr.bf16.mxu0 0
      %3331 = vmatmul.mubr.bf16.gmra.mrb[0].mxu0 %v3197
      %v3332 = vpop.f32.mrb[0].mxu0
      %v3333 = vadd.f32 %v3232, %v3332
      %v3334 = vpop.f32.mrb[0].mxu0
      %v3335 = vpop.f32.mrb[0].mxu0
      %v3336 = vadd.f32 %v3232, %v3335
      %v3337 = vpop.f32.mrb[0].mxu0
      %3338 = vmatprep.mubr.bf16.mxu0 0
      %3339 = vmatmul.mubr.bf16.gmra.mrb[0].mxu0 %v3198
      %v3340 = vpop.f32.mrb[0].mxu0
      %v3341 = vadd.f32 %v3232, %v3340
      %v3342 = vpop.f32.mrb[0].mxu0
      %v3343 = vpop.f32.mrb[0].mxu0
      %v3344 = vadd.f32 %v3232, %v3343
      %v3345 = vpop.f32.mrb[0].mxu0
      %3346 = vmatprep.mubr.bf16.mxu0 0
      %3347 = vmatmul.mubr.bf16.gmra.mrb[0].mxu0 %v3199
      %v3348 = vpop.f32.mrb[0].mxu0
      %v3349 = vadd.f32 %v3232, %v3348
      %v3350 = vpop.f32.mrb[0].mxu0
      %v3351 = vpop.f32.mrb[0].mxu0
      %v3352 = vadd.f32 %v3232, %v3351
      %v3353 = vpop.f32.mrb[0].mxu0
      %3354 = vmatprep.mubr.bf16.mxu0 0
      %3355 = vmatmul.mubr.bf16.gmra.mrb[0].mxu0 %v3200
      %v3356 = vpop.f32.mrb[0].mxu0
      %v3357 = vadd.f32 %v3232, %v3356
      %v3358 = vpop.f32.mrb[0].mxu0
      %v3359 = vpop.f32.mrb[0].mxu0
      %v3360 = vadd.f32 %v3232, %v3359
      %v3361 = vpop.f32.mrb[0].mxu0
      %3362 = vmatprep.mubr.bf16.mxu0 0
      %3363 = vmatmul.mubr.bf16.gmra.mrb[0].mxu0 %v3201
      %v3364 = vpop.f32.mrb[0].mxu0
      %v3365 = vadd.f32 %v3232, %v3364
      %v3366 = vpop.f32.mrb[0].mxu0
      %v3367 = vpop.f32.mrb[0].mxu0
      %v3368 = vadd.f32 %v3232, %v3367
      %v3369 = vpop.f32.mrb[0].mxu0
      %3370 = vmatprep.mubr.bf16.mxu0 0
      %3371 = vmatmul.mubr.bf16.gmra.mrb[0].mxu0 %v3202
      %v3372 = vpop.f32.mrb[0].mxu0
      %v3373 = vadd.f32 %v3232, %v3372
      %v3374 = vpop.f32.mrb[0].mxu0
      %v3375 = vpop.f32.mrb[0].mxu0
      %v3376 = vadd.f32 %v3232, %v3375
      %v3377 = vpop.f32.mrb[0].mxu0
      %3378 = vmatprep.mubr.bf16.mxu0 0
      %3379 = vmatmul.mubr.bf16.gmra.mrb[0].mxu0 %v3203
      %v3380 = vpop.f32.mrb[0].mxu0
      %v3381 = vadd.f32 %v3232, %v3380
      %v3382 = vpop.f32.mrb[0].mxu0
      %v3383 = vpop.f32.mrb[0].mxu0
      %v3384 = vadd.f32 %v3232, %v3383
      %v3385 = vpop.f32.mrb[0].mxu0
      %3386 = vmatprep.mubr.bf16.mxu0 0
      %3387 = vmatmul.mubr.bf16.gmra.mrb[0].mxu0 %v3204
      %v3388 = vpop.f32.mrb[0].mxu0
      %v3389 = vadd.f32 %v3232, %v3388
      %v3390 = vpop.f32.mrb[0].mxu0
      %v3391 = vpop.f32.mrb[0].mxu0
      %v3392 = vadd.f32 %v3232, %v3391
      %v3393 = vpop.f32.mrb[0].mxu0
      %3394 = vmatprep.mubr.bf16.mxu0 0
      %3395 = vmatmul.mubr.bf16.gmra.mrb[0].mxu0 %v3205
      %v3396 = vpop.f32.mrb[0].mxu0
      %v3397 = vadd.f32 %v3232, %v3396
      %v3398 = vpop.f32.mrb[0].mxu0
      %v3399 = vpop.f32.mrb[0].mxu0
      %v3400 = vadd.f32 %v3232, %v3399
      %v3401 = vpop.f32.mrb[0].mxu0
      %3402 = vmatprep.mubr.bf16.mxu0 0
      %3403 = vmatmul.mubr.bf16.gmra.mrb[0].mxu0 %v3206
      %v3404 = vpop.f32.mrb[0].mxu0
      %v3405 = vadd.f32 %v3232, %v3404
      %v3406 = vpop.f32.mrb[0].mxu0
      %v3407 = vpop.f32.mrb[0].mxu0
      %v3408 = vadd.f32 %v3232, %v3407
      %v3409 = vpop.f32.mrb[0].mxu0
      %3410 = vmatprep.mubr.bf16.mxu0 0
      %3411 = vmatmul.mubr.bf16.gmra.mrb[0].mxu0 %v3207
      %v3412 = vpop.f32.mrb[0].mxu0
      %v3413 = vadd.f32 %v3232, %v3412
      %v3414 = vpop.f32.mrb[0].mxu0
      %v3415 = vpop.f32.mrb[0].mxu0
      %v3416 = vadd.f32 %v3232, %v3415
      %v3417 = vpop.f32.mrb[0].mxu0
      %3418 = vmatprep.mubr.bf16.mxu0 0
      %3419 = vmatmul.mubr.bf16.gmra.mrb[0].mxu0 %v3208
      %v3420 = vpop.f32.mrb[0].mxu0
      %v3421 = vadd.f32 %v3232, %v3420
      %v3422 = vpop.f32.mrb[0].mxu0
      %v3423 = vpop.f32.mrb[0].mxu0
      %v3424 = vadd.f32 %v3232, %v3423
      %v3425 = vpop.f32.mrb[0].mxu0
      %3426 = vmatprep.mubr.bf16.mxu0 0
      %3427 = vmatmul.mubr.bf16.gmra.mrb[0].mxu0 %v3209
      %v3428 = vpop.f32.mrb[0].mxu0
      %v3429 = vadd.f32 %v3232, %v3428
      %v3430 = vpop.f32.mrb[0].mxu0
      %v3431 = vpop.f32.mrb[0].mxu0
      %v3432 = vadd.f32 %v3232, %v3431
      %v3433 = vpop.f32.mrb[0].mxu0
      %3434 = vmatprep.mubr.bf16.mxu0 0
      %3435 = vmatmul.mubr.bf16.gmra.mrb[0].mxu0 %v3210
      %v3436 = vpop.f32.mrb[0].mxu0
      %v3437 = vadd.f32 %v3232, %v3436
      %v3438 = vpop.f32.mrb[0].mxu0
      %v3439 = vpop.f32.mrb[0].mxu0
      %v3440 = vadd.f32 %v3232, %v3439
      %v3441 = vpop.f32.mrb[0].mxu0
      %3442 = vdwg.mxu0
      %v3443 = vunpack.c.l.bf16 %v280
      %v3444 = vunpack.c.l.bf16 %v281
      %v3445 = vunpack.c.l.bf16 %v282
      %v3446 = vunpack.c.l.bf16 %v283
      %v3447 = vunpack.c.l.bf16 %v284
      %v3448 = vunpack.c.l.bf16 %v285
      %v3449 = vunpack.c.l.bf16 %v286
      %v3450 = vunpack.c.l.bf16 %v287
      %v3451 = vunpack.c.l.bf16 %v288
      %v3452 = vunpack.c.l.bf16 %v289
      %v3453 = vunpack.c.l.bf16 %v290
      %v3454 = vunpack.c.l.bf16 %v291
      %v3455 = vunpack.c.l.bf16 %v292
      %v3456 = vunpack.c.l.bf16 %v293
      %v3457 = vunpack.c.l.bf16 %v294
      %v3458 = vunpack.c.l.bf16 %v295
      %v3459 = vunpack.c.l.bf16 %v296
      %v3460 = vunpack.c.l.bf16 %v297
      %v3461 = vunpack.c.l.bf16 %v298
      %v3462 = vunpack.c.l.bf16 %v299
      %v3463 = vunpack.c.l.bf16 %v300
      %v3464 = vunpack.c.l.bf16 %v301
      %v3465 = vunpack.c.l.bf16 %v302
      %v3466 = vunpack.c.l.bf16 %v303
      %v3467 = vunpack.c.l.bf16 %v304
      %v3468 = vunpack.c.l.bf16 %v305
      %v3469 = vunpack.c.l.bf16 %v306
      %v3470 = vunpack.c.l.bf16 %v307
      %v3471 = vunpack.c.l.bf16 %v308
      %v3472 = vunpack.c.l.bf16 %v309
      %v3473 = vunpack.c.l.bf16 %v310
      %v3474 = vunpack.c.l.bf16 %v311
      %v3475 = vadd.f32 %v3317, %v3443
      %v3476 = vadd.f32 %v3320, %v3444
      %v3477 = vadd.f32 %v3325, %v3445
      %v3478 = vadd.f32 %v3328, %v3446
      %v3479 = vadd.f32 %v3333, %v3447
      %v3480 = vadd.f32 %v3336, %v3448
      %v3481 = vadd.f32 %v3341, %v3449
      %v3482 = vadd.f32 %v3344, %v3450
      %v3483 = vadd.f32 %v3349, %v3451
      %v3484 = vadd.f32 %v3352, %v3452
      %v3485 = vadd.f32 %v3357, %v3453
      %v3486 = vadd.f32 %v3360, %v3454
      %v3487 = vadd.f32 %v3365, %v3455
      %v3488 = vadd.f32 %v3368, %v3456
      %v3489 = vadd.f32 %v3373, %v3457
      %v3490 = vadd.f32 %v3376, %v3458
      %v3491 = vadd.f32 %v3381, %v3459
      %v3492 = vadd.f32 %v3384, %v3460
      %v3493 = vadd.f32 %v3389, %v3461
      %v3494 = vadd.f32 %v3392, %v3462
      %v3495 = vadd.f32 %v3397, %v3463
      %v3496 = vadd.f32 %v3400, %v3464
      %v3497 = vadd.f32 %v3405, %v3465
      %v3498 = vadd.f32 %v3408, %v3466
      %v3499 = vadd.f32 %v3413, %v3467
      %v3500 = vadd.f32 %v3416, %v3468
      %v3501 = vadd.f32 %v3421, %v3469
      %v3502 = vadd.f32 %v3424, %v3470
      %v3503 = vadd.f32 %v3429, %v3471
      %v3504 = vadd.f32 %v3432, %v3472
      %v3505 = vadd.f32 %v3437, %v3473
      %v3506 = vadd.f32 %v3440, %v3474
      %v3507 = vmax.f32 %v3475, 0.0
      %v3508 = vmax.f32 %v3476, 0.0
      %v3509 = vmax.f32 %v3477, 0.0
      %v3510 = vmax.f32 %v3478, 0.0
      %v3511 = vmax.f32 %v3479, 0.0
      %v3512 = vmax.f32 %v3480, 0.0
      %v3513 = vmax.f32 %v3481, 0.0
      %v3514 = vmax.f32 %v3482, 0.0
      %v3515 = vmax.f32 %v3483, 0.0
      %v3516 = vmax.f32 %v3484, 0.0
      %v3517 = vmax.f32 %v3485, 0.0
      %v3518 = vmax.f32 %v3486, 0.0
      %v3519 = vmax.f32 %v3487, 0.0
      %v3520 = vmax.f32 %v3488, 0.0
      %v3521 = vmax.f32 %v3489, 0.0
      %v3522 = vmax.f32 %v3490, 0.0
      %v3523 = vmax.f32 %v3491, 0.0
      %v3524 = vmax.f32 %v3492, 0.0
      %v3525 = vmax.f32 %v3493, 0.0
      %v3526 = vmax.f32 %v3494, 0.0
      %v3527 = vmax.f32 %v3495, 0.0
      %v3528 = vmax.f32 %v3496, 0.0
      %v3529 = vmax.f32 %v3497, 0.0
      %v3530 = vmax.f32 %v3498, 0.0
      %v3531 = vmax.f32 %v3499, 0.0
      %v3532 = vmax.f32 %v3500, 0.0
      %v3533 = vmax.f32 %v3501, 0.0
      %v3534 = vmax.f32 %v3502, 0.0
      %v3535 = vmax.f32 %v3503, 0.0
      %v3536 = vmax.f32 %v3504, 0.0
      %v3537 = vmax.f32 %v3505, 0.0
      %v3538 = vmax.f32 %v3506, 0.0
      %v3539 = vpack.c.bf16 %v3508, %v3507
      %v3540 = vpack.c.bf16 %v3510, %v3509
      %v3541 = vpack.c.bf16 %v3512, %v3511
      %v3542 = vpack.c.bf16 %v3514, %v3513
      %v3543 = vpack.c.bf16 %v3516, %v3515
      %v3544 = vpack.c.bf16 %v3518, %v3517
      %v3545 = vpack.c.bf16 %v3520, %v3519
      %v3546 = vpack.c.bf16 %v3522, %v3521
      %v3547 = vpack.c.bf16 %v3524, %v3523
      %v3548 = vpack.c.bf16 %v3526, %v3525
      %v3549 = vpack.c.bf16 %v3528, %v3527
      %v3550 = vpack.c.bf16 %v3530, %v3529
      %v3551 = vpack.c.bf16 %v3532, %v3531
      %v3552 = vpack.c.bf16 %v3534, %v3533
      %v3553 = vpack.c.bf16 %v3536, %v3535
      %v3554 = vpack.c.bf16 %v3538, %v3537
      %v3571 = vunpack.c.l.b16 %v3539
      %v3572 = vunpack.c.h.b16 %v3539
      %v3573 = vunpack.c.l.b16 %v3540
      %v3574 = vunpack.c.h.b16 %v3540
      %v3575 = vunpack.c.l.b16 %v3541
      %v3576 = vunpack.c.h.b16 %v3541
      %v3577 = vunpack.c.l.b16 %v3542
      %v3578 = vunpack.c.h.b16 %v3542
      %v3579 = vunpack.c.l.b16 %v3543
      %v3580 = vunpack.c.h.b16 %v3543
      %v3581 = vunpack.c.l.b16 %v3544
      %v3582 = vunpack.c.h.b16 %v3544
      %v3583 = vunpack.c.l.b16 %v3545
      %v3584 = vunpack.c.h.b16 %v3545
      %v3585 = vunpack.c.l.b16 %v3546
      %v3586 = vunpack.c.h.b16 %v3546
      %v3587 = vunpack.c.l.b16 %v3547
      %v3588 = vunpack.c.h.b16 %v3547
      %v3589 = vunpack.c.l.b16 %v3548
      %v3590 = vunpack.c.h.b16 %v3548
      %v3591 = vunpack.c.l.b16 %v3549
      %v3592 = vunpack.c.h.b16 %v3549
      %v3593 = vunpack.c.l.b16 %v3550
      %v3594 = vunpack.c.h.b16 %v3550
      %v3595 = vunpack.c.l.b16 %v3551
      %v3596 = vunpack.c.h.b16 %v3551
      %v3597 = vunpack.c.l.b16 %v3552
      %v3598 = vunpack.c.h.b16 %v3552
      %v3599 = vunpack.c.l.b16 %v3553
      %v3600 = vunpack.c.h.b16 %v3553
      %v3601 = vunpack.c.l.b16 %v3554
      %v3602 = vunpack.c.h.b16 %v3554
      %v3603 = vpack.c.b16 %v3571, %v3571
      %v3604 = vpack.c.b16 %v3572, %v3572
      %v3605 = vpack.c.b16 %v3573, %v3573
      %v3606 = vpack.c.b16 %v3574, %v3574
      %v3607 = vpack.c.b16 %v3575, %v3575
      %v3608 = vpack.c.b16 %v3576, %v3576
      %v3609 = vpack.c.b16 %v3577, %v3577
      %v3610 = vpack.c.b16 %v3578, %v3578
      %v3611 = vpack.c.b16 %v3579, %v3579
      %v3612 = vpack.c.b16 %v3580, %v3580
      %v3613 = vpack.c.b16 %v3581, %v3581
      %v3614 = vpack.c.b16 %v3582, %v3582
      %v3615 = vpack.c.b16 %v3583, %v3583
      %v3616 = vpack.c.b16 %v3584, %v3584
      %v3617 = vpack.c.b16 %v3585, %v3585
      %v3618 = vpack.c.b16 %v3586, %v3586
      %v3619 = vpack.c.b16 %v3587, %v3587
      %v3620 = vpack.c.b16 %v3588, %v3588
      %v3621 = vpack.c.b16 %v3589, %v3589
      %v3622 = vpack.c.b16 %v3590, %v3590
      %v3623 = vpack.c.b16 %v3591, %v3591
      %v3624 = vpack.c.b16 %v3592, %v3592
      %v3625 = vpack.c.b16 %v3593, %v3593
      %v3626 = vpack.c.b16 %v3594, %v3594
      %v3627 = vpack.c.b16 %v3595, %v3595
      %v3628 = vpack.c.b16 %v3596, %v3596
      %v3629 = vpack.c.b16 %v3597, %v3597
      %v3630 = vpack.c.b16 %v3598, %v3598
      %v3631 = vpack.c.b16 %v3599, %v3599
      %v3632 = vpack.c.b16 %v3600, %v3600
      %v3633 = vpack.c.b16 %v3601, %v3601
      %v3634 = vpack.c.b16 %v3602, %v3602
      %3667 = vst [vmem:[%s278] sm:$0xf] %v3603
      %3668 = vst [vmem:[%s278 + $0x4] sm:$0xf] %v3604
      %3669 = vst [vmem:[%s278 + $0x8] sm:$0xf] %v3605
      %3670 = vst [vmem:[%s278 + $0xc] sm:$0xf] %v3606
      %3671 = vst [vmem:[%s278 + $0x10] sm:$0xf] %v3607
      %3672 = vst [vmem:[%s278 + $0x14] sm:$0xf] %v3608
      %3673 = vst [vmem:[%s278 + $0x18] sm:$0xf] %v3609
      %3674 = vst [vmem:[%s278 + $0x1c] sm:$0xf] %v3610
      %3675 = vst [vmem:[%s278 + $0x20] sm:$0xf] %v3611
      %3676 = vst [vmem:[%s278 + $0x24] sm:$0xf] %v3612
      %3677 = vst [vmem:[%s278 + $0x28] sm:$0xf] %v3613
      %3678 = vst [vmem:[%s278 + $0x2c] sm:$0xf] %v3614
      %3679 = vst [vmem:[%s278 + $0x30] sm:$0xf] %v3615
      %3680 = vst [vmem:[%s278 + $0x34] sm:$0xf] %v3616
      %3681 = vst [vmem:[%s278 + $0x38] sm:$0xf] %v3617
      %3682 = vst [vmem:[%s278 + $0x3c] sm:$0xf] %v3618
      %3683 = vst [vmem:[%s278 + $0x40] sm:$0xf] %v3619
      %3684 = vst [vmem:[%s278 + $0x44] sm:$0xf] %v3620
      %3685 = vst [vmem:[%s278 + $0x48] sm:$0xf] %v3621
      %3686 = vst [vmem:[%s278 + $0x4c] sm:$0xf] %v3622
      %3687 = vst [vmem:[%s278 + $0x50] sm:$0xf] %v3623
      %3688 = vst [vmem:[%s278 + $0x54] sm:$0xf] %v3624
      %3689 = vst [vmem:[%s278 + $0x58] sm:$0xf] %v3625
      %3690 = vst [vmem:[%s278 + $0x5c] sm:$0xf] %v3626
      %3691 = vst [vmem:[%s278 + $0x60] sm:$0xf] %v3627
      %3692 = vst [vmem:[%s278 + $0x64] sm:$0xf] %v3628
      %3693 = vst [vmem:[%s278 + $0x68] sm:$0xf] %v3629
      %3694 = vst [vmem:[%s278 + $0x6c] sm:$0xf] %v3630
      %3695 = vst [vmem:[%s278 + $0x70] sm:$0xf] %v3631
      %3696 = vst [vmem:[%s278 + $0x74] sm:$0xf] %v3632
      %3697 = vst [vmem:[%s278 + $0x78] sm:$0xf] %v3633
      %3698 = vst [vmem:[%s278 + $0x7c] sm:$0xf] %v3634
      %p3699 = scmp.lt.s32.totalorder %s18, 1
      %s3700 = scalar_select %p3699, %s18, 1
      %s3701 = smul.addr %s3700, 32
      %s3702 = smul.addr %s3701, 4
      %s3703 = scalar_lea.vmem %s7, %s3702
      // Predicated region
      $region49: #{_lambda_.1} parent=47 // pred_check
        %p3704 = pneg %p188
      $region50: #{_lambda_.1} parent=47 // pred_check_branch
        %3706 = sbr.rel (%p3704) target = $region52
      $region51: #{_lambda_.1} parent=47 // pred_region
        _
      $region52: #{_lambda_.1} parent=47 // pred_fallthru
        _
    $region48: #{_lambda_.1} parent=5 // pred_fallthru
      _
    %p3707 = scmp.le.s32.totalorder 2, %s13
    // Predicated region
    $region53: #{_lambda_.1} parent=5 // pred_check
      %p3708 = pneg %p3707
    $region54: #{_lambda_.1} parent=5 // pred_check_branch
      %3710 = sbr.rel (%p3708) target = $region56
    $region55: #{_lambda_.1} parent=5 // pred_region
      %s3711 = ssub.s32 %s13, 2
      // Predicated region
      $region57: #{_lambda_.1} parent=55 // pred_check
        %p3712 = pneg %p194
      $region58: #{_lambda_.1} parent=55 // pred_check_branch
        %3714 = sbr.rel (%p3712) target = $region60
      $region59: #{_lambda_.1} parent=55 // pred_region
        %p3715 = scmp.lt.s32.totalorder %s19, 1
        %s3716 = scalar_select %p3715, %s19, 1
        %s3717 = smul.addr %s3716, 32
        %s3718 = smul.addr %s3717, 4
        %s3719 = scalar_lea.vmem %s7, %s3718
      $region60: #{_lambda_.1} parent=55 // pred_fallthru
        _
    $region56: #{_lambda_.1} parent=5 // pred_fallthru
      _
  $region6: #{_lambda_.1} parent=0 // loop_footer
    %s17 = sadd.s32 1, %s13
  $region7: #{_lambda_.1} parent=0 // loop_footer_branch
    %12 = sbr.rel target = $region3
  $region8: #{_lambda_.1} parent=0 // loop_exit
    _

</llo_original>
